<compile_context>
chip_gen: v6e
topology: v6e:2x2x1
jax: 0.10.0
libtpu: 0.0.40
codegen_flags: <defaults>
</compile_context>

<pallas_src>
import functools

import jax
import jax.numpy as jnp
from jax import lax
from jax.experimental import pallas as pl
from jax.experimental.pallas import tpu as pltpu


def _round_up(x, m):
    return (x + m - 1) // m * m


def _pick_tile(dim, candidates):
    """Largest candidate that divides `dim`, else the full dim (single block)."""
    for t in candidates:
        if dim >= t and dim % t == 0:
            return t
    return dim


# ----------------------------- Pallas kernels ------------------------------- #

def _gemm_prelu_kernel_single_k(alpha_ref, a_ref, b_ref, o_ref, *, apply_prelu):
    """Single-K-block path: one bf16 MXU matmul, f32 result, fused PReLU."""
    y = jnp.dot(a_ref[...], b_ref[...], preferred_element_type=jnp.float32)
    if apply_prelu:
        a = alpha_ref[0]                        # shared PReLU slope (torch default)
        y = jnp.where(y >= 0, y, a * y)         # f32 VPU math (safe on v5e too)
    o_ref[...] = y.astype(o_ref.dtype)


def _gemm_prelu_kernel_k_acc(alpha_ref, a_ref, b_ref, o_ref, acc_ref, *,
                             apply_prelu):
    """K-split path: f32 VMEM accumulator, PReLU fused on the finalize step."""
    @pl.when(pl.program_id(2) == 0)
    def _init():
        acc_ref[...] = jnp.zeros_like(acc_ref)

    acc_ref[...] += jnp.dot(a_ref[...], b_ref[...],
                            preferred_element_type=jnp.float32)

    @pl.when(pl.program_id(2) == pl.num_programs(2) - 1)
    def _finalize():
        y = acc_ref[...]
        if apply_prelu:
            a = alpha_ref[0]
            y = jnp.where(y >= 0, y, a * y)
        o_ref[...] = y.astype(o_ref.dtype)


def pallas_gemm_prelu(patches, w, alpha, apply_prelu):
    """patches: (Mp, Kp) bf16, w: (Kp, Np) bf16 -> (Mp, Np) f32, PReLU fused."""
    Mp, Kp = patches.shape
    Kp2, Np = w.shape
    assert Kp == Kp2 and Mp % 8 == 0 and Kp % 128 == 0 and Np % 128 == 0

    # Tile picks: big M tiles for MXU utilization / fewer grid steps; K tile
    # capped at 2048 and N tile at 256 so double-buffered blocks
    # (2*(tm*tk + tk*tn)*2B + 2*tm*tn*4B + acc) stay well under 16 MiB scoped
    # VMEM even in the worst case (512x2048x256 ~= 7.5 MiB).
    tm = _pick_tile(Mp, (512, 256, 128))
    tk = Kp if Kp <= 2048 else _pick_tile(Kp, (2048, 1024, 512))
    tn = Np if Np <= 256 else _pick_tile(Np, (256, 128))
    kt = Kp // tk

    cost = pl.CostEstimate(
        flops=2 * Mp * Kp * Np,
        transcendentals=0,
        bytes_accessed=Mp * Kp * 2 + Kp * Np * 2 + Mp * Np * 4)

    alpha_arr = jnp.asarray(alpha, dtype=jnp.float32).reshape((1,))

    if kt == 1:
        # Common path for this model: no reduction axis, no accumulator scratch.
        kernel = functools.partial(_gemm_prelu_kernel_single_k,
                                   apply_prelu=apply_prelu)
        return pl.pallas_call(
            kernel,
            out_shape=jax.ShapeDtypeStruct((Mp, Np), jnp.float32),
            grid=(Mp // tm, Np // tn),
            in_specs=[
                pl.BlockSpec(memory_space=pltpu.MemorySpace.SMEM),   # PReLU slope
                pl.BlockSpec((tm, Kp), lambda i, j: (i, 0)),         # im2col tile
                pl.BlockSpec((Kp, tn), lambda i, j: (0, j)),         # weight tile
            ],
            out_specs=pl.BlockSpec((tm, tn), lambda i, j: (i, j)),
            compiler_params=pltpu.CompilerParams(
                dimension_semantics=("parallel", "parallel")),
            cost_estimate=cost,
        )(alpha_arr, patches, w)

    kernel = functools.partial(_gemm_prelu_kernel_k_acc, apply_prelu=apply_prelu)
    return pl.pallas_call(
        kernel,
        out_shape=jax.ShapeDtypeStruct((Mp, Np), jnp.float32),
        grid=(Mp // tm, Np // tn, kt),                        # reduction last
        in_specs=[
            pl.BlockSpec(memory_space=pltpu.MemorySpace.SMEM),       # PReLU slope
            pl.BlockSpec((tm, tk), lambda i, j, k: (i, k)),          # im2col tile
            pl.BlockSpec((tk, tn), lambda i, j, k: (k, j)),          # weight tile
        ],
        out_specs=pl.BlockSpec((tm, tn), lambda i, j, k: (i, j)),
        scratch_shapes=[pltpu.VMEM((tm, tn), jnp.float32)],          # f32 acc
        compiler_params=pltpu.CompilerParams(
            dimension_semantics=("parallel", "parallel", "arbitrary")),
        cost_estimate=cost,
    )(alpha_arr, patches, w)


# ------------------------------ JAX glue ----------------------------------- #

def _im2col_bf16(x_nhwc, k, stride, pad, m_align=8, k_align=128):
    """Emit the patch matrix directly in bf16, padded (single fused producer,
    no extra HBM round trip) to (8,128)-aligned edges."""
    x = x_nhwc.astype(jnp.bfloat16)
    B, H, W, C = x.shape
    if pad:
        x = jnp.pad(x, ((0, 0), (pad, pad), (pad, pad), (0, 0)))
    Ho = (H + 2 * pad - k) // stride + 1
    Wo = (W + 2 * pad - k) // stride + 1
    cols = []
    for i in range(k):
        for j in range(k):
            cols.append(
                x[:, i:i + stride * Ho:stride, j:j + stride * Wo:stride, :])
    p = jnp.stack(cols, axis=3)                    # (B, Ho, Wo, k*k, C)
    M, K = B * Ho * Wo, k * k * C
    p = p.reshape(M, K)
    Mp, Kp = _round_up(M, m_align), _round_up(K, k_align)
    if (Mp, Kp) != (M, K):
        p = jnp.pad(p, ((0, Mp - M), (0, Kp - K)))
    return p, M, K, Ho, Wo


def conv2d_pallas(x_nhwc, w_oihw, stride, pad, alpha, apply_prelu):
    Cout, Cin, k, _ = w_oihw.shape
    patches, M, K, Ho, Wo = _im2col_bf16(x_nhwc, k, stride, pad)
    Kp = patches.shape[1]
    Np = _round_up(Cout, 128)
    # (Cout, Cin, kh, kw) -> (kh, kw, Cin, Cout) -> (kh*kw*Cin, Cout); pad the
    # *small* weight matrix only, then cast to bf16.
    w = jnp.transpose(w_oihw, (2, 3, 1, 0)).reshape(K, Cout)
    w = jnp.pad(w, ((0, Kp - K), (0, Np - Cout))).astype(jnp.bfloat16)
    y = pallas_gemm_prelu(patches, w, alpha, apply_prelu)
    y = y[:M, :Cout]                               # drop alignment padding
    B = x_nhwc.shape[0]
    return y.reshape(B, Ho, Wo, Cout)


def init_params(key, nc, ndf):
    ks = jax.random.split(key, 5)

    def w(k, cout, cin):
        return jax.random.normal(k, (cout, cin, 4, 4), jnp.float32) * 0.05

    return {
        "w1": w(ks[0], ndf, nc),          "a1": 0.25,  # nn.PReLU() default init
        "w2": w(ks[1], ndf * 2, ndf),     "a2": 0.25,
        "w3": w(ks[2], ndf * 4, ndf * 2), "a3": 0.25,
        "w4": w(ks[3], ndf * 8, ndf * 4), "a4": 0.25,
        "w5": w(ks[4], 1, ndf * 8),
    }


def discriminator_forward(params, x_nchw):
    x = jnp.transpose(x_nchw, (0, 2, 3, 1))  # NCHW -> NHWC (channels on lanes)
    x = conv2d_pallas(x, params["w1"], 2, 1, params["a1"], True)
    x = conv2d_pallas(x, params["w2"], 2, 1, params["a2"], True)
    x = conv2d_pallas(x, params["w3"], 2, 1, params["a3"], True)
    x = conv2d_pallas(x, params["w4"], 2, 1, params["a4"], True)
    x = conv2d_pallas(x, params["w5"], 1, 0, 0.0, False)  # final conv, no PReLU
    B = x.shape[0]
    # torch does out.view(B, -1) on an NCHW tensor -> channel-major flatten.
    return jnp.transpose(x, (0, 3, 1, 2)).reshape(B, -1)


# ---------------------------- pure-JAX reference ---------------------------- #

def _conv_ref(x_nchw, w, stride, pad, dtype):
    return lax.conv_general_dilated(
        x_nchw.astype(dtype), w.astype(dtype), (stride, stride),
        ((pad, pad), (pad, pad)),
        dimension_numbers=("NCHW", "OIHW", "NCHW"),
        preferred_element_type=jnp.float32)


def _prelu(x, a):
    return jnp.where(x >= 0, x, a * x)


def discriminator_forward_ref(params, x, dtype=jnp.float32):
    x = _prelu(_conv_ref(x, params["w1"], 2, 1, dtype), params["a1"])
    x = _prelu(_conv_ref(x, params["w2"], 2, 1, dtype), params["a2"])
    x = _prelu(_conv_ref(x, params["w3"], 2, 1, dtype), params["a3"])
    x = _prelu(_conv_ref(x, params["w4"], 2, 1, dtype), params["a4"])
    x = _conv_ref(x, params["w5"], 1, 0, dtype)
    return x.reshape(x.shape[0], -1)


# ---------------------------------- main ------------------------------------ #

if __name__ == "__main__":
    key = jax.random.PRNGKey(0)
    kx, kp = jax.random.split(key)

    # 64x64 is the smallest spatial size the module supports
    # (64 -> 32 -> 16 -> 8 -> 4 -> final 4x4 valid conv -> 1x1).
    B, nc, ndf, H = 2, 3, 8, 64
    x = jax.random.normal(kx, (B, nc, H, H), jnp.float32)
    params = init_params(kp, nc, ndf)

    fwd = jax.jit(discriminator_forward)
    out = jax.block_until_ready(fwd(params, x))
    assert out.shape == (B, 1), out.shape

    # Apples-to-apples check: reference conv with the same bf16-operand /
    # f32-accumulate arithmetic the kernel uses.
    ref_bf16 = discriminator_forward_ref(params, x, dtype=jnp.bfloat16)
    err = float(jnp.max(jnp.abs(out - ref_bf16)))
    scale = float(jnp.max(jnp.abs(ref_bf16))) + 1e-6
    assert err <= 1e-2 * scale + 2e-3, (err, scale)

    # Loose sanity check vs. the full-f32 reference (bounds bf16 rounding drift).
    ref_f32 = discriminator_forward_ref(params, x, dtype=jnp.float32)
    err32 = float(jnp.max(jnp.abs(out - ref_f32)))
    scale32 = float(jnp.max(jnp.abs(ref_f32))) + 1e-6
    assert err32 <= 1e-1 * scale32 + 1e-2, (err32, scale32)

    print("KERNEL_OK")
</pallas_src>

<mosaic_0001>
module attributes {stable_mosaic.version = 11 : i64} {
  func.func @_gemm_prelu_kernel_single_k(%arg0: i32, %arg1: i32, %arg2: memref<1xf32, #tpu.memory_space<smem>>, %arg3: memref<512x128xbf16, #tpu.memory_space<vmem>>, %arg4: memref<128x128xbf16, #tpu.memory_space<vmem>>, %arg5: memref<512x128xf32, #tpu.memory_space<vmem>>) attributes {dimension_semantics = [#tpu.dimension_semantics<parallel>, #tpu.dimension_semantics<parallel>], iteration_bounds = array<i64: 4, 1>, scalar_prefetch = 0 : i64, scratch_operands = 0 : i64, tpu.core_type = #tpu.core_type<tc>, window_params = [{transform_indices = @transform_0, window_bounds = array<i64: 1>}, {transform_indices = @transform_1, window_bounds = array<i64: 512, 128>}, {transform_indices = @transform_2, window_bounds = array<i64: 128, 128>}, {transform_indices = @transform_3, window_bounds = array<i64: 512, 128>}]} {
    %c0 = arith.constant 0 : index
    %c0_0 = arith.constant 0 : index
    %0 = vector.load %arg3[%c0, %c0_0] : memref<512x128xbf16, #tpu.memory_space<vmem>>, vector<512x128xbf16>
    %c0_1 = arith.constant 0 : index
    %c0_2 = arith.constant 0 : index
    %1 = vector.load %arg4[%c0_1, %c0_2] : memref<128x128xbf16, #tpu.memory_space<vmem>>, vector<128x128xbf16>
    %cst = arith.constant dense<0.000000e+00> : vector<512x128xf32>
    %2 = tpu.matmul %0, %1, %cst {dimension_numbers = #tpu.dot_dimension_numbers<[1], [0], [0], [1], [0, 0, 1, 1], [], []>} : vector<512x128xbf16>, vector<128x128xbf16>, vector<512x128xf32> -> vector<512x128xf32>
    %c0_3 = arith.constant 0 : index
    %3 = memref.load %arg2[%c0_3] : memref<1xf32, #tpu.memory_space<smem>>
    %cst_4 = arith.constant 0.000000e+00 : f32
    %4 = vector.broadcast %cst_4 : f32 to vector<512x128xf32>
    %5 = arith.cmpf oge, %2, %4 : vector<512x128xf32>
    %6 = vector.broadcast %3 : f32 to vector<512x128xf32>
    %7 = arith.mulf %6, %2 : vector<512x128xf32>
    %8 = arith.select %5, %2, %7 : vector<512x128xi1>, vector<512x128xf32>
    %c0_5 = arith.constant 0 : index
    %c0_6 = arith.constant 0 : index
    %9 = vector.load %arg5[%c0_5, %c0_6] : memref<512x128xf32, #tpu.memory_space<vmem>>, vector<512x128xf32>
    tpu.vector_store %arg5[%c0_5, %c0_6], %8 {strides = array<i32>} : memref<512x128xf32, #tpu.memory_space<vmem>>, vector<512x128xf32>,
    return
  }
  func.func @transform_0(%arg0: i32, %arg1: i32) -> i32 {
    %c0_i32 = arith.constant 0 : i32
    %c0_i32_0 = arith.constant 0 : i32
    return %c0_i32 : i32
  }
  func.func @transform_1(%arg0: i32, %arg1: i32) -> (i32, i32) {
    %c0_i32 = arith.constant 0 : i32
    %c0_i32_0 = arith.constant 0 : i32
    return %arg0, %c0_i32 : i32, i32
  }
  func.func @transform_2(%arg0: i32, %arg1: i32) -> (i32, i32) {
    %c0_i32 = arith.constant 0 : i32
    %c0_i32_0 = arith.constant 0 : i32
    return %c0_i32, %arg1 : i32, i32
  }
  func.func @transform_3(%arg0: i32, %arg1: i32) -> (i32, i32) {
    %c0_i32 = arith.constant 0 : i32
    return %arg0, %arg1 : i32, i32
  }
}

module attributes {stable_mosaic.version = 11 : i64} {
  func.func @_gemm_prelu_kernel_single_k(%arg0: i32, %arg1: i32, %arg2: memref<1xf32, #tpu.memory_space<smem>>, %arg3: memref<512x128xbf16, #tpu.memory_space<vmem>>, %arg4: memref<128x128xbf16, #tpu.memory_space<vmem>>, %arg5: memref<512x128xf32, #tpu.memory_space<vmem>>) attributes {dimension_semantics = [#tpu.dimension_semantics<parallel>, #tpu.dimension_semantics<parallel>], iteration_bounds = array<i64: 1, 1>, scalar_prefetch = 0 : i64, scratch_operands = 0 : i64, tpu.core_type = #tpu.core_type<tc>, window_params = [{transform_indices = @transform_0, window_bounds = array<i64: 1>}, {transform_indices = @transform_1, window_bounds = array<i64: 512, 128>}, {transform_indices = @transform_2, window_bounds = array<i64: 128, 128>}, {transform_indices = @transform_3, window_bounds = array<i64: 512, 128>}]} {
    %c0 = arith.constant 0 : index
    %c0_0 = arith.constant 0 : index
    %0 = vector.load %arg3[%c0, %c0_0] : memref<512x128xbf16, #tpu.memory_space<vmem>>, vector<512x128xbf16>
    %c0_1 = arith.constant 0 : index
    %c0_2 = arith.constant 0 : index
    %1 = vector.load %arg4[%c0_1, %c0_2] : memref<128x128xbf16, #tpu.memory_space<vmem>>, vector<128x128xbf16>
    %cst = arith.constant dense<0.000000e+00> : vector<512x128xf32>
    %2 = tpu.matmul %0, %1, %cst {dimension_numbers = #tpu.dot_dimension_numbers<[1], [0], [0], [1], [0, 0, 1, 1], [], []>} : vector<512x128xbf16>, vector<128x128xbf16>, vector<512x128xf32> -> vector<512x128xf32>
    %c0_3 = arith.constant 0 : index
    %3 = memref.load %arg2[%c0_3] : memref<1xf32, #tpu.memory_space<smem>>
    %cst_4 = arith.constant 0.000000e+00 : f32
    %4 = vector.broadcast %cst_4 : f32 to vector<512x128xf32>
    %5 = arith.cmpf oge, %2, %4 : vector<512x128xf32>
    %6 = vector.broadcast %3 : f32 to vector<512x128xf32>
    %7 = arith.mulf %6, %2 : vector<512x128xf32>
    %8 = arith.select %5, %2, %7 : vector<512x128xi1>, vector<512x128xf32>
    %c0_5 = arith.constant 0 : index
    %c0_6 = arith.constant 0 : index
    %9 = vector.load %arg5[%c0_5, %c0_6] : memref<512x128xf32, #tpu.memory_space<vmem>>, vector<512x128xf32>
    tpu.vector_store %arg5[%c0_5, %c0_6], %8 {strides = array<i32>} : memref<512x128xf32, #tpu.memory_space<vmem>>, vector<512x128xf32>,
    return
  }
  func.func @transform_0(%arg0: i32, %arg1: i32) -> i32 {
    %c0_i32 = arith.constant 0 : i32
    %c0_i32_0 = arith.constant 0 : i32
    return %c0_i32 : i32
  }
  func.func @transform_1(%arg0: i32, %arg1: i32) -> (i32, i32) {
    %c0_i32 = arith.constant 0 : i32
    %c0_i32_0 = arith.constant 0 : i32
    return %arg0, %c0_i32 : i32, i32
  }
  func.func @transform_2(%arg0: i32, %arg1: i32) -> (i32, i32) {
    %c0_i32 = arith.constant 0 : i32
    %c0_i32_0 = arith.constant 0 : i32
    return %c0_i32, %arg1 : i32, i32
  }
  func.func @transform_3(%arg0: i32, %arg1: i32) -> (i32, i32) {
    %c0_i32 = arith.constant 0 : i32
    return %arg0, %arg1 : i32, i32
  }
}

module attributes {stable_mosaic.version = 11 : i64} {
  func.func @_gemm_prelu_kernel_single_k(%arg0: i32, %arg1: i32, %arg2: memref<1xf32, #tpu.memory_space<smem>>, %arg3: memref<128x256xbf16, #tpu.memory_space<vmem>>, %arg4: memref<256x128xbf16, #tpu.memory_space<vmem>>, %arg5: memref<128x128xf32, #tpu.memory_space<vmem>>) attributes {dimension_semantics = [#tpu.dimension_semantics<parallel>, #tpu.dimension_semantics<parallel>], iteration_bounds = array<i64: 1, 1>, scalar_prefetch = 0 : i64, scratch_operands = 0 : i64, tpu.core_type = #tpu.core_type<tc>, window_params = [{transform_indices = @transform_0, window_bounds = array<i64: 1>}, {transform_indices = @transform_1, window_bounds = array<i64: 128, 256>}, {transform_indices = @transform_2, window_bounds = array<i64: 256, 128>}, {transform_indices = @transform_3, window_bounds = array<i64: 128, 128>}]} {
    %c0 = arith.constant 0 : index
    %c0_0 = arith.constant 0 : index
    %0 = vector.load %arg3[%c0, %c0_0] : memref<128x256xbf16, #tpu.memory_space<vmem>>, vector<128x256xbf16>
    %c0_1 = arith.constant 0 : index
    %c0_2 = arith.constant 0 : index
    %1 = vector.load %arg4[%c0_1, %c0_2] : memref<256x128xbf16, #tpu.memory_space<vmem>>, vector<256x128xbf16>
    %cst = arith.constant dense<0.000000e+00> : vector<128x128xf32>
    %2 = tpu.matmul %0, %1, %cst {dimension_numbers = #tpu.dot_dimension_numbers<[1], [0], [0], [1], [0, 0, 1, 1], [], []>} : vector<128x256xbf16>, vector<256x128xbf16>, vector<128x128xf32> -> vector<128x128xf32>
    %c0_3 = arith.constant 0 : index
    %3 = memref.load %arg2[%c0_3] : memref<1xf32, #tpu.memory_space<smem>>
    %cst_4 = arith.constant 0.000000e+00 : f32
    %4 = vector.broadcast %cst_4 : f32 to vector<128x128xf32>
    %5 = arith.cmpf oge, %2, %4 : vector<128x128xf32>
    %6 = vector.broadcast %3 : f32 to vector<128x128xf32>
    %7 = arith.mulf %6, %2 : vector<128x128xf32>
    %8 = arith.select %5, %2, %7 : vector<128x128xi1>, vector<128x128xf32>
    %c0_5 = arith.constant 0 : index
    %c0_6 = arith.constant 0 : index
    %9 = vector.load %arg5[%c0_5, %c0_6] : memref<128x128xf32, #tpu.memory_space<vmem>>, vector<128x128xf32>
    tpu.vector_store %arg5[%c0_5, %c0_6], %8 {strides = array<i32>} : memref<128x128xf32, #tpu.memory_space<vmem>>, vector<128x128xf32>,
    return
  }
  func.func @transform_0(%arg0: i32, %arg1: i32) -> i32 {
    %c0_i32 = arith.constant 0 : i32
    %c0_i32_0 = arith.constant 0 : i32
    return %c0_i32 : i32
  }
  func.func @transform_1(%arg0: i32, %arg1: i32) -> (i32, i32) {
    %c0_i32 = arith.constant 0 : i32
    %c0_i32_0 = arith.constant 0 : i32
    return %arg0, %c0_i32 : i32, i32
  }
  func.func @transform_2(%arg0: i32, %arg1: i32) -> (i32, i32) {
    %c0_i32 = arith.constant 0 : i32
    %c0_i32_0 = arith.constant 0 : i32
    return %c0_i32, %arg1 : i32, i32
  }
  func.func @transform_3(%arg0: i32, %arg1: i32) -> (i32, i32) {
    %c0_i32 = arith.constant 0 : i32
    return %arg0, %arg1 : i32, i32
  }
}

module attributes {stable_mosaic.version = 11 : i64} {
  func.func @_gemm_prelu_kernel_single_k(%arg0: i32, %arg1: i32, %arg2: memref<1xf32, #tpu.memory_space<smem>>, %arg3: memref<32x512xbf16, #tpu.memory_space<vmem>>, %arg4: memref<512x128xbf16, #tpu.memory_space<vmem>>, %arg5: memref<32x128xf32, #tpu.memory_space<vmem>>) attributes {dimension_semantics = [#tpu.dimension_semantics<parallel>, #tpu.dimension_semantics<parallel>], iteration_bounds = array<i64: 1, 1>, scalar_prefetch = 0 : i64, scratch_operands = 0 : i64, tpu.core_type = #tpu.core_type<tc>, window_params = [{transform_indices = @transform_0, window_bounds = array<i64: 1>}, {transform_indices = @transform_1, window_bounds = array<i64: 32, 512>}, {transform_indices = @transform_2, window_bounds = array<i64: 512, 128>}, {transform_indices = @transform_3, window_bounds = array<i64: 32, 128>}]} {
    %c0 = arith.constant 0 : index
    %c0_0 = arith.constant 0 : index
    %0 = vector.load %arg3[%c0, %c0_0] : memref<32x512xbf16, #tpu.memory_space<vmem>>, vector<32x512xbf16>
    %c0_1 = arith.constant 0 : index
    %c0_2 = arith.constant 0 : index
    %1 = vector.load %arg4[%c0_1, %c0_2] : memref<512x128xbf16, #tpu.memory_space<vmem>>, vector<512x128xbf16>
    %cst = arith.constant dense<0.000000e+00> : vector<32x128xf32>
    %2 = tpu.matmul %0, %1, %cst {dimension_numbers = #tpu.dot_dimension_numbers<[1], [0], [0], [1], [0, 0, 1, 1], [], []>} : vector<32x512xbf16>, vector<512x128xbf16>, vector<32x128xf32> -> vector<32x128xf32>
    %c0_3 = arith.constant 0 : index
    %3 = memref.load %arg2[%c0_3] : memref<1xf32, #tpu.memory_space<smem>>
    %cst_4 = arith.constant 0.000000e+00 : f32
    %4 = vector.broadcast %cst_4 : f32 to vector<32x128xf32>
    %5 = arith.cmpf oge, %2, %4 : vector<32x128xf32>
    %6 = vector.broadcast %3 : f32 to vector<32x128xf32>
    %7 = arith.mulf %6, %2 : vector<32x128xf32>
    %8 = arith.select %5, %2, %7 : vector<32x128xi1>, vector<32x128xf32>
    %c0_5 = arith.constant 0 : index
    %c0_6 = arith.constant 0 : index
    %9 = vector.load %arg5[%c0_5, %c0_6] : memref<32x128xf32, #tpu.memory_space<vmem>>, vector<32x128xf32>
    tpu.vector_store %arg5[%c0_5, %c0_6], %8 {strides = array<i32>} : memref<32x128xf32, #tpu.memory_space<vmem>>, vector<32x128xf32>,
    return
  }
  func.func @transform_0(%arg0: i32, %arg1: i32) -> i32 {
    %c0_i32 = arith.constant 0 : i32
    %c0_i32_0 = arith.constant 0 : i32
    return %c0_i32 : i32
  }
  func.func @transform_1(%arg0: i32, %arg1: i32) -> (i32, i32) {
    %c0_i32 = arith.constant 0 : i32
    %c0_i32_0 = arith.constant 0 : i32
    return %arg0, %c0_i32 : i32, i32
  }
  func.func @transform_2(%arg0: i32, %arg1: i32) -> (i32, i32) {
    %c0_i32 = arith.constant 0 : i32
    %c0_i32_0 = arith.constant 0 : i32
    return %c0_i32, %arg1 : i32, i32
  }
  func.func @transform_3(%arg0: i32, %arg1: i32) -> (i32, i32) {
    %c0_i32 = arith.constant 0 : i32
    return %arg0, %arg1 : i32, i32
  }
}

module attributes {stable_mosaic.version = 11 : i64} {
  func.func @_gemm_prelu_kernel_single_k(%arg0: i32, %arg1: i32, %arg2: memref<1xf32, #tpu.memory_space<smem>>, %arg3: memref<8x1024xbf16, #tpu.memory_space<vmem>>, %arg4: memref<1024x128xbf16, #tpu.memory_space<vmem>>, %arg5: memref<8x128xf32, #tpu.memory_space<vmem>>) attributes {dimension_semantics = [#tpu.dimension_semantics<parallel>, #tpu.dimension_semantics<parallel>], iteration_bounds = array<i64: 1, 1>, scalar_prefetch = 0 : i64, scratch_operands = 0 : i64, tpu.core_type = #tpu.core_type<tc>, window_params = [{transform_indices = @transform_0, window_bounds = array<i64: 1>}, {transform_indices = @transform_1, window_bounds = array<i64: 8, 1024>}, {transform_indices = @transform_2, window_bounds = array<i64: 1024, 128>}, {transform_indices = @transform_3, window_bounds = array<i64: 8, 128>}]} {
    %c0 = arith.constant 0 : index
    %c0_0 = arith.constant 0 : index
    %0 = vector.load %arg3[%c0, %c0_0] : memref<8x1024xbf16, #tpu.memory_space<vmem>>, vector<8x1024xbf16>
    %c0_1 = arith.constant 0 : index
    %c0_2 = arith.constant 0 : index
    %1 = vector.load %arg4[%c0_1, %c0_2] : memref<1024x128xbf16, #tpu.memory_space<vmem>>, vector<1024x128xbf16>
    %cst = arith.constant dense<0.000000e+00> : vector<8x128xf32>
    %2 = tpu.matmul %0, %1, %cst {dimension_numbers = #tpu.dot_dimension_numbers<[1], [0], [0], [1], [0, 0, 1, 1], [], []>} : vector<8x1024xbf16>, vector<1024x128xbf16>, vector<8x128xf32> -> vector<8x128xf32>
    %c0_3 = arith.constant 0 : index
    %c0_4 = arith.constant 0 : index
    %3 = vector.load %arg5[%c0_3, %c0_4] : memref<8x128xf32, #tpu.memory_space<vmem>>, vector<8x128xf32>
    tpu.vector_store %arg5[%c0_3, %c0_4], %2 {strides = array<i32>} : memref<8x128xf32, #tpu.memory_space<vmem>>, vector<8x128xf32>,
    return
  }
  func.func @transform_0(%arg0: i32, %arg1: i32) -> i32 {
    %c0_i32 = arith.constant 0 : i32
    %c0_i32_0 = arith.constant 0 : i32
    return %c0_i32 : i32
  }
  func.func @transform_1(%arg0: i32, %arg1: i32) -> (i32, i32) {
    %c0_i32 = arith.constant 0 : i32
    %c0_i32_0 = arith.constant 0 : i32
    return %arg0, %c0_i32 : i32, i32
  }
  func.func @transform_2(%arg0: i32, %arg1: i32) -> (i32, i32) {
    %c0_i32 = arith.constant 0 : i32
    %c0_i32_0 = arith.constant 0 : i32
    return %c0_i32, %arg1 : i32, i32
  }
  func.func @transform_3(%arg0: i32, %arg1: i32) -> (i32, i32) {
    %c0_i32 = arith.constant 0 : i32
    return %arg0, %arg1 : i32, i32
  }
}

</mosaic_0001>

<llo_original>
// kernel: discriminator_forward.5
$region0: #{discriminator_forward.5}
  #allocation0 [shape = 'u32[]', space=smem, size = 0x4, offset = 0x4, fixed_abs, tag = 'smem constant byte address 0x4 - core index']
  #allocation1 [shape = 'u32[144,128]{1,0:T(1,128)}', space=vmem, size = 0x12000, scoped, tag = 'internal scratch']
  #allocation2 [shape = 'f32[1]{0:T(128)S(6)}', space=smem, size = 0x200, scoped, tag = 'scoped memory for discriminator_forward.5']
  %s0 = inlined_call_operand.<no memory space> [shape: f32[1], index: 0, kind: input, shape index: {}]
  %s1 = inlined_call_operand.vmem [shape: bf16[2048,128], index: 1, kind: input, shape index: {}]
  %s2 = inlined_call_operand.vmem [shape: bf16[128,128], index: 2, kind: input, shape index: {}]
  %s3 = inlined_call_operand.vmem [shape: f32[2048,128], index: 3, kind: output, shape index: {}]
  %s4 = sld [smem:[#allocation0]]
  $region45: #{discriminator_forward.5} parent=0
    _
  %s6 = ssub.s32 1, %s4
  %s7 = scalar_select 0, %s6, %s4
  %8 = sst [smem:[#allocation2]] %s0
  loop: start=0, step=1, limit=6
  $region2: #{discriminator_forward.5} parent=0 // loop_pre_header
    _
  $region3: #{discriminator_forward.5} parent=0 // loop_header
    %s10 = sphi 0, %s14
    %p11 = scmp.ge.s32.totalorder %s10, 6
    %s17 = sphi 0, %s29
    %s18 = sphi 0, %s25
    %s19 = sphi 0, %s17
    %s20 = sphi 0, %s18
    %s21 = sphi 0, %s19
    %s22 = sphi 0, %s20
    %s30 = sphi 0, %s30
    %s32 = sphi 0, %s30
    %s33 = sphi 0, %s32
    %s47 = sphi 0, %s33
    %s53 = sphi 0, %s55
    %s56 = sphi 0, %s53
    %s57 = sphi 0, %s56
    %s73 = sphi 0, %s57
    %s79 = sphi 0, %s81
    %s82 = sphi 0, %s79
    %s83 = sphi 0, %s82
    %s99 = sphi 0, %s83
    %s107 = sphi 0, %s109
    %s110 = sphi 0, %s107
    %s111 = sphi 0, %s110
    %s127 = sphi 0, %s111
  $region4: #{discriminator_forward.5} parent=0 // loop_header_branch
    %13 = sbr.rel (%p11) target = $region8
  $region5: #{discriminator_forward.5} parent=0 // loop_body
    %s15 = ssub.s32 %s10, 1
    %s16 = ssub.s32 %s10, 2
    %s23 = sadd.s32 1, %s18
    %p24 = scmp.ge.s32.totalorder %s23, 1
    %s25 = scalar_select %p24, 0, %s23
    %s26 = sadd.s32 1, %s17
    %s27 = scalar_select %p24, %s26, %s17
    %p28 = scmp.ge.s32.totalorder %s27, 4
    %s29 = scalar_select %p28, 0, %s27
    %s31 = sadd.s32 %s30, 1
    %p34 = scmp.eq.s32.totalorder %s10, 3
    %p35 = scmp.ne.s32.totalorder %s30, %s32
    %p36 = scmp.eq.s32.totalorder %s10, 0
    %p37 = por %p35, %p36
    %p38 = scmp.ne.s32.totalorder %s30, %s32
    %p39 = scmp.eq.s32.totalorder %s15, 3
    %p40 = por %p38, %p39
    %p41 = scmp.ne.s32.totalorder %s32, %s33
    %p42 = scmp.eq.s32.totalorder %s15, 0
    %p43 = por %p41, %p42
    %p44 = scmp.ne.s32.totalorder %s32, %s33
    %p45 = scmp.eq.s32.totalorder %s16, 3
    %p46 = por %p44, %p45
    %p48 = scmp.ne.s32.totalorder %s33, %s47
    %p49 = scmp.eq.s32.totalorder %s16, 0
    %p50 = por %p48, %p49
    %s51 = ssub.s32 %s17, %s29
    %p52 = scmp.eq.s32.totalorder %s51, 0
    %s54 = sadd.s32 %s53, 1
    %s55 = scalar_select %p52, %s53, %s54
    %p58 = pneg %p52
    %p59 = scmp.eq.s32.totalorder %s10, 3
    %p60 = por %p58, %p59
    %p61 = scmp.ne.s32.totalorder %s53, %s56
    %p62 = scmp.eq.s32.totalorder %s10, 0
    %p63 = por %p61, %p62
    %p64 = scmp.ne.s32.totalorder %s53, %s56
    %p65 = scmp.eq.s32.totalorder %s15, 3
    %p66 = por %p64, %p65
    %p67 = scmp.ne.s32.totalorder %s56, %s57
    %p68 = scmp.eq.s32.totalorder %s15, 0
    %p69 = por %p67, %p68
    %p70 = scmp.ne.s32.totalorder %s56, %s57
    %p71 = scmp.eq.s32.totalorder %s16, 3
    %p72 = por %p70, %p71
    %p74 = scmp.ne.s32.totalorder %s57, %s73
    %p75 = scmp.eq.s32.totalorder %s16, 0
    %p76 = por %p74, %p75
    %s77 = ssub.s32 %s18, %s25
    %p78 = scmp.eq.s32.totalorder %s77, 0
    %s80 = sadd.s32 %s79, 1
    %s81 = scalar_select %p78, %s79, %s80
    %p84 = pneg %p78
    %p85 = scmp.eq.s32.totalorder %s10, 3
    %p86 = por %p84, %p85
    %p87 = scmp.ne.s32.totalorder %s79, %s82
    %p88 = scmp.eq.s32.totalorder %s10, 0
    %p89 = por %p87, %p88
    %p90 = scmp.ne.s32.totalorder %s79, %s82
    %p91 = scmp.eq.s32.totalorder %s15, 3
    %p92 = por %p90, %p91
    %p93 = scmp.ne.s32.totalorder %s82, %s83
    %p94 = scmp.eq.s32.totalorder %s15, 0
    %p95 = por %p93, %p94
    %p96 = scmp.ne.s32.totalorder %s82, %s83
    %p97 = scmp.eq.s32.totalorder %s16, 3
    %p98 = por %p96, %p97
    %p100 = scmp.ne.s32.totalorder %s83, %s99
    %p101 = scmp.eq.s32.totalorder %s16, 0
    %p102 = por %p100, %p101
    %s103 = ssub.s32 %s17, %s29
    %s104 = ssub.s32 %s18, %s25
    %s105 = sor.u32 %s103, %s104
    %p106 = scmp.eq.s32.totalorder %s105, 0
    %s108 = sadd.s32 %s107, 1
    %s109 = scalar_select %p106, %s107, %s108
    %p112 = pneg %p106
    %p113 = scmp.eq.s32.totalorder %s10, 3
    %p114 = por %p112, %p113
    %p115 = scmp.ne.s32.totalorder %s107, %s110
    %p116 = scmp.eq.s32.totalorder %s10, 0
    %p117 = por %p115, %p116
    %p118 = scmp.ne.s32.totalorder %s107, %s110
    %p119 = scmp.eq.s32.totalorder %s15, 3
    %p120 = por %p118, %p119
    %p121 = scmp.ne.s32.totalorder %s110, %s111
    %p122 = scmp.eq.s32.totalorder %s15, 0
    %p123 = por %p121, %p122
    %p124 = scmp.ne.s32.totalorder %s110, %s111
    %p125 = scmp.eq.s32.totalorder %s16, 3
    %p126 = por %p124, %p125
    %p128 = scmp.ne.s32.totalorder %s111, %s127
    %p129 = scmp.eq.s32.totalorder %s16, 0
    %p130 = por %p128, %p129
    %p131 = scmp.le.s32.totalorder 1, %s10
    %p132 = scmp.lt.s32.totalorder %s10, 5
    %p133 = pnand %p131, %p132
    %p134 = pneg %p133
    // Predicated region
    $region9: #{discriminator_forward.5} parent=5 // pred_check
      _
    $region10: #{discriminator_forward.5} parent=5 // pred_check_branch
      %136 = sbr.rel (%p133) target = $region12
    $region11: #{discriminator_forward.5} parent=5 // pred_region
      %s137 = ssub.s32 %s10, 1
      // Predicated region
      $region13: #{discriminator_forward.5} parent=11 // pred_check
        %p138 = pneg %p43
      $region14: #{discriminator_forward.5} parent=11 // pred_check_branch
        %140 = sbr.rel (%p138) target = $region16
      $region15: #{discriminator_forward.5} parent=11 // pred_region
        _
      $region16: #{discriminator_forward.5} parent=11 // pred_fallthru
        _
      // Predicated region
      $region17: #{discriminator_forward.5} parent=11 // pred_check
        %p141 = pneg %p95
      $region18: #{discriminator_forward.5} parent=11 // pred_check_branch
        %143 = sbr.rel (%p141) target = $region20
      $region19: #{discriminator_forward.5} parent=11 // pred_region
        %p144 = scmp.lt.s32.totalorder %s20, 0
        %s145 = scalar_select %p144, %s20, 0
        %s146 = smul.addr %s145, 4
        %s147 = scalar_lea.vmem %s2, %s146
      $region20: #{discriminator_forward.5} parent=11 // pred_fallthru
        _
    $region12: #{discriminator_forward.5} parent=5 // pred_fallthru
      _
    %p148 = scmp.lt.s32.totalorder %s10, 4
    // Predicated region
    $region21: #{discriminator_forward.5} parent=5 // pred_check
      %p149 = pneg %p148
    $region22: #{discriminator_forward.5} parent=5 // pred_check_branch
      %151 = sbr.rel (%p149) target = $region24
    $region23: #{discriminator_forward.5} parent=5 // pred_region
      // Predicated region
      $region25: #{discriminator_forward.5} parent=23 // pred_check
        %p152 = pneg %p63
      $region26: #{discriminator_forward.5} parent=23 // pred_check_branch
        %154 = sbr.rel (%p152) target = $region28
      $region27: #{discriminator_forward.5} parent=23 // pred_region
        %s155 = smul.u32 64, %s17
        %p156 = scmp.lt.s32.totalorder %s155, 255
        %s157 = scalar_select %p156, %s155, 255
        %s158 = smul.addr %s157, 4
        %s159 = scalar_lea.vmem %s1, %s158
        %s160 = smul.u32 64, %s17
      $region28: #{discriminator_forward.5} parent=23 // pred_fallthru
        _
    $region24: #{discriminator_forward.5} parent=5 // pred_fallthru
      _
    %p161 = scmp.le.s32.totalorder 1, %s10
    %p162 = scmp.lt.s32.totalorder %s10, 5
    %p163 = pnand %p161, %p162
    %p164 = pneg %p163
    // Predicated region
    $region29: #{discriminator_forward.5} parent=5 // pred_check
      _
    $region30: #{discriminator_forward.5} parent=5 // pred_check_branch
      %166 = sbr.rel (%p163) target = $region32
    $region31: #{discriminator_forward.5} parent=5 // pred_region
      %s167 = ssub.s32 %s10, 1
      %p168 = pneg %p43
      %p169 = pneg %p40
      %s170 = smul.u32 64, %s19
      %p171 = scmp.lt.s32.totalorder %s170, 255
      %s172 = scalar_select %p171, %s170, 255
      %s173 = smul.addr %s172, 4
      %s174 = scalar_lea.vmem %s1, %s173
      %p175 = pneg %p69
      %p176 = pneg %p66
      %p177 = scmp.lt.s32.totalorder %s20, 0
      %s178 = scalar_select %p177, %s20, 0
      %s179 = smul.addr %s178, 4
      %s180 = scalar_lea.vmem %s2, %s179
      %p181 = pneg %p95
      %p182 = pneg %p92
      %p183 = pneg %p123
      %p184 = pneg %p120
      %s185 = smul.u32 64, %s19
      %p186 = scmp.lt.s32.totalorder %s185, 255
      %s187 = scalar_select %p186, %s185, 255
      %p188 = scmp.lt.s32.totalorder %s20, 0
      %s189 = scalar_select %p188, %s20, 0
      %s190 = sadd.s32 %s189, %s187
      %s191 = smul.addr %s190, 8
      %s192 = scalar_lea.vmem %s3, %s191
      %s193 = smul.u32 64, %s19
      %p194 = scmp.lt.s32.totalorder %s193, 255
      %s195 = scalar_select %p194, %s193, 255
      %s196 = smul.addr %s195, 4
      %s197 = scalar_lea.vmem %s1, %s196
      %s198 = smul.u32 64, %s19
      %p199 = scmp.lt.s32.totalorder %s20, 0
      %s200 = scalar_select %p199, %s20, 0
      %s201 = smul.addr %s200, 4
      %s202 = scalar_lea.vmem %s2, %s201
      %s203 = smul.u32 64, %s19
      %p204 = scmp.lt.s32.totalorder %s203, 255
      %s205 = scalar_select %p204, %s203, 255
      %p206 = scmp.lt.s32.totalorder %s20, 0
      %s207 = scalar_select %p206, %s20, 0
      %s208 = sadd.s32 %s207, %s205
      %s209 = smul.addr %s208, 8
      %s210 = scalar_lea.vmem %s3, %s209
      %s211 = smul.u32 64, %s19
      %v213 = vld [vmem:[%s197] sm:$0xf]
      %v214 = vld [vmem:[%s197 + $0x4] sm:$0xf]
      %v215 = vld [vmem:[%s197 + $0x8] sm:$0xf]
      %v216 = vld [vmem:[%s197 + $0xc] sm:$0xf]
      %v217 = vld [vmem:[%s197 + $0x10] sm:$0xf]
      %v218 = vld [vmem:[%s197 + $0x14] sm:$0xf]
      %v219 = vld [vmem:[%s197 + $0x18] sm:$0xf]
      %v220 = vld [vmem:[%s197 + $0x1c] sm:$0xf]
      %v221 = vld [vmem:[%s197 + $0x20] sm:$0xf]
      %v222 = vld [vmem:[%s197 + $0x24] sm:$0xf]
      %v223 = vld [vmem:[%s197 + $0x28] sm:$0xf]
      %v224 = vld [vmem:[%s197 + $0x2c] sm:$0xf]
      %v225 = vld [vmem:[%s197 + $0x30] sm:$0xf]
      %v226 = vld [vmem:[%s197 + $0x34] sm:$0xf]
      %v227 = vld [vmem:[%s197 + $0x38] sm:$0xf]
      %v228 = vld [vmem:[%s197 + $0x3c] sm:$0xf]
      %v229 = vld [vmem:[%s197 + $0x40] sm:$0xf]
      %v230 = vld [vmem:[%s197 + $0x44] sm:$0xf]
      %v231 = vld [vmem:[%s197 + $0x48] sm:$0xf]
      %v232 = vld [vmem:[%s197 + $0x4c] sm:$0xf]
      %v233 = vld [vmem:[%s197 + $0x50] sm:$0xf]
      %v234 = vld [vmem:[%s197 + $0x54] sm:$0xf]
      %v235 = vld [vmem:[%s197 + $0x58] sm:$0xf]
      %v236 = vld [vmem:[%s197 + $0x5c] sm:$0xf]
      %v237 = vld [vmem:[%s197 + $0x60] sm:$0xf]
      %v238 = vld [vmem:[%s197 + $0x64] sm:$0xf]
      %v239 = vld [vmem:[%s197 + $0x68] sm:$0xf]
      %v240 = vld [vmem:[%s197 + $0x6c] sm:$0xf]
      %v241 = vld [vmem:[%s197 + $0x70] sm:$0xf]
      %v242 = vld [vmem:[%s197 + $0x74] sm:$0xf]
      %v243 = vld [vmem:[%s197 + $0x78] sm:$0xf]
      %v244 = vld [vmem:[%s197 + $0x7c] sm:$0xf]
      %v245 = vld [vmem:[%s197 + $0x80] sm:$0xf]
      %v246 = vld [vmem:[%s197 + $0x84] sm:$0xf]
      %v247 = vld [vmem:[%s197 + $0x88] sm:$0xf]
      %v248 = vld [vmem:[%s197 + $0x8c] sm:$0xf]
      %v249 = vld [vmem:[%s197 + $0x90] sm:$0xf]
      %v250 = vld [vmem:[%s197 + $0x94] sm:$0xf]
      %v251 = vld [vmem:[%s197 + $0x98] sm:$0xf]
      %v252 = vld [vmem:[%s197 + $0x9c] sm:$0xf]
      %v253 = vld [vmem:[%s197 + $0xa0] sm:$0xf]
      %v254 = vld [vmem:[%s197 + $0xa4] sm:$0xf]
      %v255 = vld [vmem:[%s197 + $0xa8] sm:$0xf]
      %v256 = vld [vmem:[%s197 + $0xac] sm:$0xf]
      %v257 = vld [vmem:[%s197 + $0xb0] sm:$0xf]
      %v258 = vld [vmem:[%s197 + $0xb4] sm:$0xf]
      %v259 = vld [vmem:[%s197 + $0xb8] sm:$0xf]
      %v260 = vld [vmem:[%s197 + $0xbc] sm:$0xf]
      %v261 = vld [vmem:[%s197 + $0xc0] sm:$0xf]
      %v262 = vld [vmem:[%s197 + $0xc4] sm:$0xf]
      %v263 = vld [vmem:[%s197 + $0xc8] sm:$0xf]
      %v264 = vld [vmem:[%s197 + $0xcc] sm:$0xf]
      %v265 = vld [vmem:[%s197 + $0xd0] sm:$0xf]
      %v266 = vld [vmem:[%s197 + $0xd4] sm:$0xf]
      %v267 = vld [vmem:[%s197 + $0xd8] sm:$0xf]
      %v268 = vld [vmem:[%s197 + $0xdc] sm:$0xf]
      %v269 = vld [vmem:[%s197 + $0xe0] sm:$0xf]
      %v270 = vld [vmem:[%s197 + $0xe4] sm:$0xf]
      %v271 = vld [vmem:[%s197 + $0xe8] sm:$0xf]
      %v272 = vld [vmem:[%s197 + $0xec] sm:$0xf]
      %v273 = vld [vmem:[%s197 + $0xf0] sm:$0xf]
      %v274 = vld [vmem:[%s197 + $0xf4] sm:$0xf]
      %v275 = vld [vmem:[%s197 + $0xf8] sm:$0xf]
      %v276 = vld [vmem:[%s197 + $0xfc] sm:$0xf]
      %v277 = vld [vmem:[%s202] sm:$0xf]
      %v278 = vld [vmem:[%s202 + $0x4] sm:$0xf]
      %v279 = vld [vmem:[%s202 + $0x8] sm:$0xf]
      %v280 = vld [vmem:[%s202 + $0xc] sm:$0xf]
      %v281 = vld [vmem:[%s202 + $0x10] sm:$0xf]
      %v282 = vld [vmem:[%s202 + $0x14] sm:$0xf]
      %v283 = vld [vmem:[%s202 + $0x18] sm:$0xf]
      %v284 = vld [vmem:[%s202 + $0x1c] sm:$0xf]
      %v285 = vld [vmem:[%s202 + $0x20] sm:$0xf]
      %v286 = vld [vmem:[%s202 + $0x24] sm:$0xf]
      %v287 = vld [vmem:[%s202 + $0x28] sm:$0xf]
      %v288 = vld [vmem:[%s202 + $0x2c] sm:$0xf]
      %v289 = vld [vmem:[%s202 + $0x30] sm:$0xf]
      %v290 = vld [vmem:[%s202 + $0x34] sm:$0xf]
      %v291 = vld [vmem:[%s202 + $0x38] sm:$0xf]
      %v292 = vld [vmem:[%s202 + $0x3c] sm:$0xf]
      %v357 = vunpack.c.l.b16 %v213
      %v358 = vunpack.c.l.b16 %v214
      %v359 = vunpack.c.l.b16 %v215
      %v360 = vunpack.c.l.b16 %v216
      %v361 = vunpack.c.l.b16 %v217
      %v362 = vunpack.c.l.b16 %v218
      %v363 = vunpack.c.l.b16 %v219
      %v364 = vunpack.c.l.b16 %v220
      %v365 = vunpack.c.l.b16 %v221
      %v366 = vunpack.c.l.b16 %v222
      %v367 = vunpack.c.l.b16 %v223
      %v368 = vunpack.c.l.b16 %v224
      %v369 = vunpack.c.l.b16 %v225
      %v370 = vunpack.c.l.b16 %v226
      %v371 = vunpack.c.l.b16 %v227
      %v372 = vunpack.c.l.b16 %v228
      %v373 = vunpack.c.l.b16 %v229
      %v374 = vunpack.c.l.b16 %v230
      %v375 = vunpack.c.l.b16 %v231
      %v376 = vunpack.c.l.b16 %v232
      %v377 = vunpack.c.l.b16 %v233
      %v378 = vunpack.c.l.b16 %v234
      %v379 = vunpack.c.l.b16 %v235
      %v380 = vunpack.c.l.b16 %v236
      %v381 = vunpack.c.l.b16 %v237
      %v382 = vunpack.c.l.b16 %v238
      %v383 = vunpack.c.l.b16 %v239
      %v384 = vunpack.c.l.b16 %v240
      %v385 = vunpack.c.l.b16 %v241
      %v386 = vunpack.c.l.b16 %v242
      %v387 = vunpack.c.l.b16 %v243
      %v388 = vunpack.c.l.b16 %v244
      %v389 = vunpack.c.l.b16 %v245
      %v390 = vunpack.c.l.b16 %v246
      %v391 = vunpack.c.l.b16 %v247
      %v392 = vunpack.c.l.b16 %v248
      %v393 = vunpack.c.l.b16 %v249
      %v394 = vunpack.c.l.b16 %v250
      %v395 = vunpack.c.l.b16 %v251
      %v396 = vunpack.c.l.b16 %v252
      %v397 = vunpack.c.l.b16 %v253
      %v398 = vunpack.c.l.b16 %v254
      %v399 = vunpack.c.l.b16 %v255
      %v400 = vunpack.c.l.b16 %v256
      %v401 = vunpack.c.l.b16 %v257
      %v402 = vunpack.c.l.b16 %v258
      %v403 = vunpack.c.l.b16 %v259
      %v404 = vunpack.c.l.b16 %v260
      %v405 = vunpack.c.l.b16 %v261
      %v406 = vunpack.c.l.b16 %v262
      %v407 = vunpack.c.l.b16 %v263
      %v408 = vunpack.c.l.b16 %v264
      %v409 = vunpack.c.l.b16 %v265
      %v410 = vunpack.c.l.b16 %v266
      %v411 = vunpack.c.l.b16 %v267
      %v412 = vunpack.c.l.b16 %v268
      %v413 = vunpack.c.l.b16 %v269
      %v414 = vunpack.c.l.b16 %v270
      %v415 = vunpack.c.l.b16 %v271
      %v416 = vunpack.c.l.b16 %v272
      %v417 = vunpack.c.l.b16 %v273
      %v418 = vunpack.c.l.b16 %v274
      %v419 = vunpack.c.l.b16 %v275
      %v420 = vunpack.c.l.b16 %v276
      %v421 = vpack.c.b16 %v358, %v357
      %v422 = vpack.c.b16 %v360, %v359
      %v423 = vpack.c.b16 %v362, %v361
      %v424 = vpack.c.b16 %v364, %v363
      %v425 = vpack.c.b16 %v366, %v365
      %v426 = vpack.c.b16 %v368, %v367
      %v427 = vpack.c.b16 %v370, %v369
      %v428 = vpack.c.b16 %v372, %v371
      %v429 = vpack.c.b16 %v374, %v373
      %v430 = vpack.c.b16 %v376, %v375
      %v431 = vpack.c.b16 %v378, %v377
      %v432 = vpack.c.b16 %v380, %v379
      %v433 = vpack.c.b16 %v382, %v381
      %v434 = vpack.c.b16 %v384, %v383
      %v435 = vpack.c.b16 %v386, %v385
      %v436 = vpack.c.b16 %v388, %v387
      %v437 = vpack.c.b16 %v390, %v389
      %v438 = vpack.c.b16 %v392, %v391
      %v439 = vpack.c.b16 %v394, %v393
      %v440 = vpack.c.b16 %v396, %v395
      %v441 = vpack.c.b16 %v398, %v397
      %v442 = vpack.c.b16 %v400, %v399
      %v443 = vpack.c.b16 %v402, %v401
      %v444 = vpack.c.b16 %v404, %v403
      %v445 = vpack.c.b16 %v406, %v405
      %v446 = vpack.c.b16 %v408, %v407
      %v447 = vpack.c.b16 %v410, %v409
      %v448 = vpack.c.b16 %v412, %v411
      %v449 = vpack.c.b16 %v414, %v413
      %v450 = vpack.c.b16 %v416, %v415
      %v451 = vpack.c.b16 %v418, %v417
      %v452 = vpack.c.b16 %v420, %v419
      %v501 = vunpack.c.l.b16 %v277
      %v502 = vunpack.c.l.b16 %v278
      %v503 = vunpack.c.l.b16 %v279
      %v504 = vunpack.c.l.b16 %v280
      %v505 = vunpack.c.l.b16 %v281
      %v506 = vunpack.c.l.b16 %v282
      %v507 = vunpack.c.l.b16 %v283
      %v508 = vunpack.c.l.b16 %v284
      %v509 = vunpack.c.l.b16 %v285
      %v510 = vunpack.c.l.b16 %v286
      %v511 = vunpack.c.l.b16 %v287
      %v512 = vunpack.c.l.b16 %v288
      %v513 = vunpack.c.l.b16 %v289
      %v514 = vunpack.c.l.b16 %v290
      %v515 = vunpack.c.l.b16 %v291
      %v516 = vunpack.c.l.b16 %v292
      %v517 = vpack.c.b16 %v502, %v501
      %v518 = vpack.c.b16 %v504, %v503
      %v519 = vpack.c.b16 %v506, %v505
      %v520 = vpack.c.b16 %v508, %v507
      %v521 = vpack.c.b16 %v510, %v509
      %v522 = vpack.c.b16 %v512, %v511
      %v523 = vpack.c.b16 %v514, %v513
      %v524 = vpack.c.b16 %v516, %v515
      %533 = vmatprep.subr.bf16.mxu0 0
      %534 = vmatpush1.bf16.msra.mxu0 %v524
      %535 = vmatprep.subr.bf16.mxu0 0
      %536 = vmatpush1.bf16.msra.mxu0 %v523
      %537 = vmatprep.subr.bf16.mxu0 0
      %538 = vmatpush1.bf16.msra.mxu0 %v522
      %539 = vmatprep.subr.bf16.mxu0 0
      %540 = vmatpush1.bf16.msra.mxu0 %v521
      %541 = vmatprep.subr.bf16.mxu0 0
      %542 = vmatpush1.bf16.msra.mxu0 %v520
      %543 = vmatprep.subr.bf16.mxu0 0
      %544 = vmatpush1.bf16.msra.mxu0 %v519
      %545 = vmatprep.subr.bf16.mxu0 0
      %546 = vmatpush1.bf16.msra.mxu0 %v518
      %547 = vmatprep.subr.bf16.mxu0 0
      %548 = vmatpush1.bf16.msra.mxu0 %v517
      %549 = vmatprep.subr.bf16.mxu0 0
      %550 = vmatpush2.bf16.msra.mxu0 0
      %551 = vmatprep.subr.bf16.mxu0 0
      %552 = vmatpush2.bf16.msra.mxu0 0
      %553 = vmatprep.subr.bf16.mxu0 0
      %554 = vmatpush2.bf16.msra.mxu0 0
      %555 = vmatprep.subr.bf16.mxu0 0
      %556 = vmatpush2.bf16.msra.mxu0 0
      %557 = vmatprep.subr.bf16.mxu0 0
      %558 = vmatpush2.bf16.msra.mxu0 0
      %559 = vmatprep.subr.bf16.mxu0 0
      %560 = vmatpush2.bf16.msra.mxu0 0
      %561 = vmatprep.subr.bf16.mxu0 0
      %562 = vmatpush2.bf16.msra.mxu0 0
      %563 = vmatprep.subr.bf16.mxu0 0
      %564 = vmatpush2.bf16.msra.mxu0 0
      %565 = vmatprep.mubr.bf16.mxu0 0
      %566 = vmatmul.mubr.bf16.gmra.mxu0 %v421
      %v567 = vpop.f32.mrf.mxu0
      %v568 = vadd.f32 0.0, %v567
      %v569 = vpop.f32.mrf.mxu0
      %v570 = vpop.f32.mrf.mxu0
      %v571 = vadd.f32 0.0, %v570
      %v572 = vpop.f32.mrf.mxu0
      %573 = vmatprep.mubr.bf16.mxu0 0
      %574 = vmatmul.mubr.bf16.gmra.mxu0 %v422
      %v575 = vpop.f32.mrf.mxu0
      %v576 = vadd.f32 0.0, %v575
      %v577 = vpop.f32.mrf.mxu0
      %v578 = vpop.f32.mrf.mxu0
      %v579 = vadd.f32 0.0, %v578
      %v580 = vpop.f32.mrf.mxu0
      %581 = vmatprep.mubr.bf16.mxu0 0
      %582 = vmatmul.mubr.bf16.gmra.mxu0 %v423
      %v583 = vpop.f32.mrf.mxu0
      %v584 = vadd.f32 0.0, %v583
      %v585 = vpop.f32.mrf.mxu0
      %v586 = vpop.f32.mrf.mxu0
      %v587 = vadd.f32 0.0, %v586
      %v588 = vpop.f32.mrf.mxu0
      %589 = vmatprep.mubr.bf16.mxu0 0
      %590 = vmatmul.mubr.bf16.gmra.mxu0 %v424
      %v591 = vpop.f32.mrf.mxu0
      %v592 = vadd.f32 0.0, %v591
      %v593 = vpop.f32.mrf.mxu0
      %v594 = vpop.f32.mrf.mxu0
      %v595 = vadd.f32 0.0, %v594
      %v596 = vpop.f32.mrf.mxu0
      %597 = vmatprep.mubr.bf16.mxu0 0
      %598 = vmatmul.mubr.bf16.gmra.mxu0 %v425
      %v599 = vpop.f32.mrf.mxu0
      %v600 = vadd.f32 0.0, %v599
      %v601 = vpop.f32.mrf.mxu0
      %v602 = vpop.f32.mrf.mxu0
      %v603 = vadd.f32 0.0, %v602
      %v604 = vpop.f32.mrf.mxu0
      %605 = vmatprep.mubr.bf16.mxu0 0
      %606 = vmatmul.mubr.bf16.gmra.mxu0 %v426
      %v607 = vpop.f32.mrf.mxu0
      %v608 = vadd.f32 0.0, %v607
      %v609 = vpop.f32.mrf.mxu0
      %v610 = vpop.f32.mrf.mxu0
      %v611 = vadd.f32 0.0, %v610
      %v612 = vpop.f32.mrf.mxu0
      %613 = vmatprep.mubr.bf16.mxu0 0
      %614 = vmatmul.mubr.bf16.gmra.mxu0 %v427
      %v615 = vpop.f32.mrf.mxu0
      %v616 = vadd.f32 0.0, %v615
      %v617 = vpop.f32.mrf.mxu0
      %v618 = vpop.f32.mrf.mxu0
      %v619 = vadd.f32 0.0, %v618
      %v620 = vpop.f32.mrf.mxu0
      %621 = vmatprep.mubr.bf16.mxu0 0
      %622 = vmatmul.mubr.bf16.gmra.mxu0 %v428
      %v623 = vpop.f32.mrf.mxu0
      %v624 = vadd.f32 0.0, %v623
      %v625 = vpop.f32.mrf.mxu0
      %v626 = vpop.f32.mrf.mxu0
      %v627 = vadd.f32 0.0, %v626
      %v628 = vpop.f32.mrf.mxu0
      %629 = vmatprep.mubr.bf16.mxu0 0
      %630 = vmatmul.mubr.bf16.gmra.mxu0 %v429
      %v631 = vpop.f32.mrf.mxu0
      %v632 = vadd.f32 0.0, %v631
      %v633 = vpop.f32.mrf.mxu0
      %v634 = vpop.f32.mrf.mxu0
      %v635 = vadd.f32 0.0, %v634
      %v636 = vpop.f32.mrf.mxu0
      %637 = vmatprep.mubr.bf16.mxu0 0
      %638 = vmatmul.mubr.bf16.gmra.mxu0 %v430
      %v639 = vpop.f32.mrf.mxu0
      %v640 = vadd.f32 0.0, %v639
      %v641 = vpop.f32.mrf.mxu0
      %v642 = vpop.f32.mrf.mxu0
      %v643 = vadd.f32 0.0, %v642
      %v644 = vpop.f32.mrf.mxu0
      %645 = vmatprep.mubr.bf16.mxu0 0
      %646 = vmatmul.mubr.bf16.gmra.mxu0 %v431
      %v647 = vpop.f32.mrf.mxu0
      %v648 = vadd.f32 0.0, %v647
      %v649 = vpop.f32.mrf.mxu0
      %v650 = vpop.f32.mrf.mxu0
      %v651 = vadd.f32 0.0, %v650
      %v652 = vpop.f32.mrf.mxu0
      %653 = vmatprep.mubr.bf16.mxu0 0
      %654 = vmatmul.mubr.bf16.gmra.mxu0 %v432
      %v655 = vpop.f32.mrf.mxu0
      %v656 = vadd.f32 0.0, %v655
      %v657 = vpop.f32.mrf.mxu0
      %v658 = vpop.f32.mrf.mxu0
      %v659 = vadd.f32 0.0, %v658
      %v660 = vpop.f32.mrf.mxu0
      %661 = vmatprep.mubr.bf16.mxu0 0
      %662 = vmatmul.mubr.bf16.gmra.mxu0 %v433
      %v663 = vpop.f32.mrf.mxu0
      %v664 = vadd.f32 0.0, %v663
      %v665 = vpop.f32.mrf.mxu0
      %v666 = vpop.f32.mrf.mxu0
      %v667 = vadd.f32 0.0, %v666
      %v668 = vpop.f32.mrf.mxu0
      %669 = vmatprep.mubr.bf16.mxu0 0
      %670 = vmatmul.mubr.bf16.gmra.mxu0 %v434
      %v671 = vpop.f32.mrf.mxu0
      %v672 = vadd.f32 0.0, %v671
      %v673 = vpop.f32.mrf.mxu0
      %v674 = vpop.f32.mrf.mxu0
      %v675 = vadd.f32 0.0, %v674
      %v676 = vpop.f32.mrf.mxu0
      %677 = vmatprep.mubr.bf16.mxu0 0
      %678 = vmatmul.mubr.bf16.gmra.mxu0 %v435
      %v679 = vpop.f32.mrf.mxu0
      %v680 = vadd.f32 0.0, %v679
      %v681 = vpop.f32.mrf.mxu0
      %v682 = vpop.f32.mrf.mxu0
      %v683 = vadd.f32 0.0, %v682
      %v684 = vpop.f32.mrf.mxu0
      %685 = vmatprep.mubr.bf16.mxu0 0
      %686 = vmatmul.mubr.bf16.gmra.mxu0 %v436
      %v687 = vpop.f32.mrf.mxu0
      %v688 = vadd.f32 0.0, %v687
      %v689 = vpop.f32.mrf.mxu0
      %v690 = vpop.f32.mrf.mxu0
      %v691 = vadd.f32 0.0, %v690
      %v692 = vpop.f32.mrf.mxu0
      %693 = vmatprep.mubr.bf16.mxu0 0
      %694 = vmatmul.mubr.bf16.gmra.mxu0 %v437
      %v695 = vpop.f32.mrf.mxu0
      %v696 = vadd.f32 0.0, %v695
      %v697 = vpop.f32.mrf.mxu0
      %v698 = vpop.f32.mrf.mxu0
      %v699 = vadd.f32 0.0, %v698
      %v700 = vpop.f32.mrf.mxu0
      %701 = vmatprep.mubr.bf16.mxu0 0
      %702 = vmatmul.mubr.bf16.gmra.mxu0 %v438
      %v703 = vpop.f32.mrf.mxu0
      %v704 = vadd.f32 0.0, %v703
      %v705 = vpop.f32.mrf.mxu0
      %v706 = vpop.f32.mrf.mxu0
      %v707 = vadd.f32 0.0, %v706
      %v708 = vpop.f32.mrf.mxu0
      %709 = vmatprep.mubr.bf16.mxu0 0
      %710 = vmatmul.mubr.bf16.gmra.mxu0 %v439
      %v711 = vpop.f32.mrf.mxu0
      %v712 = vadd.f32 0.0, %v711
      %v713 = vpop.f32.mrf.mxu0
      %v714 = vpop.f32.mrf.mxu0
      %v715 = vadd.f32 0.0, %v714
      %v716 = vpop.f32.mrf.mxu0
      %717 = vmatprep.mubr.bf16.mxu0 0
      %718 = vmatmul.mubr.bf16.gmra.mxu0 %v440
      %v719 = vpop.f32.mrf.mxu0
      %v720 = vadd.f32 0.0, %v719
      %v721 = vpop.f32.mrf.mxu0
      %v722 = vpop.f32.mrf.mxu0
      %v723 = vadd.f32 0.0, %v722
      %v724 = vpop.f32.mrf.mxu0
      %725 = vmatprep.mubr.bf16.mxu0 0
      %726 = vmatmul.mubr.bf16.gmra.mxu0 %v441
      %v727 = vpop.f32.mrf.mxu0
      %v728 = vadd.f32 0.0, %v727
      %v729 = vpop.f32.mrf.mxu0
      %v730 = vpop.f32.mrf.mxu0
      %v731 = vadd.f32 0.0, %v730
      %v732 = vpop.f32.mrf.mxu0
      %733 = vmatprep.mubr.bf16.mxu0 0
      %734 = vmatmul.mubr.bf16.gmra.mxu0 %v442
      %v735 = vpop.f32.mrf.mxu0
      %v736 = vadd.f32 0.0, %v735
      %v737 = vpop.f32.mrf.mxu0
      %v738 = vpop.f32.mrf.mxu0
      %v739 = vadd.f32 0.0, %v738
      %v740 = vpop.f32.mrf.mxu0
      %741 = vmatprep.mubr.bf16.mxu0 0
      %742 = vmatmul.mubr.bf16.gmra.mxu0 %v443
      %v743 = vpop.f32.mrf.mxu0
      %v744 = vadd.f32 0.0, %v743
      %v745 = vpop.f32.mrf.mxu0
      %v746 = vpop.f32.mrf.mxu0
      %v747 = vadd.f32 0.0, %v746
      %v748 = vpop.f32.mrf.mxu0
      %749 = vmatprep.mubr.bf16.mxu0 0
      %750 = vmatmul.mubr.bf16.gmra.mxu0 %v444
      %v751 = vpop.f32.mrf.mxu0
      %v752 = vadd.f32 0.0, %v751
      %v753 = vpop.f32.mrf.mxu0
      %v754 = vpop.f32.mrf.mxu0
      %v755 = vadd.f32 0.0, %v754
      %v756 = vpop.f32.mrf.mxu0
      %757 = vmatprep.mubr.bf16.mxu0 0
      %758 = vmatmul.mubr.bf16.gmra.mxu0 %v445
      %v759 = vpop.f32.mrf.mxu0
      %v760 = vadd.f32 0.0, %v759
      %v761 = vpop.f32.mrf.mxu0
      %v762 = vpop.f32.mrf.mxu0
      %v763 = vadd.f32 0.0, %v762
      %v764 = vpop.f32.mrf.mxu0
      %765 = vmatprep.mubr.bf16.mxu0 0
      %766 = vmatmul.mubr.bf16.gmra.mxu0 %v446
      %v767 = vpop.f32.mrf.mxu0
      %v768 = vadd.f32 0.0, %v767
      %v769 = vpop.f32.mrf.mxu0
      %v770 = vpop.f32.mrf.mxu0
      %v771 = vadd.f32 0.0, %v770
      %v772 = vpop.f32.mrf.mxu0
      %773 = vmatprep.mubr.bf16.mxu0 0
      %774 = vmatmul.mubr.bf16.gmra.mxu0 %v447
      %v775 = vpop.f32.mrf.mxu0
      %v776 = vadd.f32 0.0, %v775
      %v777 = vpop.f32.mrf.mxu0
      %v778 = vpop.f32.mrf.mxu0
      %v779 = vadd.f32 0.0, %v778
      %v780 = vpop.f32.mrf.mxu0
      %781 = vmatprep.mubr.bf16.mxu0 0
      %782 = vmatmul.mubr.bf16.gmra.mxu0 %v448
      %v783 = vpop.f32.mrf.mxu0
      %v784 = vadd.f32 0.0, %v783
      %v785 = vpop.f32.mrf.mxu0
      %v786 = vpop.f32.mrf.mxu0
      %v787 = vadd.f32 0.0, %v786
      %v788 = vpop.f32.mrf.mxu0
      %789 = vmatprep.mubr.bf16.mxu0 0
      %790 = vmatmul.mubr.bf16.gmra.mxu0 %v449
      %v791 = vpop.f32.mrf.mxu0
      %v792 = vadd.f32 0.0, %v791
      %v793 = vpop.f32.mrf.mxu0
      %v794 = vpop.f32.mrf.mxu0
      %v795 = vadd.f32 0.0, %v794
      %v796 = vpop.f32.mrf.mxu0
      %797 = vmatprep.mubr.bf16.mxu0 0
      %798 = vmatmul.mubr.bf16.gmra.mxu0 %v450
      %v799 = vpop.f32.mrf.mxu0
      %v800 = vadd.f32 0.0, %v799
      %v801 = vpop.f32.mrf.mxu0
      %v802 = vpop.f32.mrf.mxu0
      %v803 = vadd.f32 0.0, %v802
      %v804 = vpop.f32.mrf.mxu0
      %805 = vmatprep.mubr.bf16.mxu0 0
      %806 = vmatmul.mubr.bf16.gmra.mxu0 %v451
      %v807 = vpop.f32.mrf.mxu0
      %v808 = vadd.f32 0.0, %v807
      %v809 = vpop.f32.mrf.mxu0
      %v810 = vpop.f32.mrf.mxu0
      %v811 = vadd.f32 0.0, %v810
      %v812 = vpop.f32.mrf.mxu0
      %813 = vmatprep.mubr.bf16.mxu0 0
      %814 = vmatmul.mubr.bf16.gmra.mxu0 %v452
      %v815 = vpop.f32.mrf.mxu0
      %v816 = vadd.f32 0.0, %v815
      %v817 = vpop.f32.mrf.mxu0
      %v818 = vpop.f32.mrf.mxu0
      %v819 = vadd.f32 0.0, %v818
      %v820 = vpop.f32.mrf.mxu0
      %821 = vdwg.mxu0
      %s822 = sld [smem:[#allocation2]]
      %vm823 = vcmp.ge.f32.partialorder %v568, 0.0
      %vm824 = vcmp.ge.f32.partialorder %v571, 0.0
      %vm825 = vcmp.ge.f32.partialorder %v576, 0.0
      %vm826 = vcmp.ge.f32.partialorder %v579, 0.0
      %vm827 = vcmp.ge.f32.partialorder %v584, 0.0
      %vm828 = vcmp.ge.f32.partialorder %v587, 0.0
      %vm829 = vcmp.ge.f32.partialorder %v592, 0.0
      %vm830 = vcmp.ge.f32.partialorder %v595, 0.0
      %vm831 = vcmp.ge.f32.partialorder %v600, 0.0
      %vm832 = vcmp.ge.f32.partialorder %v603, 0.0
      %vm833 = vcmp.ge.f32.partialorder %v608, 0.0
      %vm834 = vcmp.ge.f32.partialorder %v611, 0.0
      %vm835 = vcmp.ge.f32.partialorder %v616, 0.0
      %vm836 = vcmp.ge.f32.partialorder %v619, 0.0
      %vm837 = vcmp.ge.f32.partialorder %v624, 0.0
      %vm838 = vcmp.ge.f32.partialorder %v627, 0.0
      %vm839 = vcmp.ge.f32.partialorder %v632, 0.0
      %vm840 = vcmp.ge.f32.partialorder %v635, 0.0
      %vm841 = vcmp.ge.f32.partialorder %v640, 0.0
      %vm842 = vcmp.ge.f32.partialorder %v643, 0.0
      %vm843 = vcmp.ge.f32.partialorder %v648, 0.0
      %vm844 = vcmp.ge.f32.partialorder %v651, 0.0
      %vm845 = vcmp.ge.f32.partialorder %v656, 0.0
      %vm846 = vcmp.ge.f32.partialorder %v659, 0.0
      %vm847 = vcmp.ge.f32.partialorder %v664, 0.0
      %vm848 = vcmp.ge.f32.partialorder %v667, 0.0
      %vm849 = vcmp.ge.f32.partialorder %v672, 0.0
      %vm850 = vcmp.ge.f32.partialorder %v675, 0.0
      %vm851 = vcmp.ge.f32.partialorder %v680, 0.0
      %vm852 = vcmp.ge.f32.partialorder %v683, 0.0
      %vm853 = vcmp.ge.f32.partialorder %v688, 0.0
      %vm854 = vcmp.ge.f32.partialorder %v691, 0.0
      %vm855 = vcmp.ge.f32.partialorder %v696, 0.0
      %vm856 = vcmp.ge.f32.partialorder %v699, 0.0
      %vm857 = vcmp.ge.f32.partialorder %v704, 0.0
      %vm858 = vcmp.ge.f32.partialorder %v707, 0.0
      %vm859 = vcmp.ge.f32.partialorder %v712, 0.0
      %vm860 = vcmp.ge.f32.partialorder %v715, 0.0
      %vm861 = vcmp.ge.f32.partialorder %v720, 0.0
      %vm862 = vcmp.ge.f32.partialorder %v723, 0.0
      %vm863 = vcmp.ge.f32.partialorder %v728, 0.0
      %vm864 = vcmp.ge.f32.partialorder %v731, 0.0
      %vm865 = vcmp.ge.f32.partialorder %v736, 0.0
      %vm866 = vcmp.ge.f32.partialorder %v739, 0.0
      %vm867 = vcmp.ge.f32.partialorder %v744, 0.0
      %vm868 = vcmp.ge.f32.partialorder %v747, 0.0
      %vm869 = vcmp.ge.f32.partialorder %v752, 0.0
      %vm870 = vcmp.ge.f32.partialorder %v755, 0.0
      %vm871 = vcmp.ge.f32.partialorder %v760, 0.0
      %vm872 = vcmp.ge.f32.partialorder %v763, 0.0
      %vm873 = vcmp.ge.f32.partialorder %v768, 0.0
      %vm874 = vcmp.ge.f32.partialorder %v771, 0.0
      %vm875 = vcmp.ge.f32.partialorder %v776, 0.0
      %vm876 = vcmp.ge.f32.partialorder %v779, 0.0
      %vm877 = vcmp.ge.f32.partialorder %v784, 0.0
      %vm878 = vcmp.ge.f32.partialorder %v787, 0.0
      %vm879 = vcmp.ge.f32.partialorder %v792, 0.0
      %vm880 = vcmp.ge.f32.partialorder %v795, 0.0
      %vm881 = vcmp.ge.f32.partialorder %v800, 0.0
      %vm882 = vcmp.ge.f32.partialorder %v803, 0.0
      %vm883 = vcmp.ge.f32.partialorder %v808, 0.0
      %vm884 = vcmp.ge.f32.partialorder %v811, 0.0
      %vm885 = vcmp.ge.f32.partialorder %v816, 0.0
      %vm886 = vcmp.ge.f32.partialorder %v819, 0.0
      %v887 = vstv %s822
      %v888 = vmul.f32 %v887, %v568
      %v889 = vmul.f32 %v887, %v571
      %v890 = vmul.f32 %v887, %v576
      %v891 = vmul.f32 %v887, %v579
      %v892 = vmul.f32 %v887, %v584
      %v893 = vmul.f32 %v887, %v587
      %v894 = vmul.f32 %v887, %v592
      %v895 = vmul.f32 %v887, %v595
      %v896 = vmul.f32 %v887, %v600
      %v897 = vmul.f32 %v887, %v603
      %v898 = vmul.f32 %v887, %v608
      %v899 = vmul.f32 %v887, %v611
      %v900 = vmul.f32 %v887, %v616
      %v901 = vmul.f32 %v887, %v619
      %v902 = vmul.f32 %v887, %v624
      %v903 = vmul.f32 %v887, %v627
      %v904 = vmul.f32 %v887, %v632
      %v905 = vmul.f32 %v887, %v635
      %v906 = vmul.f32 %v887, %v640
      %v907 = vmul.f32 %v887, %v643
      %v908 = vmul.f32 %v887, %v648
      %v909 = vmul.f32 %v887, %v651
      %v910 = vmul.f32 %v887, %v656
      %v911 = vmul.f32 %v887, %v659
      %v912 = vmul.f32 %v887, %v664
      %v913 = vmul.f32 %v887, %v667
      %v914 = vmul.f32 %v887, %v672
      %v915 = vmul.f32 %v887, %v675
      %v916 = vmul.f32 %v887, %v680
      %v917 = vmul.f32 %v887, %v683
      %v918 = vmul.f32 %v887, %v688
      %v919 = vmul.f32 %v887, %v691
      %v920 = vmul.f32 %v887, %v696
      %v921 = vmul.f32 %v887, %v699
      %v922 = vmul.f32 %v887, %v704
      %v923 = vmul.f32 %v887, %v707
      %v924 = vmul.f32 %v887, %v712
      %v925 = vmul.f32 %v887, %v715
      %v926 = vmul.f32 %v887, %v720
      %v927 = vmul.f32 %v887, %v723
      %v928 = vmul.f32 %v887, %v728
      %v929 = vmul.f32 %v887, %v731
      %v930 = vmul.f32 %v887, %v736
      %v931 = vmul.f32 %v887, %v739
      %v932 = vmul.f32 %v887, %v744
      %v933 = vmul.f32 %v887, %v747
      %v934 = vmul.f32 %v887, %v752
      %v935 = vmul.f32 %v887, %v755
      %v936 = vmul.f32 %v887, %v760
      %v937 = vmul.f32 %v887, %v763
      %v938 = vmul.f32 %v887, %v768
      %v939 = vmul.f32 %v887, %v771
      %v940 = vmul.f32 %v887, %v776
      %v941 = vmul.f32 %v887, %v779
      %v942 = vmul.f32 %v887, %v784
      %v943 = vmul.f32 %v887, %v787
      %v944 = vmul.f32 %v887, %v792
      %v945 = vmul.f32 %v887, %v795
      %v946 = vmul.f32 %v887, %v800
      %v947 = vmul.f32 %v887, %v803
      %v948 = vmul.f32 %v887, %v808
      %v949 = vmul.f32 %v887, %v811
      %v950 = vmul.f32 %v887, %v816
      %v951 = vmul.f32 %v887, %v819
      %v952 = vsel %vm823, %v568, %v888
      %v953 = vsel %vm824, %v571, %v889
      %v954 = vsel %vm825, %v576, %v890
      %v955 = vsel %vm826, %v579, %v891
      %v956 = vsel %vm827, %v584, %v892
      %v957 = vsel %vm828, %v587, %v893
      %v958 = vsel %vm829, %v592, %v894
      %v959 = vsel %vm830, %v595, %v895
      %v960 = vsel %vm831, %v600, %v896
      %v961 = vsel %vm832, %v603, %v897
      %v962 = vsel %vm833, %v608, %v898
      %v963 = vsel %vm834, %v611, %v899
      %v964 = vsel %vm835, %v616, %v900
      %v965 = vsel %vm836, %v619, %v901
      %v966 = vsel %vm837, %v624, %v902
      %v967 = vsel %vm838, %v627, %v903
      %v968 = vsel %vm839, %v632, %v904
      %v969 = vsel %vm840, %v635, %v905
      %v970 = vsel %vm841, %v640, %v906
      %v971 = vsel %vm842, %v643, %v907
      %v972 = vsel %vm843, %v648, %v908
      %v973 = vsel %vm844, %v651, %v909
      %v974 = vsel %vm845, %v656, %v910
      %v975 = vsel %vm846, %v659, %v911
      %v976 = vsel %vm847, %v664, %v912
      %v977 = vsel %vm848, %v667, %v913
      %v978 = vsel %vm849, %v672, %v914
      %v979 = vsel %vm850, %v675, %v915
      %v980 = vsel %vm851, %v680, %v916
      %v981 = vsel %vm852, %v683, %v917
      %v982 = vsel %vm853, %v688, %v918
      %v983 = vsel %vm854, %v691, %v919
      %v984 = vsel %vm855, %v696, %v920
      %v985 = vsel %vm856, %v699, %v921
      %v986 = vsel %vm857, %v704, %v922
      %v987 = vsel %vm858, %v707, %v923
      %v988 = vsel %vm859, %v712, %v924
      %v989 = vsel %vm860, %v715, %v925
      %v990 = vsel %vm861, %v720, %v926
      %v991 = vsel %vm862, %v723, %v927
      %v992 = vsel %vm863, %v728, %v928
      %v993 = vsel %vm864, %v731, %v929
      %v994 = vsel %vm865, %v736, %v930
      %v995 = vsel %vm866, %v739, %v931
      %v996 = vsel %vm867, %v744, %v932
      %v997 = vsel %vm868, %v747, %v933
      %v998 = vsel %vm869, %v752, %v934
      %v999 = vsel %vm870, %v755, %v935
      %v1000 = vsel %vm871, %v760, %v936
      %v1001 = vsel %vm872, %v763, %v937
      %v1002 = vsel %vm873, %v768, %v938
      %v1003 = vsel %vm874, %v771, %v939
      %v1004 = vsel %vm875, %v776, %v940
      %v1005 = vsel %vm876, %v779, %v941
      %v1006 = vsel %vm877, %v784, %v942
      %v1007 = vsel %vm878, %v787, %v943
      %v1008 = vsel %vm879, %v792, %v944
      %v1009 = vsel %vm880, %v795, %v945
      %v1010 = vsel %vm881, %v800, %v946
      %v1011 = vsel %vm882, %v803, %v947
      %v1012 = vsel %vm883, %v808, %v948
      %v1013 = vsel %vm884, %v811, %v949
      %v1014 = vsel %vm885, %v816, %v950
      %v1015 = vsel %vm886, %v819, %v951
      %1016 = vst [vmem:[%s210] sm:$0xff] %v952
      %1017 = vst [vmem:[%s210 + $0x8] sm:$0xff] %v953
      %1018 = vst [vmem:[%s210 + $0x10] sm:$0xff] %v954
      %1019 = vst [vmem:[%s210 + $0x18] sm:$0xff] %v955
      %1020 = vst [vmem:[%s210 + $0x20] sm:$0xff] %v956
      %1021 = vst [vmem:[%s210 + $0x28] sm:$0xff] %v957
      %1022 = vst [vmem:[%s210 + $0x30] sm:$0xff] %v958
      %1023 = vst [vmem:[%s210 + $0x38] sm:$0xff] %v959
      %1024 = vst [vmem:[%s210 + $0x40] sm:$0xff] %v960
      %1025 = vst [vmem:[%s210 + $0x48] sm:$0xff] %v961
      %1026 = vst [vmem:[%s210 + $0x50] sm:$0xff] %v962
      %1027 = vst [vmem:[%s210 + $0x58] sm:$0xff] %v963
      %1028 = vst [vmem:[%s210 + $0x60] sm:$0xff] %v964
      %1029 = vst [vmem:[%s210 + $0x68] sm:$0xff] %v965
      %1030 = vst [vmem:[%s210 + $0x70] sm:$0xff] %v966
      %1031 = vst [vmem:[%s210 + $0x78] sm:$0xff] %v967
      %1032 = vst [vmem:[%s210 + $0x80] sm:$0xff] %v968
      %1033 = vst [vmem:[%s210 + $0x88] sm:$0xff] %v969
      %1034 = vst [vmem:[%s210 + $0x90] sm:$0xff] %v970
      %1035 = vst [vmem:[%s210 + $0x98] sm:$0xff] %v971
      %1036 = vst [vmem:[%s210 + $0xa0] sm:$0xff] %v972
      %1037 = vst [vmem:[%s210 + $0xa8] sm:$0xff] %v973
      %1038 = vst [vmem:[%s210 + $0xb0] sm:$0xff] %v974
      %1039 = vst [vmem:[%s210 + $0xb8] sm:$0xff] %v975
      %1040 = vst [vmem:[%s210 + $0xc0] sm:$0xff] %v976
      %1041 = vst [vmem:[%s210 + $0xc8] sm:$0xff] %v977
      %1042 = vst [vmem:[%s210 + $0xd0] sm:$0xff] %v978
      %1043 = vst [vmem:[%s210 + $0xd8] sm:$0xff] %v979
      %1044 = vst [vmem:[%s210 + $0xe0] sm:$0xff] %v980
      %1045 = vst [vmem:[%s210 + $0xe8] sm:$0xff] %v981
      %1046 = vst [vmem:[%s210 + $0xf0] sm:$0xff] %v982
      %1047 = vst [vmem:[%s210 + $0xf8] sm:$0xff] %v983
      %1048 = vst [vmem:[%s210 + $0x100] sm:$0xff] %v984
      %1049 = vst [vmem:[%s210 + $0x108] sm:$0xff] %v985
      %1050 = vst [vmem:[%s210 + $0x110] sm:$0xff] %v986
      %1051 = vst [vmem:[%s210 + $0x118] sm:$0xff] %v987
      %1052 = vst [vmem:[%s210 + $0x120] sm:$0xff] %v988
      %1053 = vst [vmem:[%s210 + $0x128] sm:$0xff] %v989
      %1054 = vst [vmem:[%s210 + $0x130] sm:$0xff] %v990
      %1055 = vst [vmem:[%s210 + $0x138] sm:$0xff] %v991
      %1056 = vst [vmem:[%s210 + $0x140] sm:$0xff] %v992
      %1057 = vst [vmem:[%s210 + $0x148] sm:$0xff] %v993
      %1058 = vst [vmem:[%s210 + $0x150] sm:$0xff] %v994
      %1059 = vst [vmem:[%s210 + $0x158] sm:$0xff] %v995
      %1060 = vst [vmem:[%s210 + $0x160] sm:$0xff] %v996
      %1061 = vst [vmem:[%s210 + $0x168] sm:$0xff] %v997
      %1062 = vst [vmem:[%s210 + $0x170] sm:$0xff] %v998
      %1063 = vst [vmem:[%s210 + $0x178] sm:$0xff] %v999
      %1064 = vst [vmem:[%s210 + $0x180] sm:$0xff] %v1000
      %1065 = vst [vmem:[%s210 + $0x188] sm:$0xff] %v1001
      %1066 = vst [vmem:[%s210 + $0x190] sm:$0xff] %v1002
      %1067 = vst [vmem:[%s210 + $0x198] sm:$0xff] %v1003
      %1068 = vst [vmem:[%s210 + $0x1a0] sm:$0xff] %v1004
      %1069 = vst [vmem:[%s210 + $0x1a8] sm:$0xff] %v1005
      %1070 = vst [vmem:[%s210 + $0x1b0] sm:$0xff] %v1006
      %1071 = vst [vmem:[%s210 + $0x1b8] sm:$0xff] %v1007
      %1072 = vst [vmem:[%s210 + $0x1c0] sm:$0xff] %v1008
      %1073 = vst [vmem:[%s210 + $0x1c8] sm:$0xff] %v1009
      %1074 = vst [vmem:[%s210 + $0x1d0] sm:$0xff] %v1010
      %1075 = vst [vmem:[%s210 + $0x1d8] sm:$0xff] %v1011
      %1076 = vst [vmem:[%s210 + $0x1e0] sm:$0xff] %v1012
      %1077 = vst [vmem:[%s210 + $0x1e8] sm:$0xff] %v1013
      %1078 = vst [vmem:[%s210 + $0x1f0] sm:$0xff] %v1014
      %1079 = vst [vmem:[%s210 + $0x1f8] sm:$0xff] %v1015
      %s1080 = smul.u32 64, %s19
      %p1081 = scmp.lt.s32.totalorder %s1080, 255
      %s1082 = scalar_select %p1081, %s1080, 255
      %p1083 = scmp.lt.s32.totalorder %s20, 0
      %s1084 = scalar_select %p1083, %s20, 0
      %s1085 = sadd.s32 %s1084, %s1082
      %s1086 = smul.addr %s1085, 8
      %s1087 = scalar_lea.vmem %s3, %s1086
      // Predicated region
      $region33: #{discriminator_forward.5} parent=31 // pred_check
        %p1088 = pneg %p120
      $region34: #{discriminator_forward.5} parent=31 // pred_check_branch
        %1090 = sbr.rel (%p1088) target = $region36
      $region35: #{discriminator_forward.5} parent=31 // pred_region
        %s1091 = smul.u32 64, %s19
      $region36: #{discriminator_forward.5} parent=31 // pred_fallthru
        _
    $region32: #{discriminator_forward.5} parent=5 // pred_fallthru
      _
    %p1092 = scmp.le.s32.totalorder 2, %s10
    // Predicated region
    $region37: #{discriminator_forward.5} parent=5 // pred_check
      %p1093 = pneg %p1092
    $region38: #{discriminator_forward.5} parent=5 // pred_check_branch
      %1095 = sbr.rel (%p1093) target = $region40
    $region39: #{discriminator_forward.5} parent=5 // pred_region
      %s1096 = ssub.s32 %s10, 2
      // Predicated region
      $region41: #{discriminator_forward.5} parent=39 // pred_check
        %p1097 = pneg %p126
      $region42: #{discriminator_forward.5} parent=39 // pred_check_branch
        %1099 = sbr.rel (%p1097) target = $region44
      $region43: #{discriminator_forward.5} parent=39 // pred_region
        %s1100 = smul.u32 64, %s21
        %p1101 = scmp.lt.s32.totalorder %s1100, 255
        %s1102 = scalar_select %p1101, %s1100, 255
        %p1103 = scmp.lt.s32.totalorder %s22, 0
        %s1104 = scalar_select %p1103, %s22, 0
        %s1105 = sadd.s32 %s1104, %s1102
        %s1106 = smul.addr %s1105, 8
        %s1107 = scalar_lea.vmem %s3, %s1106
      $region44: #{discriminator_forward.5} parent=39 // pred_fallthru
        _
    $region40: #{discriminator_forward.5} parent=5 // pred_fallthru
      _
  $region6: #{discriminator_forward.5} parent=0 // loop_footer
    %s14 = sadd.s32 1, %s10
  $region7: #{discriminator_forward.5} parent=0 // loop_footer_branch
    %9 = sbr.rel target = $region3
  $region8: #{discriminator_forward.5} parent=0 // loop_exit
    _

// kernel: discriminator_forward.6
$region0: #{discriminator_forward.6}
  #allocation0 [shape = 'u32[]', space=smem, size = 0x4, offset = 0x4, fixed_abs, tag = 'smem constant byte address 0x4 - core index']
  #allocation1 [shape = 'u32[144,128]{1,0:T(1,128)}', space=vmem, size = 0x12000, scoped, tag = 'internal scratch']
  #allocation2 [shape = 'f32[1]{0:T(128)S(6)}', space=smem, size = 0x200, scoped, tag = 'scoped memory for discriminator_forward.6']
  %s0 = inlined_call_operand.<no memory space> [shape: f32[1], index: 0, kind: input, shape index: {}]
  %s1 = inlined_call_operand.vmem [shape: bf16[512,128], index: 1, kind: input, shape index: {}]
  %s2 = inlined_call_operand.vmem [shape: bf16[128,128], index: 2, kind: input, shape index: {}]
  %s3 = inlined_call_operand.vmem [shape: f32[512,128], index: 3, kind: output, shape index: {}]
  %s4 = sld [smem:[#allocation0]]
  $region22: #{discriminator_forward.6} parent=0
    _
  %s6 = ssub.s32 1, %s4
  %s7 = scalar_select 0, %s6, %s4
  %8 = sst [smem:[#allocation2]] %s0
  // Predicated region
  $region2: #{discriminator_forward.6} parent=0 // pred_check
    _
  $region3: #{discriminator_forward.6} parent=0 // pred_check_branch
    %10 = sbr.rel (0) target = $region5
  $region4: #{discriminator_forward.6} parent=0 // pred_region
    _
  $region5: #{discriminator_forward.6} parent=0 // pred_fallthru
    _
  // Predicated region
  $region6: #{discriminator_forward.6} parent=0 // pred_check
    _
  $region7: #{discriminator_forward.6} parent=0 // pred_check_branch
    %12 = sbr.rel (0) target = $region9
  $region8: #{discriminator_forward.6} parent=0 // pred_region
    _
  $region9: #{discriminator_forward.6} parent=0 // pred_fallthru
    _
  // Predicated region
  $region10: #{discriminator_forward.6} parent=0 // pred_check
    _
  $region11: #{discriminator_forward.6} parent=0 // pred_check_branch
    %14 = sbr.rel (0) target = $region13
  $region12: #{discriminator_forward.6} parent=0 // pred_region
    _
  $region13: #{discriminator_forward.6} parent=0 // pred_fallthru
    _
  %v16 = vld [vmem:[%s1] sm:$0xf]
  %v17 = vld [vmem:[%s1 + $0x4] sm:$0xf]
  %v18 = vld [vmem:[%s1 + $0x8] sm:$0xf]
  %v19 = vld [vmem:[%s1 + $0xc] sm:$0xf]
  %v20 = vld [vmem:[%s1 + $0x10] sm:$0xf]
  %v21 = vld [vmem:[%s1 + $0x14] sm:$0xf]
  %v22 = vld [vmem:[%s1 + $0x18] sm:$0xf]
  %v23 = vld [vmem:[%s1 + $0x1c] sm:$0xf]
  %v24 = vld [vmem:[%s1 + $0x20] sm:$0xf]
  %v25 = vld [vmem:[%s1 + $0x24] sm:$0xf]
  %v26 = vld [vmem:[%s1 + $0x28] sm:$0xf]
  %v27 = vld [vmem:[%s1 + $0x2c] sm:$0xf]
  %v28 = vld [vmem:[%s1 + $0x30] sm:$0xf]
  %v29 = vld [vmem:[%s1 + $0x34] sm:$0xf]
  %v30 = vld [vmem:[%s1 + $0x38] sm:$0xf]
  %v31 = vld [vmem:[%s1 + $0x3c] sm:$0xf]
  %v32 = vld [vmem:[%s1 + $0x40] sm:$0xf]
  %v33 = vld [vmem:[%s1 + $0x44] sm:$0xf]
  %v34 = vld [vmem:[%s1 + $0x48] sm:$0xf]
  %v35 = vld [vmem:[%s1 + $0x4c] sm:$0xf]
  %v36 = vld [vmem:[%s1 + $0x50] sm:$0xf]
  %v37 = vld [vmem:[%s1 + $0x54] sm:$0xf]
  %v38 = vld [vmem:[%s1 + $0x58] sm:$0xf]
  %v39 = vld [vmem:[%s1 + $0x5c] sm:$0xf]
  %v40 = vld [vmem:[%s1 + $0x60] sm:$0xf]
  %v41 = vld [vmem:[%s1 + $0x64] sm:$0xf]
  %v42 = vld [vmem:[%s1 + $0x68] sm:$0xf]
  %v43 = vld [vmem:[%s1 + $0x6c] sm:$0xf]
  %v44 = vld [vmem:[%s1 + $0x70] sm:$0xf]
  %v45 = vld [vmem:[%s1 + $0x74] sm:$0xf]
  %v46 = vld [vmem:[%s1 + $0x78] sm:$0xf]
  %v47 = vld [vmem:[%s1 + $0x7c] sm:$0xf]
  %v48 = vld [vmem:[%s1 + $0x80] sm:$0xf]
  %v49 = vld [vmem:[%s1 + $0x84] sm:$0xf]
  %v50 = vld [vmem:[%s1 + $0x88] sm:$0xf]
  %v51 = vld [vmem:[%s1 + $0x8c] sm:$0xf]
  %v52 = vld [vmem:[%s1 + $0x90] sm:$0xf]
  %v53 = vld [vmem:[%s1 + $0x94] sm:$0xf]
  %v54 = vld [vmem:[%s1 + $0x98] sm:$0xf]
  %v55 = vld [vmem:[%s1 + $0x9c] sm:$0xf]
  %v56 = vld [vmem:[%s1 + $0xa0] sm:$0xf]
  %v57 = vld [vmem:[%s1 + $0xa4] sm:$0xf]
  %v58 = vld [vmem:[%s1 + $0xa8] sm:$0xf]
  %v59 = vld [vmem:[%s1 + $0xac] sm:$0xf]
  %v60 = vld [vmem:[%s1 + $0xb0] sm:$0xf]
  %v61 = vld [vmem:[%s1 + $0xb4] sm:$0xf]
  %v62 = vld [vmem:[%s1 + $0xb8] sm:$0xf]
  %v63 = vld [vmem:[%s1 + $0xbc] sm:$0xf]
  %v64 = vld [vmem:[%s1 + $0xc0] sm:$0xf]
  %v65 = vld [vmem:[%s1 + $0xc4] sm:$0xf]
  %v66 = vld [vmem:[%s1 + $0xc8] sm:$0xf]
  %v67 = vld [vmem:[%s1 + $0xcc] sm:$0xf]
  %v68 = vld [vmem:[%s1 + $0xd0] sm:$0xf]
  %v69 = vld [vmem:[%s1 + $0xd4] sm:$0xf]
  %v70 = vld [vmem:[%s1 + $0xd8] sm:$0xf]
  %v71 = vld [vmem:[%s1 + $0xdc] sm:$0xf]
  %v72 = vld [vmem:[%s1 + $0xe0] sm:$0xf]
  %v73 = vld [vmem:[%s1 + $0xe4] sm:$0xf]
  %v74 = vld [vmem:[%s1 + $0xe8] sm:$0xf]
  %v75 = vld [vmem:[%s1 + $0xec] sm:$0xf]
  %v76 = vld [vmem:[%s1 + $0xf0] sm:$0xf]
  %v77 = vld [vmem:[%s1 + $0xf4] sm:$0xf]
  %v78 = vld [vmem:[%s1 + $0xf8] sm:$0xf]
  %v79 = vld [vmem:[%s1 + $0xfc] sm:$0xf]
  %v80 = vld [vmem:[%s2] sm:$0xf]
  %v81 = vld [vmem:[%s2 + $0x4] sm:$0xf]
  %v82 = vld [vmem:[%s2 + $0x8] sm:$0xf]
  %v83 = vld [vmem:[%s2 + $0xc] sm:$0xf]
  %v84 = vld [vmem:[%s2 + $0x10] sm:$0xf]
  %v85 = vld [vmem:[%s2 + $0x14] sm:$0xf]
  %v86 = vld [vmem:[%s2 + $0x18] sm:$0xf]
  %v87 = vld [vmem:[%s2 + $0x1c] sm:$0xf]
  %v88 = vld [vmem:[%s2 + $0x20] sm:$0xf]
  %v89 = vld [vmem:[%s2 + $0x24] sm:$0xf]
  %v90 = vld [vmem:[%s2 + $0x28] sm:$0xf]
  %v91 = vld [vmem:[%s2 + $0x2c] sm:$0xf]
  %v92 = vld [vmem:[%s2 + $0x30] sm:$0xf]
  %v93 = vld [vmem:[%s2 + $0x34] sm:$0xf]
  %v94 = vld [vmem:[%s2 + $0x38] sm:$0xf]
  %v95 = vld [vmem:[%s2 + $0x3c] sm:$0xf]
  %v160 = vunpack.c.l.b16 %v16
  %v161 = vunpack.c.l.b16 %v17
  %v162 = vunpack.c.l.b16 %v18
  %v163 = vunpack.c.l.b16 %v19
  %v164 = vunpack.c.l.b16 %v20
  %v165 = vunpack.c.l.b16 %v21
  %v166 = vunpack.c.l.b16 %v22
  %v167 = vunpack.c.l.b16 %v23
  %v168 = vunpack.c.l.b16 %v24
  %v169 = vunpack.c.l.b16 %v25
  %v170 = vunpack.c.l.b16 %v26
  %v171 = vunpack.c.l.b16 %v27
  %v172 = vunpack.c.l.b16 %v28
  %v173 = vunpack.c.l.b16 %v29
  %v174 = vunpack.c.l.b16 %v30
  %v175 = vunpack.c.l.b16 %v31
  %v176 = vunpack.c.l.b16 %v32
  %v177 = vunpack.c.l.b16 %v33
  %v178 = vunpack.c.l.b16 %v34
  %v179 = vunpack.c.l.b16 %v35
  %v180 = vunpack.c.l.b16 %v36
  %v181 = vunpack.c.l.b16 %v37
  %v182 = vunpack.c.l.b16 %v38
  %v183 = vunpack.c.l.b16 %v39
  %v184 = vunpack.c.l.b16 %v40
  %v185 = vunpack.c.l.b16 %v41
  %v186 = vunpack.c.l.b16 %v42
  %v187 = vunpack.c.l.b16 %v43
  %v188 = vunpack.c.l.b16 %v44
  %v189 = vunpack.c.l.b16 %v45
  %v190 = vunpack.c.l.b16 %v46
  %v191 = vunpack.c.l.b16 %v47
  %v192 = vunpack.c.l.b16 %v48
  %v193 = vunpack.c.l.b16 %v49
  %v194 = vunpack.c.l.b16 %v50
  %v195 = vunpack.c.l.b16 %v51
  %v196 = vunpack.c.l.b16 %v52
  %v197 = vunpack.c.l.b16 %v53
  %v198 = vunpack.c.l.b16 %v54
  %v199 = vunpack.c.l.b16 %v55
  %v200 = vunpack.c.l.b16 %v56
  %v201 = vunpack.c.l.b16 %v57
  %v202 = vunpack.c.l.b16 %v58
  %v203 = vunpack.c.l.b16 %v59
  %v204 = vunpack.c.l.b16 %v60
  %v205 = vunpack.c.l.b16 %v61
  %v206 = vunpack.c.l.b16 %v62
  %v207 = vunpack.c.l.b16 %v63
  %v208 = vunpack.c.l.b16 %v64
  %v209 = vunpack.c.l.b16 %v65
  %v210 = vunpack.c.l.b16 %v66
  %v211 = vunpack.c.l.b16 %v67
  %v212 = vunpack.c.l.b16 %v68
  %v213 = vunpack.c.l.b16 %v69
  %v214 = vunpack.c.l.b16 %v70
  %v215 = vunpack.c.l.b16 %v71
  %v216 = vunpack.c.l.b16 %v72
  %v217 = vunpack.c.l.b16 %v73
  %v218 = vunpack.c.l.b16 %v74
  %v219 = vunpack.c.l.b16 %v75
  %v220 = vunpack.c.l.b16 %v76
  %v221 = vunpack.c.l.b16 %v77
  %v222 = vunpack.c.l.b16 %v78
  %v223 = vunpack.c.l.b16 %v79
  %v224 = vpack.c.b16 %v161, %v160
  %v225 = vpack.c.b16 %v163, %v162
  %v226 = vpack.c.b16 %v165, %v164
  %v227 = vpack.c.b16 %v167, %v166
  %v228 = vpack.c.b16 %v169, %v168
  %v229 = vpack.c.b16 %v171, %v170
  %v230 = vpack.c.b16 %v173, %v172
  %v231 = vpack.c.b16 %v175, %v174
  %v232 = vpack.c.b16 %v177, %v176
  %v233 = vpack.c.b16 %v179, %v178
  %v234 = vpack.c.b16 %v181, %v180
  %v235 = vpack.c.b16 %v183, %v182
  %v236 = vpack.c.b16 %v185, %v184
  %v237 = vpack.c.b16 %v187, %v186
  %v238 = vpack.c.b16 %v189, %v188
  %v239 = vpack.c.b16 %v191, %v190
  %v240 = vpack.c.b16 %v193, %v192
  %v241 = vpack.c.b16 %v195, %v194
  %v242 = vpack.c.b16 %v197, %v196
  %v243 = vpack.c.b16 %v199, %v198
  %v244 = vpack.c.b16 %v201, %v200
  %v245 = vpack.c.b16 %v203, %v202
  %v246 = vpack.c.b16 %v205, %v204
  %v247 = vpack.c.b16 %v207, %v206
  %v248 = vpack.c.b16 %v209, %v208
  %v249 = vpack.c.b16 %v211, %v210
  %v250 = vpack.c.b16 %v213, %v212
  %v251 = vpack.c.b16 %v215, %v214
  %v252 = vpack.c.b16 %v217, %v216
  %v253 = vpack.c.b16 %v219, %v218
  %v254 = vpack.c.b16 %v221, %v220
  %v255 = vpack.c.b16 %v223, %v222
  %v304 = vunpack.c.l.b16 %v80
  %v305 = vunpack.c.l.b16 %v81
  %v306 = vunpack.c.l.b16 %v82
  %v307 = vunpack.c.l.b16 %v83
  %v308 = vunpack.c.l.b16 %v84
  %v309 = vunpack.c.l.b16 %v85
  %v310 = vunpack.c.l.b16 %v86
  %v311 = vunpack.c.l.b16 %v87
  %v312 = vunpack.c.l.b16 %v88
  %v313 = vunpack.c.l.b16 %v89
  %v314 = vunpack.c.l.b16 %v90
  %v315 = vunpack.c.l.b16 %v91
  %v316 = vunpack.c.l.b16 %v92
  %v317 = vunpack.c.l.b16 %v93
  %v318 = vunpack.c.l.b16 %v94
  %v319 = vunpack.c.l.b16 %v95
  %v320 = vpack.c.b16 %v305, %v304
  %v321 = vpack.c.b16 %v307, %v306
  %v322 = vpack.c.b16 %v309, %v308
  %v323 = vpack.c.b16 %v311, %v310
  %v324 = vpack.c.b16 %v313, %v312
  %v325 = vpack.c.b16 %v315, %v314
  %v326 = vpack.c.b16 %v317, %v316
  %v327 = vpack.c.b16 %v319, %v318
  %336 = vmatprep.subr.bf16.mxu0 0
  %337 = vmatpush1.bf16.msra.mxu0 %v327
  %338 = vmatprep.subr.bf16.mxu0 0
  %339 = vmatpush1.bf16.msra.mxu0 %v326
  %340 = vmatprep.subr.bf16.mxu0 0
  %341 = vmatpush1.bf16.msra.mxu0 %v325
  %342 = vmatprep.subr.bf16.mxu0 0
  %343 = vmatpush1.bf16.msra.mxu0 %v324
  %344 = vmatprep.subr.bf16.mxu0 0
  %345 = vmatpush1.bf16.msra.mxu0 %v323
  %346 = vmatprep.subr.bf16.mxu0 0
  %347 = vmatpush1.bf16.msra.mxu0 %v322
  %348 = vmatprep.subr.bf16.mxu0 0
  %349 = vmatpush1.bf16.msra.mxu0 %v321
  %350 = vmatprep.subr.bf16.mxu0 0
  %351 = vmatpush1.bf16.msra.mxu0 %v320
  %352 = vmatprep.subr.bf16.mxu0 0
  %353 = vmatpush2.bf16.msra.mxu0 0
  %354 = vmatprep.subr.bf16.mxu0 0
  %355 = vmatpush2.bf16.msra.mxu0 0
  %356 = vmatprep.subr.bf16.mxu0 0
  %357 = vmatpush2.bf16.msra.mxu0 0
  %358 = vmatprep.subr.bf16.mxu0 0
  %359 = vmatpush2.bf16.msra.mxu0 0
  %360 = vmatprep.subr.bf16.mxu0 0
  %361 = vmatpush2.bf16.msra.mxu0 0
  %362 = vmatprep.subr.bf16.mxu0 0
  %363 = vmatpush2.bf16.msra.mxu0 0
  %364 = vmatprep.subr.bf16.mxu0 0
  %365 = vmatpush2.bf16.msra.mxu0 0
  %366 = vmatprep.subr.bf16.mxu0 0
  %367 = vmatpush2.bf16.msra.mxu0 0
  %368 = vmatprep.mubr.bf16.mxu0 0
  %369 = vmatmul.mubr.bf16.gmra.mxu0 %v224
  %v370 = vpop.f32.mrf.mxu0
  %v371 = vadd.f32 0.0, %v370
  %v372 = vpop.f32.mrf.mxu0
  %v373 = vpop.f32.mrf.mxu0
  %v374 = vadd.f32 0.0, %v373
  %v375 = vpop.f32.mrf.mxu0
  %376 = vmatprep.mubr.bf16.mxu0 0
  %377 = vmatmul.mubr.bf16.gmra.mxu0 %v225
  %v378 = vpop.f32.mrf.mxu0
  %v379 = vadd.f32 0.0, %v378
  %v380 = vpop.f32.mrf.mxu0
  %v381 = vpop.f32.mrf.mxu0
  %v382 = vadd.f32 0.0, %v381
  %v383 = vpop.f32.mrf.mxu0
  %384 = vmatprep.mubr.bf16.mxu0 0
  %385 = vmatmul.mubr.bf16.gmra.mxu0 %v226
  %v386 = vpop.f32.mrf.mxu0
  %v387 = vadd.f32 0.0, %v386
  %v388 = vpop.f32.mrf.mxu0
  %v389 = vpop.f32.mrf.mxu0
  %v390 = vadd.f32 0.0, %v389
  %v391 = vpop.f32.mrf.mxu0
  %392 = vmatprep.mubr.bf16.mxu0 0
  %393 = vmatmul.mubr.bf16.gmra.mxu0 %v227
  %v394 = vpop.f32.mrf.mxu0
  %v395 = vadd.f32 0.0, %v394
  %v396 = vpop.f32.mrf.mxu0
  %v397 = vpop.f32.mrf.mxu0
  %v398 = vadd.f32 0.0, %v397
  %v399 = vpop.f32.mrf.mxu0
  %400 = vmatprep.mubr.bf16.mxu0 0
  %401 = vmatmul.mubr.bf16.gmra.mxu0 %v228
  %v402 = vpop.f32.mrf.mxu0
  %v403 = vadd.f32 0.0, %v402
  %v404 = vpop.f32.mrf.mxu0
  %v405 = vpop.f32.mrf.mxu0
  %v406 = vadd.f32 0.0, %v405
  %v407 = vpop.f32.mrf.mxu0
  %408 = vmatprep.mubr.bf16.mxu0 0
  %409 = vmatmul.mubr.bf16.gmra.mxu0 %v229
  %v410 = vpop.f32.mrf.mxu0
  %v411 = vadd.f32 0.0, %v410
  %v412 = vpop.f32.mrf.mxu0
  %v413 = vpop.f32.mrf.mxu0
  %v414 = vadd.f32 0.0, %v413
  %v415 = vpop.f32.mrf.mxu0
  %416 = vmatprep.mubr.bf16.mxu0 0
  %417 = vmatmul.mubr.bf16.gmra.mxu0 %v230
  %v418 = vpop.f32.mrf.mxu0
  %v419 = vadd.f32 0.0, %v418
  %v420 = vpop.f32.mrf.mxu0
  %v421 = vpop.f32.mrf.mxu0
  %v422 = vadd.f32 0.0, %v421
  %v423 = vpop.f32.mrf.mxu0
  %424 = vmatprep.mubr.bf16.mxu0 0
  %425 = vmatmul.mubr.bf16.gmra.mxu0 %v231
  %v426 = vpop.f32.mrf.mxu0
  %v427 = vadd.f32 0.0, %v426
  %v428 = vpop.f32.mrf.mxu0
  %v429 = vpop.f32.mrf.mxu0
  %v430 = vadd.f32 0.0, %v429
  %v431 = vpop.f32.mrf.mxu0
  %432 = vmatprep.mubr.bf16.mxu0 0
  %433 = vmatmul.mubr.bf16.gmra.mxu0 %v232
  %v434 = vpop.f32.mrf.mxu0
  %v435 = vadd.f32 0.0, %v434
  %v436 = vpop.f32.mrf.mxu0
  %v437 = vpop.f32.mrf.mxu0
  %v438 = vadd.f32 0.0, %v437
  %v439 = vpop.f32.mrf.mxu0
  %440 = vmatprep.mubr.bf16.mxu0 0
  %441 = vmatmul.mubr.bf16.gmra.mxu0 %v233
  %v442 = vpop.f32.mrf.mxu0
  %v443 = vadd.f32 0.0, %v442
  %v444 = vpop.f32.mrf.mxu0
  %v445 = vpop.f32.mrf.mxu0
  %v446 = vadd.f32 0.0, %v445
  %v447 = vpop.f32.mrf.mxu0
  %448 = vmatprep.mubr.bf16.mxu0 0
  %449 = vmatmul.mubr.bf16.gmra.mxu0 %v234
  %v450 = vpop.f32.mrf.mxu0
  %v451 = vadd.f32 0.0, %v450
  %v452 = vpop.f32.mrf.mxu0
  %v453 = vpop.f32.mrf.mxu0
  %v454 = vadd.f32 0.0, %v453
  %v455 = vpop.f32.mrf.mxu0
  %456 = vmatprep.mubr.bf16.mxu0 0
  %457 = vmatmul.mubr.bf16.gmra.mxu0 %v235
  %v458 = vpop.f32.mrf.mxu0
  %v459 = vadd.f32 0.0, %v458
  %v460 = vpop.f32.mrf.mxu0
  %v461 = vpop.f32.mrf.mxu0
  %v462 = vadd.f32 0.0, %v461
  %v463 = vpop.f32.mrf.mxu0
  %464 = vmatprep.mubr.bf16.mxu0 0
  %465 = vmatmul.mubr.bf16.gmra.mxu0 %v236
  %v466 = vpop.f32.mrf.mxu0
  %v467 = vadd.f32 0.0, %v466
  %v468 = vpop.f32.mrf.mxu0
  %v469 = vpop.f32.mrf.mxu0
  %v470 = vadd.f32 0.0, %v469
  %v471 = vpop.f32.mrf.mxu0
  %472 = vmatprep.mubr.bf16.mxu0 0
  %473 = vmatmul.mubr.bf16.gmra.mxu0 %v237
  %v474 = vpop.f32.mrf.mxu0
  %v475 = vadd.f32 0.0, %v474
  %v476 = vpop.f32.mrf.mxu0
  %v477 = vpop.f32.mrf.mxu0
  %v478 = vadd.f32 0.0, %v477
  %v479 = vpop.f32.mrf.mxu0
  %480 = vmatprep.mubr.bf16.mxu0 0
  %481 = vmatmul.mubr.bf16.gmra.mxu0 %v238
  %v482 = vpop.f32.mrf.mxu0
  %v483 = vadd.f32 0.0, %v482
  %v484 = vpop.f32.mrf.mxu0
  %v485 = vpop.f32.mrf.mxu0
  %v486 = vadd.f32 0.0, %v485
  %v487 = vpop.f32.mrf.mxu0
  %488 = vmatprep.mubr.bf16.mxu0 0
  %489 = vmatmul.mubr.bf16.gmra.mxu0 %v239
  %v490 = vpop.f32.mrf.mxu0
  %v491 = vadd.f32 0.0, %v490
  %v492 = vpop.f32.mrf.mxu0
  %v493 = vpop.f32.mrf.mxu0
  %v494 = vadd.f32 0.0, %v493
  %v495 = vpop.f32.mrf.mxu0
  %496 = vmatprep.mubr.bf16.mxu0 0
  %497 = vmatmul.mubr.bf16.gmra.mxu0 %v240
  %v498 = vpop.f32.mrf.mxu0
  %v499 = vadd.f32 0.0, %v498
  %v500 = vpop.f32.mrf.mxu0
  %v501 = vpop.f32.mrf.mxu0
  %v502 = vadd.f32 0.0, %v501
  %v503 = vpop.f32.mrf.mxu0
  %504 = vmatprep.mubr.bf16.mxu0 0
  %505 = vmatmul.mubr.bf16.gmra.mxu0 %v241
  %v506 = vpop.f32.mrf.mxu0
  %v507 = vadd.f32 0.0, %v506
  %v508 = vpop.f32.mrf.mxu0
  %v509 = vpop.f32.mrf.mxu0
  %v510 = vadd.f32 0.0, %v509
  %v511 = vpop.f32.mrf.mxu0
  %512 = vmatprep.mubr.bf16.mxu0 0
  %513 = vmatmul.mubr.bf16.gmra.mxu0 %v242
  %v514 = vpop.f32.mrf.mxu0
  %v515 = vadd.f32 0.0, %v514
  %v516 = vpop.f32.mrf.mxu0
  %v517 = vpop.f32.mrf.mxu0
  %v518 = vadd.f32 0.0, %v517
  %v519 = vpop.f32.mrf.mxu0
  %520 = vmatprep.mubr.bf16.mxu0 0
  %521 = vmatmul.mubr.bf16.gmra.mxu0 %v243
  %v522 = vpop.f32.mrf.mxu0
  %v523 = vadd.f32 0.0, %v522
  %v524 = vpop.f32.mrf.mxu0
  %v525 = vpop.f32.mrf.mxu0
  %v526 = vadd.f32 0.0, %v525
  %v527 = vpop.f32.mrf.mxu0
  %528 = vmatprep.mubr.bf16.mxu0 0
  %529 = vmatmul.mubr.bf16.gmra.mxu0 %v244
  %v530 = vpop.f32.mrf.mxu0
  %v531 = vadd.f32 0.0, %v530
  %v532 = vpop.f32.mrf.mxu0
  %v533 = vpop.f32.mrf.mxu0
  %v534 = vadd.f32 0.0, %v533
  %v535 = vpop.f32.mrf.mxu0
  %536 = vmatprep.mubr.bf16.mxu0 0
  %537 = vmatmul.mubr.bf16.gmra.mxu0 %v245
  %v538 = vpop.f32.mrf.mxu0
  %v539 = vadd.f32 0.0, %v538
  %v540 = vpop.f32.mrf.mxu0
  %v541 = vpop.f32.mrf.mxu0
  %v542 = vadd.f32 0.0, %v541
  %v543 = vpop.f32.mrf.mxu0
  %544 = vmatprep.mubr.bf16.mxu0 0
  %545 = vmatmul.mubr.bf16.gmra.mxu0 %v246
  %v546 = vpop.f32.mrf.mxu0
  %v547 = vadd.f32 0.0, %v546
  %v548 = vpop.f32.mrf.mxu0
  %v549 = vpop.f32.mrf.mxu0
  %v550 = vadd.f32 0.0, %v549
  %v551 = vpop.f32.mrf.mxu0
  %552 = vmatprep.mubr.bf16.mxu0 0
  %553 = vmatmul.mubr.bf16.gmra.mxu0 %v247
  %v554 = vpop.f32.mrf.mxu0
  %v555 = vadd.f32 0.0, %v554
  %v556 = vpop.f32.mrf.mxu0
  %v557 = vpop.f32.mrf.mxu0
  %v558 = vadd.f32 0.0, %v557
  %v559 = vpop.f32.mrf.mxu0
  %560 = vmatprep.mubr.bf16.mxu0 0
  %561 = vmatmul.mubr.bf16.gmra.mxu0 %v248
  %v562 = vpop.f32.mrf.mxu0
  %v563 = vadd.f32 0.0, %v562
  %v564 = vpop.f32.mrf.mxu0
  %v565 = vpop.f32.mrf.mxu0
  %v566 = vadd.f32 0.0, %v565
  %v567 = vpop.f32.mrf.mxu0
  %568 = vmatprep.mubr.bf16.mxu0 0
  %569 = vmatmul.mubr.bf16.gmra.mxu0 %v249
  %v570 = vpop.f32.mrf.mxu0
  %v571 = vadd.f32 0.0, %v570
  %v572 = vpop.f32.mrf.mxu0
  %v573 = vpop.f32.mrf.mxu0
  %v574 = vadd.f32 0.0, %v573
  %v575 = vpop.f32.mrf.mxu0
  %576 = vmatprep.mubr.bf16.mxu0 0
  %577 = vmatmul.mubr.bf16.gmra.mxu0 %v250
  %v578 = vpop.f32.mrf.mxu0
  %v579 = vadd.f32 0.0, %v578
  %v580 = vpop.f32.mrf.mxu0
  %v581 = vpop.f32.mrf.mxu0
  %v582 = vadd.f32 0.0, %v581
  %v583 = vpop.f32.mrf.mxu0
  %584 = vmatprep.mubr.bf16.mxu0 0
  %585 = vmatmul.mubr.bf16.gmra.mxu0 %v251
  %v586 = vpop.f32.mrf.mxu0
  %v587 = vadd.f32 0.0, %v586
  %v588 = vpop.f32.mrf.mxu0
  %v589 = vpop.f32.mrf.mxu0
  %v590 = vadd.f32 0.0, %v589
  %v591 = vpop.f32.mrf.mxu0
  %592 = vmatprep.mubr.bf16.mxu0 0
  %593 = vmatmul.mubr.bf16.gmra.mxu0 %v252
  %v594 = vpop.f32.mrf.mxu0
  %v595 = vadd.f32 0.0, %v594
  %v596 = vpop.f32.mrf.mxu0
  %v597 = vpop.f32.mrf.mxu0
  %v598 = vadd.f32 0.0, %v597
  %v599 = vpop.f32.mrf.mxu0
  %600 = vmatprep.mubr.bf16.mxu0 0
  %601 = vmatmul.mubr.bf16.gmra.mxu0 %v253
  %v602 = vpop.f32.mrf.mxu0
  %v603 = vadd.f32 0.0, %v602
  %v604 = vpop.f32.mrf.mxu0
  %v605 = vpop.f32.mrf.mxu0
  %v606 = vadd.f32 0.0, %v605
  %v607 = vpop.f32.mrf.mxu0
  %608 = vmatprep.mubr.bf16.mxu0 0
  %609 = vmatmul.mubr.bf16.gmra.mxu0 %v254
  %v610 = vpop.f32.mrf.mxu0
  %v611 = vadd.f32 0.0, %v610
  %v612 = vpop.f32.mrf.mxu0
  %v613 = vpop.f32.mrf.mxu0
  %v614 = vadd.f32 0.0, %v613
  %v615 = vpop.f32.mrf.mxu0
  %616 = vmatprep.mubr.bf16.mxu0 0
  %617 = vmatmul.mubr.bf16.gmra.mxu0 %v255
  %v618 = vpop.f32.mrf.mxu0
  %v619 = vadd.f32 0.0, %v618
  %v620 = vpop.f32.mrf.mxu0
  %v621 = vpop.f32.mrf.mxu0
  %v622 = vadd.f32 0.0, %v621
  %v623 = vpop.f32.mrf.mxu0
  %624 = vdwg.mxu0
  %s625 = sld [smem:[#allocation2]]
  %vm626 = vcmp.ge.f32.partialorder %v371, 0.0
  %vm627 = vcmp.ge.f32.partialorder %v374, 0.0
  %vm628 = vcmp.ge.f32.partialorder %v379, 0.0
  %vm629 = vcmp.ge.f32.partialorder %v382, 0.0
  %vm630 = vcmp.ge.f32.partialorder %v387, 0.0
  %vm631 = vcmp.ge.f32.partialorder %v390, 0.0
  %vm632 = vcmp.ge.f32.partialorder %v395, 0.0
  %vm633 = vcmp.ge.f32.partialorder %v398, 0.0
  %vm634 = vcmp.ge.f32.partialorder %v403, 0.0
  %vm635 = vcmp.ge.f32.partialorder %v406, 0.0
  %vm636 = vcmp.ge.f32.partialorder %v411, 0.0
  %vm637 = vcmp.ge.f32.partialorder %v414, 0.0
  %vm638 = vcmp.ge.f32.partialorder %v419, 0.0
  %vm639 = vcmp.ge.f32.partialorder %v422, 0.0
  %vm640 = vcmp.ge.f32.partialorder %v427, 0.0
  %vm641 = vcmp.ge.f32.partialorder %v430, 0.0
  %vm642 = vcmp.ge.f32.partialorder %v435, 0.0
  %vm643 = vcmp.ge.f32.partialorder %v438, 0.0
  %vm644 = vcmp.ge.f32.partialorder %v443, 0.0
  %vm645 = vcmp.ge.f32.partialorder %v446, 0.0
  %vm646 = vcmp.ge.f32.partialorder %v451, 0.0
  %vm647 = vcmp.ge.f32.partialorder %v454, 0.0
  %vm648 = vcmp.ge.f32.partialorder %v459, 0.0
  %vm649 = vcmp.ge.f32.partialorder %v462, 0.0
  %vm650 = vcmp.ge.f32.partialorder %v467, 0.0
  %vm651 = vcmp.ge.f32.partialorder %v470, 0.0
  %vm652 = vcmp.ge.f32.partialorder %v475, 0.0
  %vm653 = vcmp.ge.f32.partialorder %v478, 0.0
  %vm654 = vcmp.ge.f32.partialorder %v483, 0.0
  %vm655 = vcmp.ge.f32.partialorder %v486, 0.0
  %vm656 = vcmp.ge.f32.partialorder %v491, 0.0
  %vm657 = vcmp.ge.f32.partialorder %v494, 0.0
  %vm658 = vcmp.ge.f32.partialorder %v499, 0.0
  %vm659 = vcmp.ge.f32.partialorder %v502, 0.0
  %vm660 = vcmp.ge.f32.partialorder %v507, 0.0
  %vm661 = vcmp.ge.f32.partialorder %v510, 0.0
  %vm662 = vcmp.ge.f32.partialorder %v515, 0.0
  %vm663 = vcmp.ge.f32.partialorder %v518, 0.0
  %vm664 = vcmp.ge.f32.partialorder %v523, 0.0
  %vm665 = vcmp.ge.f32.partialorder %v526, 0.0
  %vm666 = vcmp.ge.f32.partialorder %v531, 0.0
  %vm667 = vcmp.ge.f32.partialorder %v534, 0.0
  %vm668 = vcmp.ge.f32.partialorder %v539, 0.0
  %vm669 = vcmp.ge.f32.partialorder %v542, 0.0
  %vm670 = vcmp.ge.f32.partialorder %v547, 0.0
  %vm671 = vcmp.ge.f32.partialorder %v550, 0.0
  %vm672 = vcmp.ge.f32.partialorder %v555, 0.0
  %vm673 = vcmp.ge.f32.partialorder %v558, 0.0
  %vm674 = vcmp.ge.f32.partialorder %v563, 0.0
  %vm675 = vcmp.ge.f32.partialorder %v566, 0.0
  %vm676 = vcmp.ge.f32.partialorder %v571, 0.0
  %vm677 = vcmp.ge.f32.partialorder %v574, 0.0
  %vm678 = vcmp.ge.f32.partialorder %v579, 0.0
  %vm679 = vcmp.ge.f32.partialorder %v582, 0.0
  %vm680 = vcmp.ge.f32.partialorder %v587, 0.0
  %vm681 = vcmp.ge.f32.partialorder %v590, 0.0
  %vm682 = vcmp.ge.f32.partialorder %v595, 0.0
  %vm683 = vcmp.ge.f32.partialorder %v598, 0.0
  %vm684 = vcmp.ge.f32.partialorder %v603, 0.0
  %vm685 = vcmp.ge.f32.partialorder %v606, 0.0
  %vm686 = vcmp.ge.f32.partialorder %v611, 0.0
  %vm687 = vcmp.ge.f32.partialorder %v614, 0.0
  %vm688 = vcmp.ge.f32.partialorder %v619, 0.0
  %vm689 = vcmp.ge.f32.partialorder %v622, 0.0
  %v690 = vstv %s625
  %v691 = vmul.f32 %v690, %v371
  %v692 = vmul.f32 %v690, %v374
  %v693 = vmul.f32 %v690, %v379
  %v694 = vmul.f32 %v690, %v382
  %v695 = vmul.f32 %v690, %v387
  %v696 = vmul.f32 %v690, %v390
  %v697 = vmul.f32 %v690, %v395
  %v698 = vmul.f32 %v690, %v398
  %v699 = vmul.f32 %v690, %v403
  %v700 = vmul.f32 %v690, %v406
  %v701 = vmul.f32 %v690, %v411
  %v702 = vmul.f32 %v690, %v414
  %v703 = vmul.f32 %v690, %v419
  %v704 = vmul.f32 %v690, %v422
  %v705 = vmul.f32 %v690, %v427
  %v706 = vmul.f32 %v690, %v430
  %v707 = vmul.f32 %v690, %v435
  %v708 = vmul.f32 %v690, %v438
  %v709 = vmul.f32 %v690, %v443
  %v710 = vmul.f32 %v690, %v446
  %v711 = vmul.f32 %v690, %v451
  %v712 = vmul.f32 %v690, %v454
  %v713 = vmul.f32 %v690, %v459
  %v714 = vmul.f32 %v690, %v462
  %v715 = vmul.f32 %v690, %v467
  %v716 = vmul.f32 %v690, %v470
  %v717 = vmul.f32 %v690, %v475
  %v718 = vmul.f32 %v690, %v478
  %v719 = vmul.f32 %v690, %v483
  %v720 = vmul.f32 %v690, %v486
  %v721 = vmul.f32 %v690, %v491
  %v722 = vmul.f32 %v690, %v494
  %v723 = vmul.f32 %v690, %v499
  %v724 = vmul.f32 %v690, %v502
  %v725 = vmul.f32 %v690, %v507
  %v726 = vmul.f32 %v690, %v510
  %v727 = vmul.f32 %v690, %v515
  %v728 = vmul.f32 %v690, %v518
  %v729 = vmul.f32 %v690, %v523
  %v730 = vmul.f32 %v690, %v526
  %v731 = vmul.f32 %v690, %v531
  %v732 = vmul.f32 %v690, %v534
  %v733 = vmul.f32 %v690, %v539
  %v734 = vmul.f32 %v690, %v542
  %v735 = vmul.f32 %v690, %v547
  %v736 = vmul.f32 %v690, %v550
  %v737 = vmul.f32 %v690, %v555
  %v738 = vmul.f32 %v690, %v558
  %v739 = vmul.f32 %v690, %v563
  %v740 = vmul.f32 %v690, %v566
  %v741 = vmul.f32 %v690, %v571
  %v742 = vmul.f32 %v690, %v574
  %v743 = vmul.f32 %v690, %v579
  %v744 = vmul.f32 %v690, %v582
  %v745 = vmul.f32 %v690, %v587
  %v746 = vmul.f32 %v690, %v590
  %v747 = vmul.f32 %v690, %v595
  %v748 = vmul.f32 %v690, %v598
  %v749 = vmul.f32 %v690, %v603
  %v750 = vmul.f32 %v690, %v606
  %v751 = vmul.f32 %v690, %v611
  %v752 = vmul.f32 %v690, %v614
  %v753 = vmul.f32 %v690, %v619
  %v754 = vmul.f32 %v690, %v622
  %v755 = vsel %vm626, %v371, %v691
  %v756 = vsel %vm627, %v374, %v692
  %v757 = vsel %vm628, %v379, %v693
  %v758 = vsel %vm629, %v382, %v694
  %v759 = vsel %vm630, %v387, %v695
  %v760 = vsel %vm631, %v390, %v696
  %v761 = vsel %vm632, %v395, %v697
  %v762 = vsel %vm633, %v398, %v698
  %v763 = vsel %vm634, %v403, %v699
  %v764 = vsel %vm635, %v406, %v700
  %v765 = vsel %vm636, %v411, %v701
  %v766 = vsel %vm637, %v414, %v702
  %v767 = vsel %vm638, %v419, %v703
  %v768 = vsel %vm639, %v422, %v704
  %v769 = vsel %vm640, %v427, %v705
  %v770 = vsel %vm641, %v430, %v706
  %v771 = vsel %vm642, %v435, %v707
  %v772 = vsel %vm643, %v438, %v708
  %v773 = vsel %vm644, %v443, %v709
  %v774 = vsel %vm645, %v446, %v710
  %v775 = vsel %vm646, %v451, %v711
  %v776 = vsel %vm647, %v454, %v712
  %v777 = vsel %vm648, %v459, %v713
  %v778 = vsel %vm649, %v462, %v714
  %v779 = vsel %vm650, %v467, %v715
  %v780 = vsel %vm651, %v470, %v716
  %v781 = vsel %vm652, %v475, %v717
  %v782 = vsel %vm653, %v478, %v718
  %v783 = vsel %vm654, %v483, %v719
  %v784 = vsel %vm655, %v486, %v720
  %v785 = vsel %vm656, %v491, %v721
  %v786 = vsel %vm657, %v494, %v722
  %v787 = vsel %vm658, %v499, %v723
  %v788 = vsel %vm659, %v502, %v724
  %v789 = vsel %vm660, %v507, %v725
  %v790 = vsel %vm661, %v510, %v726
  %v791 = vsel %vm662, %v515, %v727
  %v792 = vsel %vm663, %v518, %v728
  %v793 = vsel %vm664, %v523, %v729
  %v794 = vsel %vm665, %v526, %v730
  %v795 = vsel %vm666, %v531, %v731
  %v796 = vsel %vm667, %v534, %v732
  %v797 = vsel %vm668, %v539, %v733
  %v798 = vsel %vm669, %v542, %v734
  %v799 = vsel %vm670, %v547, %v735
  %v800 = vsel %vm671, %v550, %v736
  %v801 = vsel %vm672, %v555, %v737
  %v802 = vsel %vm673, %v558, %v738
  %v803 = vsel %vm674, %v563, %v739
  %v804 = vsel %vm675, %v566, %v740
  %v805 = vsel %vm676, %v571, %v741
  %v806 = vsel %vm677, %v574, %v742
  %v807 = vsel %vm678, %v579, %v743
  %v808 = vsel %vm679, %v582, %v744
  %v809 = vsel %vm680, %v587, %v745
  %v810 = vsel %vm681, %v590, %v746
  %v811 = vsel %vm682, %v595, %v747
  %v812 = vsel %vm683, %v598, %v748
  %v813 = vsel %vm684, %v603, %v749
  %v814 = vsel %vm685, %v606, %v750
  %v815 = vsel %vm686, %v611, %v751
  %v816 = vsel %vm687, %v614, %v752
  %v817 = vsel %vm688, %v619, %v753
  %v818 = vsel %vm689, %v622, %v754
  %819 = vst [vmem:[%s3] sm:$0xff] %v755
  %820 = vst [vmem:[%s3 + $0x8] sm:$0xff] %v756
  %821 = vst [vmem:[%s3 + $0x10] sm:$0xff] %v757
  %822 = vst [vmem:[%s3 + $0x18] sm:$0xff] %v758
  %823 = vst [vmem:[%s3 + $0x20] sm:$0xff] %v759
  %824 = vst [vmem:[%s3 + $0x28] sm:$0xff] %v760
  %825 = vst [vmem:[%s3 + $0x30] sm:$0xff] %v761
  %826 = vst [vmem:[%s3 + $0x38] sm:$0xff] %v762
  %827 = vst [vmem:[%s3 + $0x40] sm:$0xff] %v763
  %828 = vst [vmem:[%s3 + $0x48] sm:$0xff] %v764
  %829 = vst [vmem:[%s3 + $0x50] sm:$0xff] %v765
  %830 = vst [vmem:[%s3 + $0x58] sm:$0xff] %v766
  %831 = vst [vmem:[%s3 + $0x60] sm:$0xff] %v767
  %832 = vst [vmem:[%s3 + $0x68] sm:$0xff] %v768
  %833 = vst [vmem:[%s3 + $0x70] sm:$0xff] %v769
  %834 = vst [vmem:[%s3 + $0x78] sm:$0xff] %v770
  %835 = vst [vmem:[%s3 + $0x80] sm:$0xff] %v771
  %836 = vst [vmem:[%s3 + $0x88] sm:$0xff] %v772
  %837 = vst [vmem:[%s3 + $0x90] sm:$0xff] %v773
  %838 = vst [vmem:[%s3 + $0x98] sm:$0xff] %v774
  %839 = vst [vmem:[%s3 + $0xa0] sm:$0xff] %v775
  %840 = vst [vmem:[%s3 + $0xa8] sm:$0xff] %v776
  %841 = vst [vmem:[%s3 + $0xb0] sm:$0xff] %v777
  %842 = vst [vmem:[%s3 + $0xb8] sm:$0xff] %v778
  %843 = vst [vmem:[%s3 + $0xc0] sm:$0xff] %v779
  %844 = vst [vmem:[%s3 + $0xc8] sm:$0xff] %v780
  %845 = vst [vmem:[%s3 + $0xd0] sm:$0xff] %v781
  %846 = vst [vmem:[%s3 + $0xd8] sm:$0xff] %v782
  %847 = vst [vmem:[%s3 + $0xe0] sm:$0xff] %v783
  %848 = vst [vmem:[%s3 + $0xe8] sm:$0xff] %v784
  %849 = vst [vmem:[%s3 + $0xf0] sm:$0xff] %v785
  %850 = vst [vmem:[%s3 + $0xf8] sm:$0xff] %v786
  %851 = vst [vmem:[%s3 + $0x100] sm:$0xff] %v787
  %852 = vst [vmem:[%s3 + $0x108] sm:$0xff] %v788
  %853 = vst [vmem:[%s3 + $0x110] sm:$0xff] %v789
  %854 = vst [vmem:[%s3 + $0x118] sm:$0xff] %v790
  %855 = vst [vmem:[%s3 + $0x120] sm:$0xff] %v791
  %856 = vst [vmem:[%s3 + $0x128] sm:$0xff] %v792
  %857 = vst [vmem:[%s3 + $0x130] sm:$0xff] %v793
  %858 = vst [vmem:[%s3 + $0x138] sm:$0xff] %v794
  %859 = vst [vmem:[%s3 + $0x140] sm:$0xff] %v795
  %860 = vst [vmem:[%s3 + $0x148] sm:$0xff] %v796
  %861 = vst [vmem:[%s3 + $0x150] sm:$0xff] %v797
  %862 = vst [vmem:[%s3 + $0x158] sm:$0xff] %v798
  %863 = vst [vmem:[%s3 + $0x160] sm:$0xff] %v799
  %864 = vst [vmem:[%s3 + $0x168] sm:$0xff] %v800
  %865 = vst [vmem:[%s3 + $0x170] sm:$0xff] %v801
  %866 = vst [vmem:[%s3 + $0x178] sm:$0xff] %v802
  %867 = vst [vmem:[%s3 + $0x180] sm:$0xff] %v803
  %868 = vst [vmem:[%s3 + $0x188] sm:$0xff] %v804
  %869 = vst [vmem:[%s3 + $0x190] sm:$0xff] %v805
  %870 = vst [vmem:[%s3 + $0x198] sm:$0xff] %v806
  %871 = vst [vmem:[%s3 + $0x1a0] sm:$0xff] %v807
  %872 = vst [vmem:[%s3 + $0x1a8] sm:$0xff] %v808
  %873 = vst [vmem:[%s3 + $0x1b0] sm:$0xff] %v809
  %874 = vst [vmem:[%s3 + $0x1b8] sm:$0xff] %v810
  %875 = vst [vmem:[%s3 + $0x1c0] sm:$0xff] %v811
  %876 = vst [vmem:[%s3 + $0x1c8] sm:$0xff] %v812
  %877 = vst [vmem:[%s3 + $0x1d0] sm:$0xff] %v813
  %878 = vst [vmem:[%s3 + $0x1d8] sm:$0xff] %v814
  %879 = vst [vmem:[%s3 + $0x1e0] sm:$0xff] %v815
  %880 = vst [vmem:[%s3 + $0x1e8] sm:$0xff] %v816
  %881 = vst [vmem:[%s3 + $0x1f0] sm:$0xff] %v817
  %882 = vst [vmem:[%s3 + $0x1f8] sm:$0xff] %v818
  // Predicated region
  $region14: #{discriminator_forward.6} parent=0 // pred_check
    _
  $region15: #{discriminator_forward.6} parent=0 // pred_check_branch
    %884 = sbr.rel (0) target = $region17
  $region16: #{discriminator_forward.6} parent=0 // pred_region
    _
  $region17: #{discriminator_forward.6} parent=0 // pred_fallthru
    _
  // Predicated region
  $region18: #{discriminator_forward.6} parent=0 // pred_check
    _
  $region19: #{discriminator_forward.6} parent=0 // pred_check_branch
    %886 = sbr.rel (0) target = $region21
  $region20: #{discriminator_forward.6} parent=0 // pred_region
    _
  $region21: #{discriminator_forward.6} parent=0 // pred_fallthru
    _

// kernel: discriminator_forward.7
$region0: #{discriminator_forward.7}
  #allocation0 [shape = 'u32[]', space=smem, size = 0x4, offset = 0x4, fixed_abs, tag = 'smem constant byte address 0x4 - core index']
  #allocation1 [shape = 'u32[144,128]{1,0:T(1,128)}', space=vmem, size = 0x12000, scoped, tag = 'internal scratch']
  #allocation2 [shape = 'f32[1]{0:T(128)S(6)}', space=smem, size = 0x200, scoped, tag = 'scoped memory for discriminator_forward.7']
  %s0 = inlined_call_operand.<no memory space> [shape: f32[1], index: 0, kind: input, shape index: {}]
  %s1 = inlined_call_operand.vmem [shape: bf16[128,256], index: 1, kind: input, shape index: {}]
  %s2 = inlined_call_operand.vmem [shape: bf16[256,128], index: 2, kind: input, shape index: {}]
  %s3 = inlined_call_operand.vmem [shape: f32[128,128], index: 3, kind: output, shape index: {}]
  %s4 = sld [smem:[#allocation0]]
  $region22: #{discriminator_forward.7} parent=0
    _
  %s6 = ssub.s32 1, %s4
  %s7 = scalar_select 0, %s6, %s4
  %8 = sst [smem:[#allocation2]] %s0
  // Predicated region
  $region2: #{discriminator_forward.7} parent=0 // pred_check
    _
  $region3: #{discriminator_forward.7} parent=0 // pred_check_branch
    %10 = sbr.rel (0) target = $region5
  $region4: #{discriminator_forward.7} parent=0 // pred_region
    _
  $region5: #{discriminator_forward.7} parent=0 // pred_fallthru
    _
  // Predicated region
  $region6: #{discriminator_forward.7} parent=0 // pred_check
    _
  $region7: #{discriminator_forward.7} parent=0 // pred_check_branch
    %12 = sbr.rel (0) target = $region9
  $region8: #{discriminator_forward.7} parent=0 // pred_region
    _
  $region9: #{discriminator_forward.7} parent=0 // pred_fallthru
    _
  // Predicated region
  $region10: #{discriminator_forward.7} parent=0 // pred_check
    _
  $region11: #{discriminator_forward.7} parent=0 // pred_check_branch
    %14 = sbr.rel (0) target = $region13
  $region12: #{discriminator_forward.7} parent=0 // pred_region
    _
  $region13: #{discriminator_forward.7} parent=0 // pred_fallthru
    _
  %v16 = vld [vmem:[%s1] sm:$0xff]
  %v17 = vld [vmem:[%s1 + $0x8] sm:$0xff]
  %v18 = vld [vmem:[%s1 + $0x10] sm:$0xff]
  %v19 = vld [vmem:[%s1 + $0x18] sm:$0xff]
  %v20 = vld [vmem:[%s1 + $0x20] sm:$0xff]
  %v21 = vld [vmem:[%s1 + $0x28] sm:$0xff]
  %v22 = vld [vmem:[%s1 + $0x30] sm:$0xff]
  %v23 = vld [vmem:[%s1 + $0x38] sm:$0xff]
  %v24 = vld [vmem:[%s1 + $0x40] sm:$0xff]
  %v25 = vld [vmem:[%s1 + $0x48] sm:$0xff]
  %v26 = vld [vmem:[%s1 + $0x50] sm:$0xff]
  %v27 = vld [vmem:[%s1 + $0x58] sm:$0xff]
  %v28 = vld [vmem:[%s1 + $0x60] sm:$0xff]
  %v29 = vld [vmem:[%s1 + $0x68] sm:$0xff]
  %v30 = vld [vmem:[%s1 + $0x70] sm:$0xff]
  %v31 = vld [vmem:[%s1 + $0x78] sm:$0xff]
  %v32 = vld [vmem:[%s2] sm:$0xf]
  %v33 = vld [vmem:[%s2 + $0x4] sm:$0xf]
  %v34 = vld [vmem:[%s2 + $0x8] sm:$0xf]
  %v35 = vld [vmem:[%s2 + $0xc] sm:$0xf]
  %v36 = vld [vmem:[%s2 + $0x10] sm:$0xf]
  %v37 = vld [vmem:[%s2 + $0x14] sm:$0xf]
  %v38 = vld [vmem:[%s2 + $0x18] sm:$0xf]
  %v39 = vld [vmem:[%s2 + $0x1c] sm:$0xf]
  %v40 = vld [vmem:[%s2 + $0x20] sm:$0xf]
  %v41 = vld [vmem:[%s2 + $0x24] sm:$0xf]
  %v42 = vld [vmem:[%s2 + $0x28] sm:$0xf]
  %v43 = vld [vmem:[%s2 + $0x2c] sm:$0xf]
  %v44 = vld [vmem:[%s2 + $0x30] sm:$0xf]
  %v45 = vld [vmem:[%s2 + $0x34] sm:$0xf]
  %v46 = vld [vmem:[%s2 + $0x38] sm:$0xf]
  %v47 = vld [vmem:[%s2 + $0x3c] sm:$0xf]
  %v48 = vld [vmem:[%s2 + $0x40] sm:$0xf]
  %v49 = vld [vmem:[%s2 + $0x44] sm:$0xf]
  %v50 = vld [vmem:[%s2 + $0x48] sm:$0xf]
  %v51 = vld [vmem:[%s2 + $0x4c] sm:$0xf]
  %v52 = vld [vmem:[%s2 + $0x50] sm:$0xf]
  %v53 = vld [vmem:[%s2 + $0x54] sm:$0xf]
  %v54 = vld [vmem:[%s2 + $0x58] sm:$0xf]
  %v55 = vld [vmem:[%s2 + $0x5c] sm:$0xf]
  %v56 = vld [vmem:[%s2 + $0x60] sm:$0xf]
  %v57 = vld [vmem:[%s2 + $0x64] sm:$0xf]
  %v58 = vld [vmem:[%s2 + $0x68] sm:$0xf]
  %v59 = vld [vmem:[%s2 + $0x6c] sm:$0xf]
  %v60 = vld [vmem:[%s2 + $0x70] sm:$0xf]
  %v61 = vld [vmem:[%s2 + $0x74] sm:$0xf]
  %v62 = vld [vmem:[%s2 + $0x78] sm:$0xf]
  %v63 = vld [vmem:[%s2 + $0x7c] sm:$0xf]
  %v80 = vunpack.c.l.b16 %v16
  %v81 = vunpack.c.h.b16 %v16
  %v82 = vunpack.c.l.b16 %v17
  %v83 = vunpack.c.h.b16 %v17
  %v84 = vunpack.c.l.b16 %v18
  %v85 = vunpack.c.h.b16 %v18
  %v86 = vunpack.c.l.b16 %v19
  %v87 = vunpack.c.h.b16 %v19
  %v88 = vunpack.c.l.b16 %v20
  %v89 = vunpack.c.h.b16 %v20
  %v90 = vunpack.c.l.b16 %v21
  %v91 = vunpack.c.h.b16 %v21
  %v92 = vunpack.c.l.b16 %v22
  %v93 = vunpack.c.h.b16 %v22
  %v94 = vunpack.c.l.b16 %v23
  %v95 = vunpack.c.h.b16 %v23
  %v96 = vunpack.c.l.b16 %v24
  %v97 = vunpack.c.h.b16 %v24
  %v98 = vunpack.c.l.b16 %v25
  %v99 = vunpack.c.h.b16 %v25
  %v100 = vunpack.c.l.b16 %v26
  %v101 = vunpack.c.h.b16 %v26
  %v102 = vunpack.c.l.b16 %v27
  %v103 = vunpack.c.h.b16 %v27
  %v104 = vunpack.c.l.b16 %v28
  %v105 = vunpack.c.h.b16 %v28
  %v106 = vunpack.c.l.b16 %v29
  %v107 = vunpack.c.h.b16 %v29
  %v108 = vunpack.c.l.b16 %v30
  %v109 = vunpack.c.h.b16 %v30
  %v110 = vunpack.c.l.b16 %v31
  %v111 = vunpack.c.h.b16 %v31
  %v112 = vpack.c.b16 %v82, %v80
  %v113 = vpack.c.b16 %v83, %v81
  %v114 = vpack.c.b16 %v86, %v84
  %v115 = vpack.c.b16 %v87, %v85
  %v116 = vpack.c.b16 %v90, %v88
  %v117 = vpack.c.b16 %v91, %v89
  %v118 = vpack.c.b16 %v94, %v92
  %v119 = vpack.c.b16 %v95, %v93
  %v120 = vpack.c.b16 %v98, %v96
  %v121 = vpack.c.b16 %v99, %v97
  %v122 = vpack.c.b16 %v102, %v100
  %v123 = vpack.c.b16 %v103, %v101
  %v124 = vpack.c.b16 %v106, %v104
  %v125 = vpack.c.b16 %v107, %v105
  %v126 = vpack.c.b16 %v110, %v108
  %v127 = vpack.c.b16 %v111, %v109
  %v176 = vunpack.c.l.b16 %v32
  %v177 = vunpack.c.l.b16 %v33
  %v178 = vunpack.c.l.b16 %v34
  %v179 = vunpack.c.l.b16 %v35
  %v180 = vunpack.c.l.b16 %v36
  %v181 = vunpack.c.l.b16 %v37
  %v182 = vunpack.c.l.b16 %v38
  %v183 = vunpack.c.l.b16 %v39
  %v184 = vunpack.c.l.b16 %v40
  %v185 = vunpack.c.l.b16 %v41
  %v186 = vunpack.c.l.b16 %v42
  %v187 = vunpack.c.l.b16 %v43
  %v188 = vunpack.c.l.b16 %v44
  %v189 = vunpack.c.l.b16 %v45
  %v190 = vunpack.c.l.b16 %v46
  %v191 = vunpack.c.l.b16 %v47
  %v192 = vunpack.c.l.b16 %v48
  %v193 = vunpack.c.l.b16 %v49
  %v194 = vunpack.c.l.b16 %v50
  %v195 = vunpack.c.l.b16 %v51
  %v196 = vunpack.c.l.b16 %v52
  %v197 = vunpack.c.l.b16 %v53
  %v198 = vunpack.c.l.b16 %v54
  %v199 = vunpack.c.l.b16 %v55
  %v200 = vunpack.c.l.b16 %v56
  %v201 = vunpack.c.l.b16 %v57
  %v202 = vunpack.c.l.b16 %v58
  %v203 = vunpack.c.l.b16 %v59
  %v204 = vunpack.c.l.b16 %v60
  %v205 = vunpack.c.l.b16 %v61
  %v206 = vunpack.c.l.b16 %v62
  %v207 = vunpack.c.l.b16 %v63
  %v208 = vpack.c.b16 %v177, %v176
  %v209 = vpack.c.b16 %v179, %v178
  %v210 = vpack.c.b16 %v181, %v180
  %v211 = vpack.c.b16 %v183, %v182
  %v212 = vpack.c.b16 %v185, %v184
  %v213 = vpack.c.b16 %v187, %v186
  %v214 = vpack.c.b16 %v189, %v188
  %v215 = vpack.c.b16 %v191, %v190
  %v216 = vpack.c.b16 %v193, %v192
  %v217 = vpack.c.b16 %v195, %v194
  %v218 = vpack.c.b16 %v197, %v196
  %v219 = vpack.c.b16 %v199, %v198
  %v220 = vpack.c.b16 %v201, %v200
  %v221 = vpack.c.b16 %v203, %v202
  %v222 = vpack.c.b16 %v205, %v204
  %v223 = vpack.c.b16 %v207, %v206
  %240 = vmatprep.subr.bf16.mxu0 0
  %241 = vmatpush1.bf16.msra.mxu0 %v215
  %242 = vmatprep.subr.bf16.mxu0 0
  %243 = vmatpush1.bf16.msra.mxu0 %v214
  %244 = vmatprep.subr.bf16.mxu0 0
  %245 = vmatpush1.bf16.msra.mxu0 %v213
  %246 = vmatprep.subr.bf16.mxu0 0
  %247 = vmatpush1.bf16.msra.mxu0 %v212
  %248 = vmatprep.subr.bf16.mxu0 0
  %249 = vmatpush1.bf16.msra.mxu0 %v211
  %250 = vmatprep.subr.bf16.mxu0 0
  %251 = vmatpush1.bf16.msra.mxu0 %v210
  %252 = vmatprep.subr.bf16.mxu0 0
  %253 = vmatpush1.bf16.msra.mxu0 %v209
  %254 = vmatprep.subr.bf16.mxu0 0
  %255 = vmatpush1.bf16.msra.mxu0 %v208
  %256 = vmatprep.subr.bf16.mxu0 0
  %257 = vmatpush2.bf16.msra.mxu0 %v223
  %258 = vmatprep.subr.bf16.mxu0 0
  %259 = vmatpush2.bf16.msra.mxu0 %v222
  %260 = vmatprep.subr.bf16.mxu0 0
  %261 = vmatpush2.bf16.msra.mxu0 %v221
  %262 = vmatprep.subr.bf16.mxu0 0
  %263 = vmatpush2.bf16.msra.mxu0 %v220
  %264 = vmatprep.subr.bf16.mxu0 0
  %265 = vmatpush2.bf16.msra.mxu0 %v219
  %266 = vmatprep.subr.bf16.mxu0 0
  %267 = vmatpush2.bf16.msra.mxu0 %v218
  %268 = vmatprep.subr.bf16.mxu0 0
  %269 = vmatpush2.bf16.msra.mxu0 %v217
  %270 = vmatprep.subr.bf16.mxu0 0
  %271 = vmatpush2.bf16.msra.mxu0 %v216
  %272 = vmatprep.mubr.bf16.mxu0 %v113
  %273 = vmatmul.mubr.bf16.gmra.mxu0 %v112
  %v274 = vpop.f32.mrf.mxu0
  %v275 = vadd.f32 0.0, %v274
  %v276 = vpop.f32.mrf.mxu0
  %v277 = vpop.f32.mrf.mxu0
  %v278 = vadd.f32 0.0, %v277
  %v279 = vpop.f32.mrf.mxu0
  %280 = vmatprep.mubr.bf16.mxu0 %v115
  %281 = vmatmul.mubr.bf16.gmra.mxu0 %v114
  %v282 = vpop.f32.mrf.mxu0
  %v283 = vadd.f32 0.0, %v282
  %v284 = vpop.f32.mrf.mxu0
  %v285 = vpop.f32.mrf.mxu0
  %v286 = vadd.f32 0.0, %v285
  %v287 = vpop.f32.mrf.mxu0
  %288 = vmatprep.mubr.bf16.mxu0 %v117
  %289 = vmatmul.mubr.bf16.gmra.mxu0 %v116
  %v290 = vpop.f32.mrf.mxu0
  %v291 = vadd.f32 0.0, %v290
  %v292 = vpop.f32.mrf.mxu0
  %v293 = vpop.f32.mrf.mxu0
  %v294 = vadd.f32 0.0, %v293
  %v295 = vpop.f32.mrf.mxu0
  %296 = vmatprep.mubr.bf16.mxu0 %v119
  %297 = vmatmul.mubr.bf16.gmra.mxu0 %v118
  %v298 = vpop.f32.mrf.mxu0
  %v299 = vadd.f32 0.0, %v298
  %v300 = vpop.f32.mrf.mxu0
  %v301 = vpop.f32.mrf.mxu0
  %v302 = vadd.f32 0.0, %v301
  %v303 = vpop.f32.mrf.mxu0
  %304 = vmatprep.mubr.bf16.mxu0 %v121
  %305 = vmatmul.mubr.bf16.gmra.mxu0 %v120
  %v306 = vpop.f32.mrf.mxu0
  %v307 = vadd.f32 0.0, %v306
  %v308 = vpop.f32.mrf.mxu0
  %v309 = vpop.f32.mrf.mxu0
  %v310 = vadd.f32 0.0, %v309
  %v311 = vpop.f32.mrf.mxu0
  %312 = vmatprep.mubr.bf16.mxu0 %v123
  %313 = vmatmul.mubr.bf16.gmra.mxu0 %v122
  %v314 = vpop.f32.mrf.mxu0
  %v315 = vadd.f32 0.0, %v314
  %v316 = vpop.f32.mrf.mxu0
  %v317 = vpop.f32.mrf.mxu0
  %v318 = vadd.f32 0.0, %v317
  %v319 = vpop.f32.mrf.mxu0
  %320 = vmatprep.mubr.bf16.mxu0 %v125
  %321 = vmatmul.mubr.bf16.gmra.mxu0 %v124
  %v322 = vpop.f32.mrf.mxu0
  %v323 = vadd.f32 0.0, %v322
  %v324 = vpop.f32.mrf.mxu0
  %v325 = vpop.f32.mrf.mxu0
  %v326 = vadd.f32 0.0, %v325
  %v327 = vpop.f32.mrf.mxu0
  %328 = vmatprep.mubr.bf16.mxu0 %v127
  %329 = vmatmul.mubr.bf16.gmra.mxu0 %v126
  %v330 = vpop.f32.mrf.mxu0
  %v331 = vadd.f32 0.0, %v330
  %v332 = vpop.f32.mrf.mxu0
  %v333 = vpop.f32.mrf.mxu0
  %v334 = vadd.f32 0.0, %v333
  %v335 = vpop.f32.mrf.mxu0
  %336 = vdwg.mxu0
  %s337 = sld [smem:[#allocation2]]
  %vm338 = vcmp.ge.f32.partialorder %v275, 0.0
  %vm339 = vcmp.ge.f32.partialorder %v278, 0.0
  %vm340 = vcmp.ge.f32.partialorder %v283, 0.0
  %vm341 = vcmp.ge.f32.partialorder %v286, 0.0
  %vm342 = vcmp.ge.f32.partialorder %v291, 0.0
  %vm343 = vcmp.ge.f32.partialorder %v294, 0.0
  %vm344 = vcmp.ge.f32.partialorder %v299, 0.0
  %vm345 = vcmp.ge.f32.partialorder %v302, 0.0
  %vm346 = vcmp.ge.f32.partialorder %v307, 0.0
  %vm347 = vcmp.ge.f32.partialorder %v310, 0.0
  %vm348 = vcmp.ge.f32.partialorder %v315, 0.0
  %vm349 = vcmp.ge.f32.partialorder %v318, 0.0
  %vm350 = vcmp.ge.f32.partialorder %v323, 0.0
  %vm351 = vcmp.ge.f32.partialorder %v326, 0.0
  %vm352 = vcmp.ge.f32.partialorder %v331, 0.0
  %vm353 = vcmp.ge.f32.partialorder %v334, 0.0
  %v354 = vstv %s337
  %v355 = vmul.f32 %v354, %v275
  %v356 = vmul.f32 %v354, %v278
  %v357 = vmul.f32 %v354, %v283
  %v358 = vmul.f32 %v354, %v286
  %v359 = vmul.f32 %v354, %v291
  %v360 = vmul.f32 %v354, %v294
  %v361 = vmul.f32 %v354, %v299
  %v362 = vmul.f32 %v354, %v302
  %v363 = vmul.f32 %v354, %v307
  %v364 = vmul.f32 %v354, %v310
  %v365 = vmul.f32 %v354, %v315
  %v366 = vmul.f32 %v354, %v318
  %v367 = vmul.f32 %v354, %v323
  %v368 = vmul.f32 %v354, %v326
  %v369 = vmul.f32 %v354, %v331
  %v370 = vmul.f32 %v354, %v334
  %v371 = vsel %vm338, %v275, %v355
  %v372 = vsel %vm339, %v278, %v356
  %v373 = vsel %vm340, %v283, %v357
  %v374 = vsel %vm341, %v286, %v358
  %v375 = vsel %vm342, %v291, %v359
  %v376 = vsel %vm343, %v294, %v360
  %v377 = vsel %vm344, %v299, %v361
  %v378 = vsel %vm345, %v302, %v362
  %v379 = vsel %vm346, %v307, %v363
  %v380 = vsel %vm347, %v310, %v364
  %v381 = vsel %vm348, %v315, %v365
  %v382 = vsel %vm349, %v318, %v366
  %v383 = vsel %vm350, %v323, %v367
  %v384 = vsel %vm351, %v326, %v368
  %v385 = vsel %vm352, %v331, %v369
  %v386 = vsel %vm353, %v334, %v370
  %387 = vst [vmem:[%s3] sm:$0xff] %v371
  %388 = vst [vmem:[%s3 + $0x8] sm:$0xff] %v372
  %389 = vst [vmem:[%s3 + $0x10] sm:$0xff] %v373
  %390 = vst [vmem:[%s3 + $0x18] sm:$0xff] %v374
  %391 = vst [vmem:[%s3 + $0x20] sm:$0xff] %v375
  %392 = vst [vmem:[%s3 + $0x28] sm:$0xff] %v376
  %393 = vst [vmem:[%s3 + $0x30] sm:$0xff] %v377
  %394 = vst [vmem:[%s3 + $0x38] sm:$0xff] %v378
  %395 = vst [vmem:[%s3 + $0x40] sm:$0xff] %v379
  %396 = vst [vmem:[%s3 + $0x48] sm:$0xff] %v380
  %397 = vst [vmem:[%s3 + $0x50] sm:$0xff] %v381
  %398 = vst [vmem:[%s3 + $0x58] sm:$0xff] %v382
  %399 = vst [vmem:[%s3 + $0x60] sm:$0xff] %v383
  %400 = vst [vmem:[%s3 + $0x68] sm:$0xff] %v384
  %401 = vst [vmem:[%s3 + $0x70] sm:$0xff] %v385
  %402 = vst [vmem:[%s3 + $0x78] sm:$0xff] %v386
  // Predicated region
  $region14: #{discriminator_forward.7} parent=0 // pred_check
    _
  $region15: #{discriminator_forward.7} parent=0 // pred_check_branch
    %404 = sbr.rel (0) target = $region17
  $region16: #{discriminator_forward.7} parent=0 // pred_region
    _
  $region17: #{discriminator_forward.7} parent=0 // pred_fallthru
    _
  // Predicated region
  $region18: #{discriminator_forward.7} parent=0 // pred_check
    _
  $region19: #{discriminator_forward.7} parent=0 // pred_check_branch
    %406 = sbr.rel (0) target = $region21
  $region20: #{discriminator_forward.7} parent=0 // pred_region
    _
  $region21: #{discriminator_forward.7} parent=0 // pred_fallthru
    _

// kernel: discriminator_forward.8
$region0: #{discriminator_forward.8}
  #allocation0 [shape = 'u32[]', space=smem, size = 0x4, offset = 0x4, fixed_abs, tag = 'smem constant byte address 0x4 - core index']
  #allocation1 [shape = 'u32[144,128]{1,0:T(1,128)}', space=vmem, size = 0x12000, scoped, tag = 'internal scratch']
  #allocation2 [shape = 'f32[1]{0:T(128)S(6)}', space=smem, size = 0x200, scoped, tag = 'scoped memory for discriminator_forward.8']
  %s0 = inlined_call_operand.<no memory space> [shape: f32[1], index: 0, kind: input, shape index: {}]
  %s1 = inlined_call_operand.vmem [shape: bf16[32,512], index: 1, kind: input, shape index: {}]
  %s2 = inlined_call_operand.vmem [shape: bf16[512,128], index: 2, kind: input, shape index: {}]
  %s3 = inlined_call_operand.vmem [shape: f32[32,128], index: 3, kind: output, shape index: {}]
  %s4 = sld [smem:[#allocation0]]
  $region22: #{discriminator_forward.8} parent=0
    _
  %s6 = ssub.s32 1, %s4
  %s7 = scalar_select 0, %s6, %s4
  %8 = sst [smem:[#allocation2]] %s0
  // Predicated region
  $region2: #{discriminator_forward.8} parent=0 // pred_check
    _
  $region3: #{discriminator_forward.8} parent=0 // pred_check_branch
    %10 = sbr.rel (0) target = $region5
  $region4: #{discriminator_forward.8} parent=0 // pred_region
    _
  $region5: #{discriminator_forward.8} parent=0 // pred_fallthru
    _
  // Predicated region
  $region6: #{discriminator_forward.8} parent=0 // pred_check
    _
  $region7: #{discriminator_forward.8} parent=0 // pred_check_branch
    %12 = sbr.rel (0) target = $region9
  $region8: #{discriminator_forward.8} parent=0 // pred_region
    _
  $region9: #{discriminator_forward.8} parent=0 // pred_fallthru
    _
  // Predicated region
  $region10: #{discriminator_forward.8} parent=0 // pred_check
    _
  $region11: #{discriminator_forward.8} parent=0 // pred_check_branch
    %14 = sbr.rel (0) target = $region13
  $region12: #{discriminator_forward.8} parent=0 // pred_region
    _
  $region13: #{discriminator_forward.8} parent=0 // pred_fallthru
    _
  %v16 = vld [vmem:[%s1] sm:$0xff]
  %v17 = vld [vmem:[%s1 + $0x8] sm:$0xff]
  %v18 = vld [vmem:[%s1 + $0x10] sm:$0xff]
  %v19 = vld [vmem:[%s1 + $0x18] sm:$0xff]
  %v20 = vld [vmem:[%s1 + $0x20] sm:$0xff]
  %v21 = vld [vmem:[%s1 + $0x28] sm:$0xff]
  %v22 = vld [vmem:[%s1 + $0x30] sm:$0xff]
  %v23 = vld [vmem:[%s1 + $0x38] sm:$0xff]
  %v24 = vld [vmem:[%s2] sm:$0xf]
  %v25 = vld [vmem:[%s2 + $0x4] sm:$0xf]
  %v26 = vld [vmem:[%s2 + $0x8] sm:$0xf]
  %v27 = vld [vmem:[%s2 + $0xc] sm:$0xf]
  %v28 = vld [vmem:[%s2 + $0x10] sm:$0xf]
  %v29 = vld [vmem:[%s2 + $0x14] sm:$0xf]
  %v30 = vld [vmem:[%s2 + $0x18] sm:$0xf]
  %v31 = vld [vmem:[%s2 + $0x1c] sm:$0xf]
  %v32 = vld [vmem:[%s2 + $0x20] sm:$0xf]
  %v33 = vld [vmem:[%s2 + $0x24] sm:$0xf]
  %v34 = vld [vmem:[%s2 + $0x28] sm:$0xf]
  %v35 = vld [vmem:[%s2 + $0x2c] sm:$0xf]
  %v36 = vld [vmem:[%s2 + $0x30] sm:$0xf]
  %v37 = vld [vmem:[%s2 + $0x34] sm:$0xf]
  %v38 = vld [vmem:[%s2 + $0x38] sm:$0xf]
  %v39 = vld [vmem:[%s2 + $0x3c] sm:$0xf]
  %v40 = vld [vmem:[%s2 + $0x40] sm:$0xf]
  %v41 = vld [vmem:[%s2 + $0x44] sm:$0xf]
  %v42 = vld [vmem:[%s2 + $0x48] sm:$0xf]
  %v43 = vld [vmem:[%s2 + $0x4c] sm:$0xf]
  %v44 = vld [vmem:[%s2 + $0x50] sm:$0xf]
  %v45 = vld [vmem:[%s2 + $0x54] sm:$0xf]
  %v46 = vld [vmem:[%s2 + $0x58] sm:$0xf]
  %v47 = vld [vmem:[%s2 + $0x5c] sm:$0xf]
  %v48 = vld [vmem:[%s2 + $0x60] sm:$0xf]
  %v49 = vld [vmem:[%s2 + $0x64] sm:$0xf]
  %v50 = vld [vmem:[%s2 + $0x68] sm:$0xf]
  %v51 = vld [vmem:[%s2 + $0x6c] sm:$0xf]
  %v52 = vld [vmem:[%s2 + $0x70] sm:$0xf]
  %v53 = vld [vmem:[%s2 + $0x74] sm:$0xf]
  %v54 = vld [vmem:[%s2 + $0x78] sm:$0xf]
  %v55 = vld [vmem:[%s2 + $0x7c] sm:$0xf]
  %v56 = vld [vmem:[%s2 + $0x80] sm:$0xf]
  %v57 = vld [vmem:[%s2 + $0x84] sm:$0xf]
  %v58 = vld [vmem:[%s2 + $0x88] sm:$0xf]
  %v59 = vld [vmem:[%s2 + $0x8c] sm:$0xf]
  %v60 = vld [vmem:[%s2 + $0x90] sm:$0xf]
  %v61 = vld [vmem:[%s2 + $0x94] sm:$0xf]
  %v62 = vld [vmem:[%s2 + $0x98] sm:$0xf]
  %v63 = vld [vmem:[%s2 + $0x9c] sm:$0xf]
  %v64 = vld [vmem:[%s2 + $0xa0] sm:$0xf]
  %v65 = vld [vmem:[%s2 + $0xa4] sm:$0xf]
  %v66 = vld [vmem:[%s2 + $0xa8] sm:$0xf]
  %v67 = vld [vmem:[%s2 + $0xac] sm:$0xf]
  %v68 = vld [vmem:[%s2 + $0xb0] sm:$0xf]
  %v69 = vld [vmem:[%s2 + $0xb4] sm:$0xf]
  %v70 = vld [vmem:[%s2 + $0xb8] sm:$0xf]
  %v71 = vld [vmem:[%s2 + $0xbc] sm:$0xf]
  %v72 = vld [vmem:[%s2 + $0xc0] sm:$0xf]
  %v73 = vld [vmem:[%s2 + $0xc4] sm:$0xf]
  %v74 = vld [vmem:[%s2 + $0xc8] sm:$0xf]
  %v75 = vld [vmem:[%s2 + $0xcc] sm:$0xf]
  %v76 = vld [vmem:[%s2 + $0xd0] sm:$0xf]
  %v77 = vld [vmem:[%s2 + $0xd4] sm:$0xf]
  %v78 = vld [vmem:[%s2 + $0xd8] sm:$0xf]
  %v79 = vld [vmem:[%s2 + $0xdc] sm:$0xf]
  %v80 = vld [vmem:[%s2 + $0xe0] sm:$0xf]
  %v81 = vld [vmem:[%s2 + $0xe4] sm:$0xf]
  %v82 = vld [vmem:[%s2 + $0xe8] sm:$0xf]
  %v83 = vld [vmem:[%s2 + $0xec] sm:$0xf]
  %v84 = vld [vmem:[%s2 + $0xf0] sm:$0xf]
  %v85 = vld [vmem:[%s2 + $0xf4] sm:$0xf]
  %v86 = vld [vmem:[%s2 + $0xf8] sm:$0xf]
  %v87 = vld [vmem:[%s2 + $0xfc] sm:$0xf]
  %v96 = vunpack.c.l.b16 %v16
  %v97 = vunpack.c.h.b16 %v16
  %v98 = vunpack.c.l.b16 %v17
  %v99 = vunpack.c.h.b16 %v17
  %v100 = vunpack.c.l.b16 %v18
  %v101 = vunpack.c.h.b16 %v18
  %v102 = vunpack.c.l.b16 %v19
  %v103 = vunpack.c.h.b16 %v19
  %v104 = vunpack.c.l.b16 %v20
  %v105 = vunpack.c.h.b16 %v20
  %v106 = vunpack.c.l.b16 %v21
  %v107 = vunpack.c.h.b16 %v21
  %v108 = vunpack.c.l.b16 %v22
  %v109 = vunpack.c.h.b16 %v22
  %v110 = vunpack.c.l.b16 %v23
  %v111 = vunpack.c.h.b16 %v23
  %v112 = vpack.c.b16 %v100, %v96
  %v113 = vpack.c.b16 %v101, %v97
  %v114 = vpack.c.b16 %v102, %v98
  %v115 = vpack.c.b16 %v103, %v99
  %v116 = vpack.c.b16 %v108, %v104
  %v117 = vpack.c.b16 %v109, %v105
  %v118 = vpack.c.b16 %v110, %v106
  %v119 = vpack.c.b16 %v111, %v107
  %v192 = vunpack.c.l.b16 %v24
  %v193 = vunpack.c.l.b16 %v25
  %v194 = vunpack.c.l.b16 %v26
  %v195 = vunpack.c.l.b16 %v27
  %v196 = vunpack.c.l.b16 %v28
  %v197 = vunpack.c.l.b16 %v29
  %v198 = vunpack.c.l.b16 %v30
  %v199 = vunpack.c.l.b16 %v31
  %v200 = vunpack.c.l.b16 %v32
  %v201 = vunpack.c.l.b16 %v33
  %v202 = vunpack.c.l.b16 %v34
  %v203 = vunpack.c.l.b16 %v35
  %v204 = vunpack.c.l.b16 %v36
  %v205 = vunpack.c.l.b16 %v37
  %v206 = vunpack.c.l.b16 %v38
  %v207 = vunpack.c.l.b16 %v39
  %v208 = vunpack.c.l.b16 %v40
  %v209 = vunpack.c.l.b16 %v41
  %v210 = vunpack.c.l.b16 %v42
  %v211 = vunpack.c.l.b16 %v43
  %v212 = vunpack.c.l.b16 %v44
  %v213 = vunpack.c.l.b16 %v45
  %v214 = vunpack.c.l.b16 %v46
  %v215 = vunpack.c.l.b16 %v47
  %v216 = vunpack.c.l.b16 %v48
  %v217 = vunpack.c.l.b16 %v49
  %v218 = vunpack.c.l.b16 %v50
  %v219 = vunpack.c.l.b16 %v51
  %v220 = vunpack.c.l.b16 %v52
  %v221 = vunpack.c.l.b16 %v53
  %v222 = vunpack.c.l.b16 %v54
  %v223 = vunpack.c.l.b16 %v55
  %v224 = vunpack.c.l.b16 %v56
  %v225 = vunpack.c.l.b16 %v57
  %v226 = vunpack.c.l.b16 %v58
  %v227 = vunpack.c.l.b16 %v59
  %v228 = vunpack.c.l.b16 %v60
  %v229 = vunpack.c.l.b16 %v61
  %v230 = vunpack.c.l.b16 %v62
  %v231 = vunpack.c.l.b16 %v63
  %v232 = vunpack.c.l.b16 %v64
  %v233 = vunpack.c.l.b16 %v65
  %v234 = vunpack.c.l.b16 %v66
  %v235 = vunpack.c.l.b16 %v67
  %v236 = vunpack.c.l.b16 %v68
  %v237 = vunpack.c.l.b16 %v69
  %v238 = vunpack.c.l.b16 %v70
  %v239 = vunpack.c.l.b16 %v71
  %v240 = vunpack.c.l.b16 %v72
  %v241 = vunpack.c.l.b16 %v73
  %v242 = vunpack.c.l.b16 %v74
  %v243 = vunpack.c.l.b16 %v75
  %v244 = vunpack.c.l.b16 %v76
  %v245 = vunpack.c.l.b16 %v77
  %v246 = vunpack.c.l.b16 %v78
  %v247 = vunpack.c.l.b16 %v79
  %v248 = vunpack.c.l.b16 %v80
  %v249 = vunpack.c.l.b16 %v81
  %v250 = vunpack.c.l.b16 %v82
  %v251 = vunpack.c.l.b16 %v83
  %v252 = vunpack.c.l.b16 %v84
  %v253 = vunpack.c.l.b16 %v85
  %v254 = vunpack.c.l.b16 %v86
  %v255 = vunpack.c.l.b16 %v87
  %v256 = vpack.c.b16 %v193, %v192
  %v257 = vpack.c.b16 %v195, %v194
  %v258 = vpack.c.b16 %v197, %v196
  %v259 = vpack.c.b16 %v199, %v198
  %v260 = vpack.c.b16 %v201, %v200
  %v261 = vpack.c.b16 %v203, %v202
  %v262 = vpack.c.b16 %v205, %v204
  %v263 = vpack.c.b16 %v207, %v206
  %v264 = vpack.c.b16 %v209, %v208
  %v265 = vpack.c.b16 %v211, %v210
  %v266 = vpack.c.b16 %v213, %v212
  %v267 = vpack.c.b16 %v215, %v214
  %v268 = vpack.c.b16 %v217, %v216
  %v269 = vpack.c.b16 %v219, %v218
  %v270 = vpack.c.b16 %v221, %v220
  %v271 = vpack.c.b16 %v223, %v222
  %v272 = vpack.c.b16 %v225, %v224
  %v273 = vpack.c.b16 %v227, %v226
  %v274 = vpack.c.b16 %v229, %v228
  %v275 = vpack.c.b16 %v231, %v230
  %v276 = vpack.c.b16 %v233, %v232
  %v277 = vpack.c.b16 %v235, %v234
  %v278 = vpack.c.b16 %v237, %v236
  %v279 = vpack.c.b16 %v239, %v238
  %v280 = vpack.c.b16 %v241, %v240
  %v281 = vpack.c.b16 %v243, %v242
  %v282 = vpack.c.b16 %v245, %v244
  %v283 = vpack.c.b16 %v247, %v246
  %v284 = vpack.c.b16 %v249, %v248
  %v285 = vpack.c.b16 %v251, %v250
  %v286 = vpack.c.b16 %v253, %v252
  %v287 = vpack.c.b16 %v255, %v254
  %320 = vmatprep.subr.bf16.mxu0 0
  %321 = vmatpush1.bf16.msra.mxu0 %v263
  %322 = vmatprep.subr.bf16.mxu0 0
  %323 = vmatpush1.bf16.msra.mxu0 %v262
  %324 = vmatprep.subr.bf16.mxu0 0
  %325 = vmatpush1.bf16.msra.mxu0 %v261
  %326 = vmatprep.subr.bf16.mxu0 0
  %327 = vmatpush1.bf16.msra.mxu0 %v260
  %328 = vmatprep.subr.bf16.mxu0 0
  %329 = vmatpush1.bf16.msra.mxu0 %v259
  %330 = vmatprep.subr.bf16.mxu0 0
  %331 = vmatpush1.bf16.msra.mxu0 %v258
  %332 = vmatprep.subr.bf16.mxu0 0
  %333 = vmatpush1.bf16.msra.mxu0 %v257
  %334 = vmatprep.subr.bf16.mxu0 0
  %335 = vmatpush1.bf16.msra.mxu0 %v256
  %336 = vmatprep.subr.bf16.mxu0 0
  %337 = vmatpush2.bf16.msra.mxu0 %v271
  %338 = vmatprep.subr.bf16.mxu0 0
  %339 = vmatpush2.bf16.msra.mxu0 %v270
  %340 = vmatprep.subr.bf16.mxu0 0
  %341 = vmatpush2.bf16.msra.mxu0 %v269
  %342 = vmatprep.subr.bf16.mxu0 0
  %343 = vmatpush2.bf16.msra.mxu0 %v268
  %344 = vmatprep.subr.bf16.mxu0 0
  %345 = vmatpush2.bf16.msra.mxu0 %v267
  %346 = vmatprep.subr.bf16.mxu0 0
  %347 = vmatpush2.bf16.msra.mxu0 %v266
  %348 = vmatprep.subr.bf16.mxu0 0
  %349 = vmatpush2.bf16.msra.mxu0 %v265
  %350 = vmatprep.subr.bf16.mxu0 0
  %351 = vmatpush2.bf16.msra.mxu0 %v264
  %352 = vmatprep.mubr.bf16.mxu0 %v113
  %353 = vmatmul.mubr.bf16.gmra.mxu0 %v112
  %v354 = vpop.f32.mrf.mxu0
  %v355 = vadd.f32 0.0, %v354
  %v356 = vpop.f32.mrf.mxu0
  %v357 = vpop.f32.mrf.mxu0
  %v358 = vadd.f32 0.0, %v357
  %v359 = vpop.f32.mrf.mxu0
  %360 = vmatprep.mubr.bf16.mxu0 %v117
  %361 = vmatmul.mubr.bf16.gmra.mxu0 %v116
  %v362 = vpop.f32.mrf.mxu0
  %v363 = vadd.f32 0.0, %v362
  %v364 = vpop.f32.mrf.mxu0
  %v365 = vpop.f32.mrf.mxu0
  %v366 = vadd.f32 0.0, %v365
  %v367 = vpop.f32.mrf.mxu0
  %368 = vdwg.mxu0
  %369 = vmatprep.subr.bf16.mxu0 0
  %370 = vmatpush1.bf16.msra.mxu0 %v279
  %371 = vmatprep.subr.bf16.mxu0 0
  %372 = vmatpush1.bf16.msra.mxu0 %v278
  %373 = vmatprep.subr.bf16.mxu0 0
  %374 = vmatpush1.bf16.msra.mxu0 %v277
  %375 = vmatprep.subr.bf16.mxu0 0
  %376 = vmatpush1.bf16.msra.mxu0 %v276
  %377 = vmatprep.subr.bf16.mxu0 0
  %378 = vmatpush1.bf16.msra.mxu0 %v275
  %379 = vmatprep.subr.bf16.mxu0 0
  %380 = vmatpush1.bf16.msra.mxu0 %v274
  %381 = vmatprep.subr.bf16.mxu0 0
  %382 = vmatpush1.bf16.msra.mxu0 %v273
  %383 = vmatprep.subr.bf16.mxu0 0
  %384 = vmatpush1.bf16.msra.mxu0 %v272
  %385 = vmatprep.subr.bf16.mxu0 0
  %386 = vmatpush2.bf16.msra.mxu0 %v287
  %387 = vmatprep.subr.bf16.mxu0 0
  %388 = vmatpush2.bf16.msra.mxu0 %v286
  %389 = vmatprep.subr.bf16.mxu0 0
  %390 = vmatpush2.bf16.msra.mxu0 %v285
  %391 = vmatprep.subr.bf16.mxu0 0
  %392 = vmatpush2.bf16.msra.mxu0 %v284
  %393 = vmatprep.subr.bf16.mxu0 0
  %394 = vmatpush2.bf16.msra.mxu0 %v283
  %395 = vmatprep.subr.bf16.mxu0 0
  %396 = vmatpush2.bf16.msra.mxu0 %v282
  %397 = vmatprep.subr.bf16.mxu0 0
  %398 = vmatpush2.bf16.msra.mxu0 %v281
  %399 = vmatprep.subr.bf16.mxu0 0
  %400 = vmatpush2.bf16.msra.mxu0 %v280
  %401 = vmatprep.mubr.bf16.mxu0 %v115
  %402 = vmatmul.mubr.bf16.gmra.mxu0 %v114
  %v403 = vpop.f32.mrf.mxu0
  %v404 = vadd.f32 %v355, %v403
  %v405 = vpop.f32.mrf.mxu0
  %v406 = vpop.f32.mrf.mxu0
  %v407 = vadd.f32 %v358, %v406
  %v408 = vpop.f32.mrf.mxu0
  %409 = vmatprep.mubr.bf16.mxu0 %v119
  %410 = vmatmul.mubr.bf16.gmra.mxu0 %v118
  %v411 = vpop.f32.mrf.mxu0
  %v412 = vadd.f32 %v363, %v411
  %v413 = vpop.f32.mrf.mxu0
  %v414 = vpop.f32.mrf.mxu0
  %v415 = vadd.f32 %v366, %v414
  %v416 = vpop.f32.mrf.mxu0
  %417 = vdwg.mxu0
  %s418 = sld [smem:[#allocation2]]
  %vm419 = vcmp.ge.f32.partialorder %v404, 0.0
  %vm420 = vcmp.ge.f32.partialorder %v407, 0.0
  %vm421 = vcmp.ge.f32.partialorder %v412, 0.0
  %vm422 = vcmp.ge.f32.partialorder %v415, 0.0
  %v423 = vstv %s418
  %v424 = vmul.f32 %v423, %v404
  %v425 = vmul.f32 %v423, %v407
  %v426 = vmul.f32 %v423, %v412
  %v427 = vmul.f32 %v423, %v415
  %v428 = vsel %vm419, %v404, %v424
  %v429 = vsel %vm420, %v407, %v425
  %v430 = vsel %vm421, %v412, %v426
  %v431 = vsel %vm422, %v415, %v427
  %432 = vst [vmem:[%s3] sm:$0xff] %v428
  %433 = vst [vmem:[%s3 + $0x8] sm:$0xff] %v429
  %434 = vst [vmem:[%s3 + $0x10] sm:$0xff] %v430
  %435 = vst [vmem:[%s3 + $0x18] sm:$0xff] %v431
  // Predicated region
  $region14: #{discriminator_forward.8} parent=0 // pred_check
    _
  $region15: #{discriminator_forward.8} parent=0 // pred_check_branch
    %437 = sbr.rel (0) target = $region17
  $region16: #{discriminator_forward.8} parent=0 // pred_region
    _
  $region17: #{discriminator_forward.8} parent=0 // pred_fallthru
    _
  // Predicated region
  $region18: #{discriminator_forward.8} parent=0 // pred_check
    _
  $region19: #{discriminator_forward.8} parent=0 // pred_check_branch
    %439 = sbr.rel (0) target = $region21
  $region20: #{discriminator_forward.8} parent=0 // pred_region
    _
  $region21: #{discriminator_forward.8} parent=0 // pred_fallthru
    _

// kernel: discriminator_forward.9
$region0: #{discriminator_forward.9}
  #allocation0 [shape = 'u32[]', space=smem, size = 0x4, offset = 0x4, fixed_abs, tag = 'smem constant byte address 0x4 - core index']
  #allocation1 [shape = 'u32[144,128]{1,0:T(1,128)}', space=vmem, size = 0x12000, scoped, tag = 'internal scratch']
  #allocation2 [shape = 'f32[1]{0:T(128)S(6)}', space=smem, size = 0x200, scoped, tag = 'scoped memory for discriminator_forward.9']
  %s0 = inlined_call_operand.<no memory space> [shape: f32[1], index: 0, kind: input, shape index: {}]
  %s1 = inlined_call_operand.vmem [shape: bf16[8,1024], index: 1, kind: input, shape index: {}]
  %s2 = inlined_call_operand.vmem [shape: bf16[1024,128], index: 2, kind: input, shape index: {}]
  %s3 = inlined_call_operand.vmem [shape: f32[8,128], index: 3, kind: output, shape index: {}]
  %s4 = sld [smem:[#allocation0]]
  $region22: #{discriminator_forward.9} parent=0
    _
  %s6 = ssub.s32 1, %s4
  %s7 = scalar_select 0, %s6, %s4
  %8 = sst [smem:[#allocation2]] %s0
  // Predicated region
  $region2: #{discriminator_forward.9} parent=0 // pred_check
    _
  $region3: #{discriminator_forward.9} parent=0 // pred_check_branch
    %10 = sbr.rel (0) target = $region5
  $region4: #{discriminator_forward.9} parent=0 // pred_region
    _
  $region5: #{discriminator_forward.9} parent=0 // pred_fallthru
    _
  // Predicated region
  $region6: #{discriminator_forward.9} parent=0 // pred_check
    _
  $region7: #{discriminator_forward.9} parent=0 // pred_check_branch
    %12 = sbr.rel (0) target = $region9
  $region8: #{discriminator_forward.9} parent=0 // pred_region
    _
  $region9: #{discriminator_forward.9} parent=0 // pred_fallthru
    _
  // Predicated region
  $region10: #{discriminator_forward.9} parent=0 // pred_check
    _
  $region11: #{discriminator_forward.9} parent=0 // pred_check_branch
    %14 = sbr.rel (0) target = $region13
  $region12: #{discriminator_forward.9} parent=0 // pred_region
    _
  $region13: #{discriminator_forward.9} parent=0 // pred_fallthru
    _
  %v16 = vld [vmem:[%s1] sm:$0xff]
  %v17 = vld [vmem:[%s1 + $0x8] sm:$0xff]
  %v18 = vld [vmem:[%s1 + $0x10] sm:$0xff]
  %v19 = vld [vmem:[%s1 + $0x18] sm:$0xff]
  %v20 = vld [vmem:[%s2] sm:$0xf]
  %v21 = vld [vmem:[%s2 + $0x4] sm:$0xf]
  %v22 = vld [vmem:[%s2 + $0x8] sm:$0xf]
  %v23 = vld [vmem:[%s2 + $0xc] sm:$0xf]
  %v24 = vld [vmem:[%s2 + $0x10] sm:$0xf]
  %v25 = vld [vmem:[%s2 + $0x14] sm:$0xf]
  %v26 = vld [vmem:[%s2 + $0x18] sm:$0xf]
  %v27 = vld [vmem:[%s2 + $0x1c] sm:$0xf]
  %v28 = vld [vmem:[%s2 + $0x20] sm:$0xf]
  %v29 = vld [vmem:[%s2 + $0x24] sm:$0xf]
  %v30 = vld [vmem:[%s2 + $0x28] sm:$0xf]
  %v31 = vld [vmem:[%s2 + $0x2c] sm:$0xf]
  %v32 = vld [vmem:[%s2 + $0x30] sm:$0xf]
  %v33 = vld [vmem:[%s2 + $0x34] sm:$0xf]
  %v34 = vld [vmem:[%s2 + $0x38] sm:$0xf]
  %v35 = vld [vmem:[%s2 + $0x3c] sm:$0xf]
  %v36 = vld [vmem:[%s2 + $0x40] sm:$0xf]
  %v37 = vld [vmem:[%s2 + $0x44] sm:$0xf]
  %v38 = vld [vmem:[%s2 + $0x48] sm:$0xf]
  %v39 = vld [vmem:[%s2 + $0x4c] sm:$0xf]
  %v40 = vld [vmem:[%s2 + $0x50] sm:$0xf]
  %v41 = vld [vmem:[%s2 + $0x54] sm:$0xf]
  %v42 = vld [vmem:[%s2 + $0x58] sm:$0xf]
  %v43 = vld [vmem:[%s2 + $0x5c] sm:$0xf]
  %v44 = vld [vmem:[%s2 + $0x60] sm:$0xf]
  %v45 = vld [vmem:[%s2 + $0x64] sm:$0xf]
  %v46 = vld [vmem:[%s2 + $0x68] sm:$0xf]
  %v47 = vld [vmem:[%s2 + $0x6c] sm:$0xf]
  %v48 = vld [vmem:[%s2 + $0x70] sm:$0xf]
  %v49 = vld [vmem:[%s2 + $0x74] sm:$0xf]
  %v50 = vld [vmem:[%s2 + $0x78] sm:$0xf]
  %v51 = vld [vmem:[%s2 + $0x7c] sm:$0xf]
  %v52 = vld [vmem:[%s2 + $0x80] sm:$0xf]
  %v53 = vld [vmem:[%s2 + $0x84] sm:$0xf]
  %v54 = vld [vmem:[%s2 + $0x88] sm:$0xf]
  %v55 = vld [vmem:[%s2 + $0x8c] sm:$0xf]
  %v56 = vld [vmem:[%s2 + $0x90] sm:$0xf]
  %v57 = vld [vmem:[%s2 + $0x94] sm:$0xf]
  %v58 = vld [vmem:[%s2 + $0x98] sm:$0xf]
  %v59 = vld [vmem:[%s2 + $0x9c] sm:$0xf]
  %v60 = vld [vmem:[%s2 + $0xa0] sm:$0xf]
  %v61 = vld [vmem:[%s2 + $0xa4] sm:$0xf]
  %v62 = vld [vmem:[%s2 + $0xa8] sm:$0xf]
  %v63 = vld [vmem:[%s2 + $0xac] sm:$0xf]
  %v64 = vld [vmem:[%s2 + $0xb0] sm:$0xf]
  %v65 = vld [vmem:[%s2 + $0xb4] sm:$0xf]
  %v66 = vld [vmem:[%s2 + $0xb8] sm:$0xf]
  %v67 = vld [vmem:[%s2 + $0xbc] sm:$0xf]
  %v68 = vld [vmem:[%s2 + $0xc0] sm:$0xf]
  %v69 = vld [vmem:[%s2 + $0xc4] sm:$0xf]
  %v70 = vld [vmem:[%s2 + $0xc8] sm:$0xf]
  %v71 = vld [vmem:[%s2 + $0xcc] sm:$0xf]
  %v72 = vld [vmem:[%s2 + $0xd0] sm:$0xf]
  %v73 = vld [vmem:[%s2 + $0xd4] sm:$0xf]
  %v74 = vld [vmem:[%s2 + $0xd8] sm:$0xf]
  %v75 = vld [vmem:[%s2 + $0xdc] sm:$0xf]
  %v76 = vld [vmem:[%s2 + $0xe0] sm:$0xf]
  %v77 = vld [vmem:[%s2 + $0xe4] sm:$0xf]
  %v78 = vld [vmem:[%s2 + $0xe8] sm:$0xf]
  %v79 = vld [vmem:[%s2 + $0xec] sm:$0xf]
  %v80 = vld [vmem:[%s2 + $0xf0] sm:$0xf]
  %v81 = vld [vmem:[%s2 + $0xf4] sm:$0xf]
  %v82 = vld [vmem:[%s2 + $0xf8] sm:$0xf]
  %v83 = vld [vmem:[%s2 + $0xfc] sm:$0xf]
  %v84 = vld [vmem:[%s2 + $0x100] sm:$0xf]
  %v85 = vld [vmem:[%s2 + $0x104] sm:$0xf]
  %v86 = vld [vmem:[%s2 + $0x108] sm:$0xf]
  %v87 = vld [vmem:[%s2 + $0x10c] sm:$0xf]
  %v88 = vld [vmem:[%s2 + $0x110] sm:$0xf]
  %v89 = vld [vmem:[%s2 + $0x114] sm:$0xf]
  %v90 = vld [vmem:[%s2 + $0x118] sm:$0xf]
  %v91 = vld [vmem:[%s2 + $0x11c] sm:$0xf]
  %v92 = vld [vmem:[%s2 + $0x120] sm:$0xf]
  %v93 = vld [vmem:[%s2 + $0x124] sm:$0xf]
  %v94 = vld [vmem:[%s2 + $0x128] sm:$0xf]
  %v95 = vld [vmem:[%s2 + $0x12c] sm:$0xf]
  %v96 = vld [vmem:[%s2 + $0x130] sm:$0xf]
  %v97 = vld [vmem:[%s2 + $0x134] sm:$0xf]
  %v98 = vld [vmem:[%s2 + $0x138] sm:$0xf]
  %v99 = vld [vmem:[%s2 + $0x13c] sm:$0xf]
  %v100 = vld [vmem:[%s2 + $0x140] sm:$0xf]
  %v101 = vld [vmem:[%s2 + $0x144] sm:$0xf]
  %v102 = vld [vmem:[%s2 + $0x148] sm:$0xf]
  %v103 = vld [vmem:[%s2 + $0x14c] sm:$0xf]
  %v104 = vld [vmem:[%s2 + $0x150] sm:$0xf]
  %v105 = vld [vmem:[%s2 + $0x154] sm:$0xf]
  %v106 = vld [vmem:[%s2 + $0x158] sm:$0xf]
  %v107 = vld [vmem:[%s2 + $0x15c] sm:$0xf]
  %v108 = vld [vmem:[%s2 + $0x160] sm:$0xf]
  %v109 = vld [vmem:[%s2 + $0x164] sm:$0xf]
  %v110 = vld [vmem:[%s2 + $0x168] sm:$0xf]
  %v111 = vld [vmem:[%s2 + $0x16c] sm:$0xf]
  %v112 = vld [vmem:[%s2 + $0x170] sm:$0xf]
  %v113 = vld [vmem:[%s2 + $0x174] sm:$0xf]
  %v114 = vld [vmem:[%s2 + $0x178] sm:$0xf]
  %v115 = vld [vmem:[%s2 + $0x17c] sm:$0xf]
  %v116 = vld [vmem:[%s2 + $0x180] sm:$0xf]
  %v117 = vld [vmem:[%s2 + $0x184] sm:$0xf]
  %v118 = vld [vmem:[%s2 + $0x188] sm:$0xf]
  %v119 = vld [vmem:[%s2 + $0x18c] sm:$0xf]
  %v120 = vld [vmem:[%s2 + $0x190] sm:$0xf]
  %v121 = vld [vmem:[%s2 + $0x194] sm:$0xf]
  %v122 = vld [vmem:[%s2 + $0x198] sm:$0xf]
  %v123 = vld [vmem:[%s2 + $0x19c] sm:$0xf]
  %v124 = vld [vmem:[%s2 + $0x1a0] sm:$0xf]
  %v125 = vld [vmem:[%s2 + $0x1a4] sm:$0xf]
  %v126 = vld [vmem:[%s2 + $0x1a8] sm:$0xf]
  %v127 = vld [vmem:[%s2 + $0x1ac] sm:$0xf]
  %v128 = vld [vmem:[%s2 + $0x1b0] sm:$0xf]
  %v129 = vld [vmem:[%s2 + $0x1b4] sm:$0xf]
  %v130 = vld [vmem:[%s2 + $0x1b8] sm:$0xf]
  %v131 = vld [vmem:[%s2 + $0x1bc] sm:$0xf]
  %v132 = vld [vmem:[%s2 + $0x1c0] sm:$0xf]
  %v133 = vld [vmem:[%s2 + $0x1c4] sm:$0xf]
  %v134 = vld [vmem:[%s2 + $0x1c8] sm:$0xf]
  %v135 = vld [vmem:[%s2 + $0x1cc] sm:$0xf]
  %v136 = vld [vmem:[%s2 + $0x1d0] sm:$0xf]
  %v137 = vld [vmem:[%s2 + $0x1d4] sm:$0xf]
  %v138 = vld [vmem:[%s2 + $0x1d8] sm:$0xf]
  %v139 = vld [vmem:[%s2 + $0x1dc] sm:$0xf]
  %v140 = vld [vmem:[%s2 + $0x1e0] sm:$0xf]
  %v141 = vld [vmem:[%s2 + $0x1e4] sm:$0xf]
  %v142 = vld [vmem:[%s2 + $0x1e8] sm:$0xf]
  %v143 = vld [vmem:[%s2 + $0x1ec] sm:$0xf]
  %v144 = vld [vmem:[%s2 + $0x1f0] sm:$0xf]
  %v145 = vld [vmem:[%s2 + $0x1f4] sm:$0xf]
  %v146 = vld [vmem:[%s2 + $0x1f8] sm:$0xf]
  %v147 = vld [vmem:[%s2 + $0x1fc] sm:$0xf]
  %v152 = vunpack.c.l.b16 %v16
  %v153 = vunpack.c.h.b16 %v16
  %v154 = vunpack.c.l.b16 %v17
  %v155 = vunpack.c.h.b16 %v17
  %v156 = vunpack.c.l.b16 %v18
  %v157 = vunpack.c.h.b16 %v18
  %v158 = vunpack.c.l.b16 %v19
  %v159 = vunpack.c.h.b16 %v19
  %v160 = vpack.c.b16 %v152, %v152
  %v161 = vpack.c.b16 %v153, %v153
  %v162 = vpack.c.b16 %v154, %v154
  %v163 = vpack.c.b16 %v155, %v155
  %v164 = vpack.c.b16 %v156, %v156
  %v165 = vpack.c.b16 %v157, %v157
  %v166 = vpack.c.b16 %v158, %v158
  %v167 = vpack.c.b16 %v159, %v159
  %v304 = vunpack.c.l.b16 %v20
  %v305 = vunpack.c.l.b16 %v21
  %v306 = vunpack.c.l.b16 %v22
  %v307 = vunpack.c.l.b16 %v23
  %v308 = vunpack.c.l.b16 %v24
  %v309 = vunpack.c.l.b16 %v25
  %v310 = vunpack.c.l.b16 %v26
  %v311 = vunpack.c.l.b16 %v27
  %v312 = vunpack.c.l.b16 %v28
  %v313 = vunpack.c.l.b16 %v29
  %v314 = vunpack.c.l.b16 %v30
  %v315 = vunpack.c.l.b16 %v31
  %v316 = vunpack.c.l.b16 %v32
  %v317 = vunpack.c.l.b16 %v33
  %v318 = vunpack.c.l.b16 %v34
  %v319 = vunpack.c.l.b16 %v35
  %v320 = vunpack.c.l.b16 %v36
  %v321 = vunpack.c.l.b16 %v37
  %v322 = vunpack.c.l.b16 %v38
  %v323 = vunpack.c.l.b16 %v39
  %v324 = vunpack.c.l.b16 %v40
  %v325 = vunpack.c.l.b16 %v41
  %v326 = vunpack.c.l.b16 %v42
  %v327 = vunpack.c.l.b16 %v43
  %v328 = vunpack.c.l.b16 %v44
  %v329 = vunpack.c.l.b16 %v45
  %v330 = vunpack.c.l.b16 %v46
  %v331 = vunpack.c.l.b16 %v47
  %v332 = vunpack.c.l.b16 %v48
  %v333 = vunpack.c.l.b16 %v49
  %v334 = vunpack.c.l.b16 %v50
  %v335 = vunpack.c.l.b16 %v51
  %v336 = vunpack.c.l.b16 %v52
  %v337 = vunpack.c.l.b16 %v53
  %v338 = vunpack.c.l.b16 %v54
  %v339 = vunpack.c.l.b16 %v55
  %v340 = vunpack.c.l.b16 %v56
  %v341 = vunpack.c.l.b16 %v57
  %v342 = vunpack.c.l.b16 %v58
  %v343 = vunpack.c.l.b16 %v59
  %v344 = vunpack.c.l.b16 %v60
  %v345 = vunpack.c.l.b16 %v61
  %v346 = vunpack.c.l.b16 %v62
  %v347 = vunpack.c.l.b16 %v63
  %v348 = vunpack.c.l.b16 %v64
  %v349 = vunpack.c.l.b16 %v65
  %v350 = vunpack.c.l.b16 %v66
  %v351 = vunpack.c.l.b16 %v67
  %v352 = vunpack.c.l.b16 %v68
  %v353 = vunpack.c.l.b16 %v69
  %v354 = vunpack.c.l.b16 %v70
  %v355 = vunpack.c.l.b16 %v71
  %v356 = vunpack.c.l.b16 %v72
  %v357 = vunpack.c.l.b16 %v73
  %v358 = vunpack.c.l.b16 %v74
  %v359 = vunpack.c.l.b16 %v75
  %v360 = vunpack.c.l.b16 %v76
  %v361 = vunpack.c.l.b16 %v77
  %v362 = vunpack.c.l.b16 %v78
  %v363 = vunpack.c.l.b16 %v79
  %v364 = vunpack.c.l.b16 %v80
  %v365 = vunpack.c.l.b16 %v81
  %v366 = vunpack.c.l.b16 %v82
  %v367 = vunpack.c.l.b16 %v83
  %v368 = vunpack.c.l.b16 %v84
  %v369 = vunpack.c.l.b16 %v85
  %v370 = vunpack.c.l.b16 %v86
  %v371 = vunpack.c.l.b16 %v87
  %v372 = vunpack.c.l.b16 %v88
  %v373 = vunpack.c.l.b16 %v89
  %v374 = vunpack.c.l.b16 %v90
  %v375 = vunpack.c.l.b16 %v91
  %v376 = vunpack.c.l.b16 %v92
  %v377 = vunpack.c.l.b16 %v93
  %v378 = vunpack.c.l.b16 %v94
  %v379 = vunpack.c.l.b16 %v95
  %v380 = vunpack.c.l.b16 %v96
  %v381 = vunpack.c.l.b16 %v97
  %v382 = vunpack.c.l.b16 %v98
  %v383 = vunpack.c.l.b16 %v99
  %v384 = vunpack.c.l.b16 %v100
  %v385 = vunpack.c.l.b16 %v101
  %v386 = vunpack.c.l.b16 %v102
  %v387 = vunpack.c.l.b16 %v103
  %v388 = vunpack.c.l.b16 %v104
  %v389 = vunpack.c.l.b16 %v105
  %v390 = vunpack.c.l.b16 %v106
  %v391 = vunpack.c.l.b16 %v107
  %v392 = vunpack.c.l.b16 %v108
  %v393 = vunpack.c.l.b16 %v109
  %v394 = vunpack.c.l.b16 %v110
  %v395 = vunpack.c.l.b16 %v111
  %v396 = vunpack.c.l.b16 %v112
  %v397 = vunpack.c.l.b16 %v113
  %v398 = vunpack.c.l.b16 %v114
  %v399 = vunpack.c.l.b16 %v115
  %v400 = vunpack.c.l.b16 %v116
  %v401 = vunpack.c.l.b16 %v117
  %v402 = vunpack.c.l.b16 %v118
  %v403 = vunpack.c.l.b16 %v119
  %v404 = vunpack.c.l.b16 %v120
  %v405 = vunpack.c.l.b16 %v121
  %v406 = vunpack.c.l.b16 %v122
  %v407 = vunpack.c.l.b16 %v123
  %v408 = vunpack.c.l.b16 %v124
  %v409 = vunpack.c.l.b16 %v125
  %v410 = vunpack.c.l.b16 %v126
  %v411 = vunpack.c.l.b16 %v127
  %v412 = vunpack.c.l.b16 %v128
  %v413 = vunpack.c.l.b16 %v129
  %v414 = vunpack.c.l.b16 %v130
  %v415 = vunpack.c.l.b16 %v131
  %v416 = vunpack.c.l.b16 %v132
  %v417 = vunpack.c.l.b16 %v133
  %v418 = vunpack.c.l.b16 %v134
  %v419 = vunpack.c.l.b16 %v135
  %v420 = vunpack.c.l.b16 %v136
  %v421 = vunpack.c.l.b16 %v137
  %v422 = vunpack.c.l.b16 %v138
  %v423 = vunpack.c.l.b16 %v139
  %v424 = vunpack.c.l.b16 %v140
  %v425 = vunpack.c.l.b16 %v141
  %v426 = vunpack.c.l.b16 %v142
  %v427 = vunpack.c.l.b16 %v143
  %v428 = vunpack.c.l.b16 %v144
  %v429 = vunpack.c.l.b16 %v145
  %v430 = vunpack.c.l.b16 %v146
  %v431 = vunpack.c.l.b16 %v147
  %v432 = vpack.c.b16 %v305, %v304
  %v433 = vpack.c.b16 %v307, %v306
  %v434 = vpack.c.b16 %v309, %v308
  %v435 = vpack.c.b16 %v311, %v310
  %v436 = vpack.c.b16 %v313, %v312
  %v437 = vpack.c.b16 %v315, %v314
  %v438 = vpack.c.b16 %v317, %v316
  %v439 = vpack.c.b16 %v319, %v318
  %v440 = vpack.c.b16 %v321, %v320
  %v441 = vpack.c.b16 %v323, %v322
  %v442 = vpack.c.b16 %v325, %v324
  %v443 = vpack.c.b16 %v327, %v326
  %v444 = vpack.c.b16 %v329, %v328
  %v445 = vpack.c.b16 %v331, %v330
  %v446 = vpack.c.b16 %v333, %v332
  %v447 = vpack.c.b16 %v335, %v334
  %v448 = vpack.c.b16 %v337, %v336
  %v449 = vpack.c.b16 %v339, %v338
  %v450 = vpack.c.b16 %v341, %v340
  %v451 = vpack.c.b16 %v343, %v342
  %v452 = vpack.c.b16 %v345, %v344
  %v453 = vpack.c.b16 %v347, %v346
  %v454 = vpack.c.b16 %v349, %v348
  %v455 = vpack.c.b16 %v351, %v350
  %v456 = vpack.c.b16 %v353, %v352
  %v457 = vpack.c.b16 %v355, %v354
  %v458 = vpack.c.b16 %v357, %v356
  %v459 = vpack.c.b16 %v359, %v358
  %v460 = vpack.c.b16 %v361, %v360
  %v461 = vpack.c.b16 %v363, %v362
  %v462 = vpack.c.b16 %v365, %v364
  %v463 = vpack.c.b16 %v367, %v366
  %v464 = vpack.c.b16 %v369, %v368
  %v465 = vpack.c.b16 %v371, %v370
  %v466 = vpack.c.b16 %v373, %v372
  %v467 = vpack.c.b16 %v375, %v374
  %v468 = vpack.c.b16 %v377, %v376
  %v469 = vpack.c.b16 %v379, %v378
  %v470 = vpack.c.b16 %v381, %v380
  %v471 = vpack.c.b16 %v383, %v382
  %v472 = vpack.c.b16 %v385, %v384
  %v473 = vpack.c.b16 %v387, %v386
  %v474 = vpack.c.b16 %v389, %v388
  %v475 = vpack.c.b16 %v391, %v390
  %v476 = vpack.c.b16 %v393, %v392
  %v477 = vpack.c.b16 %v395, %v394
  %v478 = vpack.c.b16 %v397, %v396
  %v479 = vpack.c.b16 %v399, %v398
  %v480 = vpack.c.b16 %v401, %v400
  %v481 = vpack.c.b16 %v403, %v402
  %v482 = vpack.c.b16 %v405, %v404
  %v483 = vpack.c.b16 %v407, %v406
  %v484 = vpack.c.b16 %v409, %v408
  %v485 = vpack.c.b16 %v411, %v410
  %v486 = vpack.c.b16 %v413, %v412
  %v487 = vpack.c.b16 %v415, %v414
  %v488 = vpack.c.b16 %v417, %v416
  %v489 = vpack.c.b16 %v419, %v418
  %v490 = vpack.c.b16 %v421, %v420
  %v491 = vpack.c.b16 %v423, %v422
  %v492 = vpack.c.b16 %v425, %v424
  %v493 = vpack.c.b16 %v427, %v426
  %v494 = vpack.c.b16 %v429, %v428
  %v495 = vpack.c.b16 %v431, %v430
  %560 = vmatprep.subr.bf16.mxu0 0
  %561 = vmatpush1.bf16.msra.mxu0 %v439
  %562 = vmatprep.subr.bf16.mxu0 0
  %563 = vmatpush1.bf16.msra.mxu0 %v438
  %564 = vmatprep.subr.bf16.mxu0 0
  %565 = vmatpush1.bf16.msra.mxu0 %v437
  %566 = vmatprep.subr.bf16.mxu0 0
  %567 = vmatpush1.bf16.msra.mxu0 %v436
  %568 = vmatprep.subr.bf16.mxu0 0
  %569 = vmatpush1.bf16.msra.mxu0 %v435
  %570 = vmatprep.subr.bf16.mxu0 0
  %571 = vmatpush1.bf16.msra.mxu0 %v434
  %572 = vmatprep.subr.bf16.mxu0 0
  %573 = vmatpush1.bf16.msra.mxu0 %v433
  %574 = vmatprep.subr.bf16.mxu0 0
  %575 = vmatpush1.bf16.msra.mxu0 %v432
  %576 = vmatprep.subr.bf16.mxu0 0
  %577 = vmatpush2.bf16.msra.mxu0 %v447
  %578 = vmatprep.subr.bf16.mxu0 0
  %579 = vmatpush2.bf16.msra.mxu0 %v446
  %580 = vmatprep.subr.bf16.mxu0 0
  %581 = vmatpush2.bf16.msra.mxu0 %v445
  %582 = vmatprep.subr.bf16.mxu0 0
  %583 = vmatpush2.bf16.msra.mxu0 %v444
  %584 = vmatprep.subr.bf16.mxu0 0
  %585 = vmatpush2.bf16.msra.mxu0 %v443
  %586 = vmatprep.subr.bf16.mxu0 0
  %587 = vmatpush2.bf16.msra.mxu0 %v442
  %588 = vmatprep.subr.bf16.mxu0 0
  %589 = vmatpush2.bf16.msra.mxu0 %v441
  %590 = vmatprep.subr.bf16.mxu0 0
  %591 = vmatpush2.bf16.msra.mxu0 %v440
  %592 = vmatprep.mubr.bf16.mxu0 %v161
  %593 = vmatmul.mubr.bf16.gmra.mxu0 %v160
  %v594 = vpop.f32.mrf.mxu0
  %v595 = vadd.f32 0.0, %v594
  %v596 = vpop.f32.mrf.mxu0
  %v597 = vpop.f32.mrf.mxu0
  %v598 = vpop.f32.mrf.mxu0
  %599 = vdwg.mxu0
  %600 = vmatprep.subr.bf16.mxu0 0
  %601 = vmatpush1.bf16.msra.mxu0 %v455
  %602 = vmatprep.subr.bf16.mxu0 0
  %603 = vmatpush1.bf16.msra.mxu0 %v454
  %604 = vmatprep.subr.bf16.mxu0 0
  %605 = vmatpush1.bf16.msra.mxu0 %v453
  %606 = vmatprep.subr.bf16.mxu0 0
  %607 = vmatpush1.bf16.msra.mxu0 %v452
  %608 = vmatprep.subr.bf16.mxu0 0
  %609 = vmatpush1.bf16.msra.mxu0 %v451
  %610 = vmatprep.subr.bf16.mxu0 0
  %611 = vmatpush1.bf16.msra.mxu0 %v450
  %612 = vmatprep.subr.bf16.mxu0 0
  %613 = vmatpush1.bf16.msra.mxu0 %v449
  %614 = vmatprep.subr.bf16.mxu0 0
  %615 = vmatpush1.bf16.msra.mxu0 %v448
  %616 = vmatprep.subr.bf16.mxu0 0
  %617 = vmatpush2.bf16.msra.mxu0 %v463
  %618 = vmatprep.subr.bf16.mxu0 0
  %619 = vmatpush2.bf16.msra.mxu0 %v462
  %620 = vmatprep.subr.bf16.mxu0 0
  %621 = vmatpush2.bf16.msra.mxu0 %v461
  %622 = vmatprep.subr.bf16.mxu0 0
  %623 = vmatpush2.bf16.msra.mxu0 %v460
  %624 = vmatprep.subr.bf16.mxu0 0
  %625 = vmatpush2.bf16.msra.mxu0 %v459
  %626 = vmatprep.subr.bf16.mxu0 0
  %627 = vmatpush2.bf16.msra.mxu0 %v458
  %628 = vmatprep.subr.bf16.mxu0 0
  %629 = vmatpush2.bf16.msra.mxu0 %v457
  %630 = vmatprep.subr.bf16.mxu0 0
  %631 = vmatpush2.bf16.msra.mxu0 %v456
  %632 = vmatprep.mubr.bf16.mxu0 %v163
  %633 = vmatmul.mubr.bf16.gmra.mxu0 %v162
  %v634 = vpop.f32.mrf.mxu0
  %v635 = vadd.f32 %v595, %v634
  %v636 = vpop.f32.mrf.mxu0
  %v637 = vpop.f32.mrf.mxu0
  %v638 = vpop.f32.mrf.mxu0
  %639 = vdwg.mxu0
  %640 = vmatprep.subr.bf16.mxu0 0
  %641 = vmatpush1.bf16.msra.mxu0 %v471
  %642 = vmatprep.subr.bf16.mxu0 0
  %643 = vmatpush1.bf16.msra.mxu0 %v470
  %644 = vmatprep.subr.bf16.mxu0 0
  %645 = vmatpush1.bf16.msra.mxu0 %v469
  %646 = vmatprep.subr.bf16.mxu0 0
  %647 = vmatpush1.bf16.msra.mxu0 %v468
  %648 = vmatprep.subr.bf16.mxu0 0
  %649 = vmatpush1.bf16.msra.mxu0 %v467
  %650 = vmatprep.subr.bf16.mxu0 0
  %651 = vmatpush1.bf16.msra.mxu0 %v466
  %652 = vmatprep.subr.bf16.mxu0 0
  %653 = vmatpush1.bf16.msra.mxu0 %v465
  %654 = vmatprep.subr.bf16.mxu0 0
  %655 = vmatpush1.bf16.msra.mxu0 %v464
  %656 = vmatprep.subr.bf16.mxu0 0
  %657 = vmatpush2.bf16.msra.mxu0 %v479
  %658 = vmatprep.subr.bf16.mxu0 0
  %659 = vmatpush2.bf16.msra.mxu0 %v478
  %660 = vmatprep.subr.bf16.mxu0 0
  %661 = vmatpush2.bf16.msra.mxu0 %v477
  %662 = vmatprep.subr.bf16.mxu0 0
  %663 = vmatpush2.bf16.msra.mxu0 %v476
  %664 = vmatprep.subr.bf16.mxu0 0
  %665 = vmatpush2.bf16.msra.mxu0 %v475
  %666 = vmatprep.subr.bf16.mxu0 0
  %667 = vmatpush2.bf16.msra.mxu0 %v474
  %668 = vmatprep.subr.bf16.mxu0 0
  %669 = vmatpush2.bf16.msra.mxu0 %v473
  %670 = vmatprep.subr.bf16.mxu0 0
  %671 = vmatpush2.bf16.msra.mxu0 %v472
  %672 = vmatprep.mubr.bf16.mxu0 %v165
  %673 = vmatmul.mubr.bf16.gmra.mxu0 %v164
  %v674 = vpop.f32.mrf.mxu0
  %v675 = vadd.f32 %v635, %v674
  %v676 = vpop.f32.mrf.mxu0
  %v677 = vpop.f32.mrf.mxu0
  %v678 = vpop.f32.mrf.mxu0
  %679 = vdwg.mxu0
  %680 = vmatprep.subr.bf16.mxu0 0
  %681 = vmatpush1.bf16.msra.mxu0 %v487
  %682 = vmatprep.subr.bf16.mxu0 0
  %683 = vmatpush1.bf16.msra.mxu0 %v486
  %684 = vmatprep.subr.bf16.mxu0 0
  %685 = vmatpush1.bf16.msra.mxu0 %v485
  %686 = vmatprep.subr.bf16.mxu0 0
  %687 = vmatpush1.bf16.msra.mxu0 %v484
  %688 = vmatprep.subr.bf16.mxu0 0
  %689 = vmatpush1.bf16.msra.mxu0 %v483
  %690 = vmatprep.subr.bf16.mxu0 0
  %691 = vmatpush1.bf16.msra.mxu0 %v482
  %692 = vmatprep.subr.bf16.mxu0 0
  %693 = vmatpush1.bf16.msra.mxu0 %v481
  %694 = vmatprep.subr.bf16.mxu0 0
  %695 = vmatpush1.bf16.msra.mxu0 %v480
  %696 = vmatprep.subr.bf16.mxu0 0
  %697 = vmatpush2.bf16.msra.mxu0 %v495
  %698 = vmatprep.subr.bf16.mxu0 0
  %699 = vmatpush2.bf16.msra.mxu0 %v494
  %700 = vmatprep.subr.bf16.mxu0 0
  %701 = vmatpush2.bf16.msra.mxu0 %v493
  %702 = vmatprep.subr.bf16.mxu0 0
  %703 = vmatpush2.bf16.msra.mxu0 %v492
  %704 = vmatprep.subr.bf16.mxu0 0
  %705 = vmatpush2.bf16.msra.mxu0 %v491
  %706 = vmatprep.subr.bf16.mxu0 0
  %707 = vmatpush2.bf16.msra.mxu0 %v490
  %708 = vmatprep.subr.bf16.mxu0 0
  %709 = vmatpush2.bf16.msra.mxu0 %v489
  %710 = vmatprep.subr.bf16.mxu0 0
  %711 = vmatpush2.bf16.msra.mxu0 %v488
  %712 = vmatprep.mubr.bf16.mxu0 %v167
  %713 = vmatmul.mubr.bf16.gmra.mxu0 %v166
  %v714 = vpop.f32.mrf.mxu0
  %v715 = vadd.f32 %v675, %v714
  %v716 = vpop.f32.mrf.mxu0
  %v717 = vpop.f32.mrf.mxu0
  %v718 = vpop.f32.mrf.mxu0
  %719 = vdwg.mxu0
  %720 = vst [vmem:[%s3] sm:$0xff] %v715
  // Predicated region
  $region14: #{discriminator_forward.9} parent=0 // pred_check
    _
  $region15: #{discriminator_forward.9} parent=0 // pred_check_branch
    %722 = sbr.rel (0) target = $region17
  $region16: #{discriminator_forward.9} parent=0 // pred_region
    _
  $region17: #{discriminator_forward.9} parent=0 // pred_fallthru
    _
  // Predicated region
  $region18: #{discriminator_forward.9} parent=0 // pred_check
    _
  $region19: #{discriminator_forward.9} parent=0 // pred_check_branch
    %724 = sbr.rel (0) target = $region21
  $region20: #{discriminator_forward.9} parent=0 // pred_region
    _
  $region21: #{discriminator_forward.9} parent=0 // pred_fallthru
    _

</llo_original>
